<compile_context>
chip_gen: v5e
topology: v5e:2x2
jax: 0.10.0
libtpu: 0.0.40
codegen_flags: <defaults>
</compile_context>

<pallas_src>
import functools

import jax
import jax.numpy as jnp
from jax import lax
from jax.experimental import pallas as pl
from jax.experimental.pallas import tpu as pltpu


# ---------------------------------------------------------------------------
# Kernel
# ---------------------------------------------------------------------------
def _residual_block_kernel(*refs, H, has_downsample):
    """One (batch-element, row-tile) step of the fused residual block.

    x_ref : (TH+4, Wx, Cin_p)  bf16, zero-padded input tile incl. 2-row halo
    w1_ref: (9*Cin_p, k*Cout_p) bf16, conv1 (and optionally downsample) weights
    w2_ref: (9*Cout_p, Cout_p)  bf16, conv2 weights
    s*/b* : (1, Cout_p) f32, folded BN scale / bias
    o_ref : (TH, W, Cout_p) f32 output tile
    """
    if has_downsample:
        (x_ref, w1_ref, s1_ref, b1_ref, w2_ref, s2_ref, b2_ref,
         sd_ref, bd_ref, o_ref) = refs
    else:
        (x_ref, w1_ref, s1_ref, b1_ref, w2_ref, s2_ref, b2_ref, o_ref) = refs
        sd_ref = bd_ref = None

    TH, W, cout_p = o_ref.shape
    _, Wx, cin_p = x_ref.shape
    He, We = TH + 2, Wx - 2            # extended (conv1-grid) tile incl. halo

    r0 = pl.program_id(1) * TH         # first output row of this tile

    x = x_ref[...]                     # (TH+4, Wx, Cin_p) bf16

    # ---- conv1 (+ fused downsample conv): single im2col matmul, K = 9*Cin_p
    taps = [x[dh:dh + He, dw:dw + We, :] for dh in range(3) for dw in range(3)]
    patch = jnp.concatenate(taps, axis=-1).reshape(He * We, 9 * cin_p)
    y = jnp.dot(patch, w1_ref[...], preferred_element_type=jnp.float32)
    y = y.reshape(He, We, -1)          # (He, We, k*Cout_p), f32

    # bn1 + relu
    h1 = jnp.maximum(y[:, :, :cout_p] * s1_ref[...] + b1_ref[...], 0.0)

    # conv2's zero padding: halo positions outside the image must be exactly 0.
    row_g = r0 - 1 + lax.broadcasted_iota(jnp.int32, (He, We, 1), 0)
    col_g = lax.broadcasted_iota(jnp.int32, (He, We, 1), 1) - 1
    valid = (row_g >= 0) & (row_g < H) & (col_g >= 0) & (col_g < W)
    h1 = jnp.where(valid, h1, 0.0).astype(jnp.bfloat16)

    # ---- conv2: single im2col matmul, K = 9*Cout_p ----
    taps2 = [h1[dh:dh + TH, dw:dw + W, :] for dh in range(3) for dw in range(3)]
    patch2 = jnp.concatenate(taps2, axis=-1).reshape(TH * W, 9 * cout_p)
    h2 = jnp.dot(patch2, w2_ref[...], preferred_element_type=jnp.float32)
    h2 = h2.reshape(TH, W, cout_p) * s2_ref[...] + b2_ref[...]

    # ---- residual path ----
    if has_downsample:
        # Downsample conv output was produced by the SAME matmul as conv1
        # (extra Cout_p lanes); take the interior of the extended grid.
        res = y[1:TH + 1, 1:W + 1, cout_p:] * sd_ref[...] + bd_ref[...]
    else:
        res = x[2:TH + 2, 2:W + 2, :].astype(jnp.float32)

    # ---- add + final relu ----
    o_ref[...] = jnp.maximum(h2 + res, 0.0)


# ---------------------------------------------------------------------------
# Host-side packing / wrapper
# ---------------------------------------------------------------------------
def _round_up(v, m):
    return (v + m - 1) // m * m


def _fold_bn(gamma, beta, mean, var, c_pad, eps=1e-5):
    scale = gamma / jnp.sqrt(var + eps)
    bias = beta - mean * scale
    pad = c_pad - scale.shape[0]
    scale = jnp.pad(scale, (0, pad))          # padded channels: scale=0, bias=0
    bias = jnp.pad(bias, (0, pad))
    return (scale.reshape(1, -1).astype(jnp.float32),
            bias.reshape(1, -1).astype(jnp.float32))


def _pack_conv_weight(w, cin_p, cout_p):
    kh, kw, ci, co = w.shape
    w = jnp.pad(w, ((0, 0), (0, 0), (0, cin_p - ci), (0, cout_p - co)))
    return w.reshape(kh * kw * cin_p, cout_p).astype(jnp.bfloat16)


def residual_block(x_nchw, params, *, row_tile=8):
    """x_nchw: (N, Cin, H, W) float32.  Returns (N, Cout, H, W) float32."""
    N, Cin, H, W = x_nchw.shape
    Cout = params["w1"].shape[-1]
    has_ds = params["wd"] is not None
    if not has_ds:
        assert Cin == Cout, "identity residual requires Cin == Cout"

    cin_p = _round_up(Cin, 128)           # dense lane dims
    cout_p = _round_up(Cout, 128)
    TH = row_tile if (H % row_tile == 0) else H
    nhb = H // TH
    We = _round_up(W + 2, 8)              # extended width, sublane-aligned
    Wx = We + 2                           # x-tile width (incl. conv1 halo)

    # NCHW -> NHWC, bf16 matmul operands, spatial + channel zero padding.
    x = jnp.transpose(x_nchw, (0, 2, 3, 1)).astype(jnp.bfloat16)
    x = jnp.pad(x, ((0, 0), (2, 2), (2, Wx - W - 2), (0, cin_p - Cin)))
    # Overlapping row blocks carrying their own 2-row halo so every grid step
    # is independent (cost: 4 duplicated halo rows per tile of TH rows).
    x_blocks = jnp.stack(
        [x[:, t * TH: t * TH + TH + 4] for t in range(nhb)], axis=1)
    # -> (N, nhb, TH+4, Wx, cin_p)

    w1m = _pack_conv_weight(params["w1"], cin_p, cout_p)
    w2m = _pack_conv_weight(params["w2"], cout_p, cout_p)
    s1, b1 = _fold_bn(*params["bn1"], cout_p)
    s2, b2 = _fold_bn(*params["bn2"], cout_p)

    if has_ds:
        wdm = _pack_conv_weight(params["wd"], cin_p, cout_p)
        w1m = jnp.concatenate([w1m, wdm], axis=-1)   # share patch + MXU pass
        sd, bd = _fold_bn(*params["bnd"], cout_p)
        extra = [sd, bd]
    else:
        extra = []

    args = [x_blocks, w1m, s1, b1, w2m, s2, b2] + extra

    def _full(a):
        r = a.ndim
        return pl.BlockSpec(a.shape, lambda n, t, r=r: (0,) * r)

    in_specs = [pl.BlockSpec((None, None, TH + 4, Wx, cin_p),
                             lambda n, t: (n, t, 0, 0, 0))]
    in_specs += [_full(a) for a in args[1:]]
    out_spec = pl.BlockSpec((None, TH, W, cout_p), lambda n, t: (n, t, 0, 0))

    kernel = functools.partial(_residual_block_kernel, H=H,
                               has_downsample=has_ds)

    out = pl.pallas_call(
        kernel,
        out_shape=jax.ShapeDtypeStruct((N, H, W, cout_p), jnp.float32),
        grid=(N, nhb),
        in_specs=in_specs,
        out_specs=out_spec,
        compiler_params=pltpu.CompilerParams(
            # Both grid axes are independent: megacore sharding on v7x.
            dimension_semantics=("parallel", "parallel"),
            # Per-step working set is a few MiB; keep well under v7x's 64 MiB.
            vmem_limit_bytes=32 * 1024 * 1024),
    )(*args)

    out = out[:, :, :, :Cout]                       # drop channel padding
    return jnp.transpose(out, (0, 3, 1, 2))         # NHWC -> NCHW


# ---------------------------------------------------------------------------
# Pure-JAX reference (correctness check) and deterministic parameter init.
# ---------------------------------------------------------------------------
def _conv3x3_ref(x_nhwc, w_hwio):
    return jax.lax.conv_general_dilated(
        x_nhwc, w_hwio, window_strides=(1, 1), padding=((1, 1), (1, 1)),
        dimension_numbers=("NHWC", "HWIO", "NHWC"))


def _bn_ref(x, gamma, beta, mean, var, eps=1e-5):
    return (x - mean) / jnp.sqrt(var + eps) * gamma + beta


def residual_block_ref(x_nchw, params):
    x = jnp.transpose(x_nchw, (0, 2, 3, 1))
    out = _conv3x3_ref(x, params["w1"])
    out = _bn_ref(out, *params["bn1"])
    out = jnp.maximum(out, 0.0)
    out = _conv3x3_ref(out, params["w2"])
    out = _bn_ref(out, *params["bn2"])
    if params["wd"] is not None:
        res = _bn_ref(_conv3x3_ref(x, params["wd"]), *params["bnd"])
    else:
        res = x
    out = jnp.maximum(out + res, 0.0)
    return jnp.transpose(out, (0, 3, 1, 2))


def make_params(key, in_channels, out_channels, stride=1):
    assert stride == 1, "TODO(synk): stride>1 not implemented in this kernel"
    ks = jax.random.split(key, 12)

    def bn_params(k, c):
        k1, k2, k3, k4 = jax.random.split(k, 4)
        gamma = 1.0 + 0.1 * jax.random.normal(k1, (c,), jnp.float32)
        beta = 0.1 * jax.random.normal(k2, (c,), jnp.float32)
        mean = 0.1 * jax.random.normal(k3, (c,), jnp.float32)
        var = jnp.abs(jax.random.normal(k4, (c,), jnp.float32)) + 0.5
        return (gamma, beta, mean, var)

    params = {
        "w1": 0.1 * jax.random.normal(ks[0], (3, 3, in_channels, out_channels),
                                      jnp.float32),
        "bn1": bn_params(ks[1], out_channels),
        "w2": 0.1 * jax.random.normal(ks[2], (3, 3, out_channels, out_channels),
                                      jnp.float32),
        "bn2": bn_params(ks[3], out_channels),
    }
    if in_channels != out_channels or stride != 1:
        # PyTorch spec uses a 3x3 conv (conv3x3) in the downsample branch.
        params["wd"] = 0.1 * jax.random.normal(
            ks[4], (3, 3, in_channels, out_channels), jnp.float32)
        params["bnd"] = bn_params(ks[5], out_channels)
    else:
        params["wd"] = None
        params["bnd"] = None
    return params


if __name__ == "__main__":
    key = jax.random.PRNGKey(0)
    k_x, k_p, k_x2, k_p2 = jax.random.split(key, 4)

    # Case 1: channel-changing block (downsample branch active).
    N, Cin, Cout, H, W = 2, 4, 8, 16, 16
    x = jax.random.normal(k_x, (N, Cin, H, W), jnp.float32)
    params = make_params(k_p, Cin, Cout, stride=1)
    out = jax.block_until_ready(residual_block(x, params))
    ref = jax.block_until_ready(residual_block_ref(x, params))
    assert out.shape == (N, Cout, H, W)
    assert jnp.allclose(out, ref, atol=3e-2, rtol=3e-2), \
        float(jnp.max(jnp.abs(out - ref)))

    # Case 2: identity residual (no downsample).
    C = 8
    x2 = jax.random.normal(k_x2, (N, C, H, W), jnp.float32)
    params2 = make_params(k_p2, C, C, stride=1)
    out2 = jax.block_until_ready(residual_block(x2, params2))
    ref2 = jax.block_until_ready(residual_block_ref(x2, params2))
    assert out2.shape == (N, C, H, W)
    assert jnp.allclose(out2, ref2, atol=3e-2, rtol=3e-2), \
        float(jnp.max(jnp.abs(out2 - ref2)))

    print("KERNEL_OK")
</pallas_src>

<mosaic_0001>
module attributes {stable_mosaic.version = 11 : i64} {
  func.func @_residual_block_kernel(%arg0: i32, %arg1: i32, %arg2: memref<1x1x12x26x128xbf16, #tpu.memory_space<vmem>>, %arg3: memref<1152x256xbf16, #tpu.memory_space<vmem>>, %arg4: memref<1x128xf32, #tpu.memory_space<vmem>>, %arg5: memref<1x128xf32, #tpu.memory_space<vmem>>, %arg6: memref<1152x128xbf16, #tpu.memory_space<vmem>>, %arg7: memref<1x128xf32, #tpu.memory_space<vmem>>, %arg8: memref<1x128xf32, #tpu.memory_space<vmem>>, %arg9: memref<1x128xf32, #tpu.memory_space<vmem>>, %arg10: memref<1x128xf32, #tpu.memory_space<vmem>>, %arg11: memref<1x8x16x128xf32, #tpu.memory_space<vmem>>) attributes {dimension_semantics = [#tpu.dimension_semantics<parallel>, #tpu.dimension_semantics<parallel>], iteration_bounds = array<i64: 2, 2>, scalar_prefetch = 0 : i64, scratch_operands = 0 : i64, tpu.core_type = #tpu.core_type<tc>, window_params = [{transform_indices = @transform_0, window_bounds = array<i64: 1, 1, 12, 26, 128>}, {pipeline_mode = #tpu.pipeline_mode<synchronous>, transform_indices = @transform_1, window_bounds = array<i64: 1152, 256>}, {pipeline_mode = #tpu.pipeline_mode<synchronous>, transform_indices = @transform_2, window_bounds = array<i64: 1, 128>}, {pipeline_mode = #tpu.pipeline_mode<synchronous>, transform_indices = @transform_3, window_bounds = array<i64: 1, 128>}, {pipeline_mode = #tpu.pipeline_mode<synchronous>, transform_indices = @transform_4, window_bounds = array<i64: 1152, 128>}, {pipeline_mode = #tpu.pipeline_mode<synchronous>, transform_indices = @transform_5, window_bounds = array<i64: 1, 128>}, {pipeline_mode = #tpu.pipeline_mode<synchronous>, transform_indices = @transform_6, window_bounds = array<i64: 1, 128>}, {pipeline_mode = #tpu.pipeline_mode<synchronous>, transform_indices = @transform_7, window_bounds = array<i64: 1, 128>}, {pipeline_mode = #tpu.pipeline_mode<synchronous>, transform_indices = @transform_8, window_bounds = array<i64: 1, 128>}, {transform_indices = @transform_9, window_bounds = array<i64: 1, 8, 16, 128>}]} {
    %c8_i32 = arith.constant 8 : i32
    %0 = arith.muli %arg1, %c8_i32 : i32
    %c0 = arith.constant 0 : index
    %c0_0 = arith.constant 0 : index
    %c0_1 = arith.constant 0 : index
    %c0_2 = arith.constant 0 : index
    %c0_3 = arith.constant 0 : index
    %1 = vector.load %arg2[%c0, %c0_0, %c0_1, %c0_2, %c0_3] : memref<1x1x12x26x128xbf16, #tpu.memory_space<vmem>>, vector<1x1x12x26x128xbf16>
    %2 = vector.shape_cast %1 : vector<1x1x12x26x128xbf16> to vector<12x26x128xbf16>
    %3 = vector.extract_strided_slice %2 {offsets = [0, 0, 0], sizes = [10, 24, 128], strides = [1, 1, 1]} : vector<12x26x128xbf16> to vector<10x24x128xbf16>
    %4 = vector.extract_strided_slice %2 {offsets = [0, 1, 0], sizes = [10, 24, 128], strides = [1, 1, 1]} : vector<12x26x128xbf16> to vector<10x24x128xbf16>
    %5 = vector.extract_strided_slice %2 {offsets = [0, 2, 0], sizes = [10, 24, 128], strides = [1, 1, 1]} : vector<12x26x128xbf16> to vector<10x24x128xbf16>
    %6 = vector.extract_strided_slice %2 {offsets = [1, 0, 0], sizes = [10, 24, 128], strides = [1, 1, 1]} : vector<12x26x128xbf16> to vector<10x24x128xbf16>
    %7 = vector.extract_strided_slice %2 {offsets = [1, 1, 0], sizes = [10, 24, 128], strides = [1, 1, 1]} : vector<12x26x128xbf16> to vector<10x24x128xbf16>
    %8 = vector.extract_strided_slice %2 {offsets = [1, 2, 0], sizes = [10, 24, 128], strides = [1, 1, 1]} : vector<12x26x128xbf16> to vector<10x24x128xbf16>
    %9 = vector.extract_strided_slice %2 {offsets = [2, 0, 0], sizes = [10, 24, 128], strides = [1, 1, 1]} : vector<12x26x128xbf16> to vector<10x24x128xbf16>
    %10 = vector.extract_strided_slice %2 {offsets = [2, 1, 0], sizes = [10, 24, 128], strides = [1, 1, 1]} : vector<12x26x128xbf16> to vector<10x24x128xbf16>
    %11 = vector.extract_strided_slice %2 {offsets = [2, 2, 0], sizes = [10, 24, 128], strides = [1, 1, 1]} : vector<12x26x128xbf16> to vector<10x24x128xbf16>
    %12 = tpu.concatenate %3, %4, %5, %6, %7, %8, %9, %10, %11 in 2 : vector<10x24x128xbf16>, vector<10x24x128xbf16>, vector<10x24x128xbf16>, vector<10x24x128xbf16>, vector<10x24x128xbf16>, vector<10x24x128xbf16>, vector<10x24x128xbf16>, vector<10x24x128xbf16>, vector<10x24x128xbf16> -> vector<10x24x1152xbf16>
    %13 = vector.shape_cast %12 : vector<10x24x1152xbf16> to vector<240x1152xbf16>
    %c0_4 = arith.constant 0 : index
    %c0_5 = arith.constant 0 : index
    %14 = vector.load %arg3[%c0_4, %c0_5] : memref<1152x256xbf16, #tpu.memory_space<vmem>>, vector<1152x256xbf16>
    %cst = arith.constant dense<0.000000e+00> : vector<240x256xf32>
    %15 = tpu.matmul %13, %14, %cst {dimension_numbers = #tpu.dot_dimension_numbers<[1], [0], [0], [1], [0, 0, 1, 1], [], []>} : vector<240x1152xbf16>, vector<1152x256xbf16>, vector<240x256xf32> -> vector<240x256xf32>
    %16 = vector.shape_cast %15 : vector<240x256xf32> to vector<10x24x256xf32>
    %17 = vector.extract_strided_slice %16 {offsets = [0, 0, 0], sizes = [10, 24, 128], strides = [1, 1, 1]} : vector<10x24x256xf32> to vector<10x24x128xf32>
    %c0_6 = arith.constant 0 : index
    %c0_7 = arith.constant 0 : index
    %18 = vector.load %arg4[%c0_6, %c0_7] : memref<1x128xf32, #tpu.memory_space<vmem>>, vector<1x128xf32>
    %19 = vector.shape_cast %18 : vector<1x128xf32> to vector<1x1x128xf32>
    %20 = vector.broadcast %19 : vector<1x1x128xf32> to vector<10x24x128xf32>
    %21 = arith.mulf %17, %20 : vector<10x24x128xf32>
    %c0_8 = arith.constant 0 : index
    %c0_9 = arith.constant 0 : index
    %22 = vector.load %arg5[%c0_8, %c0_9] : memref<1x128xf32, #tpu.memory_space<vmem>>, vector<1x128xf32>
    %23 = vector.shape_cast %22 : vector<1x128xf32> to vector<1x1x128xf32>
    %24 = vector.broadcast %23 : vector<1x1x128xf32> to vector<10x24x128xf32>
    %25 = arith.addf %21, %24 : vector<10x24x128xf32>
    %cst_10 = arith.constant 0.000000e+00 : f32
    %26 = vector.broadcast %cst_10 : f32 to vector<10x24x128xf32>
    %27 = arith.maximumf %25, %26 : vector<10x24x128xf32>
    %c1_i32 = arith.constant 1 : i32
    %28 = arith.subi %0, %c1_i32 : i32
    %29 = tpu.iota {dimensions = array<i32: 0>} : vector<10x24x1xi32>
    %30 = vector.broadcast %28 : i32 to vector<10x24x1xi32>
    %31 = arith.addi %30, %29 : vector<10x24x1xi32>
    %32 = tpu.iota {dimensions = array<i32: 1>} : vector<10x24x1xi32>
    %c1_i32_11 = arith.constant 1 : i32
    %33 = vector.broadcast %c1_i32_11 : i32 to vector<10x24x1xi32>
    %34 = arith.subi %32, %33 : vector<10x24x1xi32>
    %c0_i32 = arith.constant 0 : i32
    %35 = vector.broadcast %c0_i32 : i32 to vector<10x24x1xi32>
    %36 = arith.cmpi sge, %31, %35 : vector<10x24x1xi32>
    %c16_i32 = arith.constant 16 : i32
    %37 = vector.broadcast %c16_i32 : i32 to vector<10x24x1xi32>
    %38 = arith.cmpi slt, %31, %37 : vector<10x24x1xi32>
    %39 = arith.andi %36, %38 : vector<10x24x1xi1>
    %c0_i32_12 = arith.constant 0 : i32
    %40 = vector.broadcast %c0_i32_12 : i32 to vector<10x24x1xi32>
    %41 = arith.cmpi sge, %34, %40 : vector<10x24x1xi32>
    %42 = arith.andi %39, %41 : vector<10x24x1xi1>
    %c16_i32_13 = arith.constant 16 : i32
    %43 = vector.broadcast %c16_i32_13 : i32 to vector<10x24x1xi32>
    %44 = arith.cmpi slt, %34, %43 : vector<10x24x1xi32>
    %45 = arith.andi %42, %44 : vector<10x24x1xi1>
    %cst_14 = arith.constant 0.000000e+00 : f32
    %46 = vector.shape_cast %45 : vector<10x24x1xi1> to vector<10x24x1xi1>
    %47 = vector.broadcast %46 : vector<10x24x1xi1> to vector<10x24x128xi1>
    %48 = vector.broadcast %cst_14 : f32 to vector<10x24x128xf32>
    %49 = arith.select %47, %27, %48 : vector<10x24x128xi1>, vector<10x24x128xf32>
    %50 = arith.truncf %49 : vector<10x24x128xf32> to vector<10x24x128xbf16>
    %51 = vector.extract_strided_slice %50 {offsets = [0, 0, 0], sizes = [8, 16, 128], strides = [1, 1, 1]} : vector<10x24x128xbf16> to vector<8x16x128xbf16>
    %52 = vector.extract_strided_slice %50 {offsets = [0, 1, 0], sizes = [8, 16, 128], strides = [1, 1, 1]} : vector<10x24x128xbf16> to vector<8x16x128xbf16>
    %53 = vector.extract_strided_slice %50 {offsets = [0, 2, 0], sizes = [8, 16, 128], strides = [1, 1, 1]} : vector<10x24x128xbf16> to vector<8x16x128xbf16>
    %54 = vector.extract_strided_slice %50 {offsets = [1, 0, 0], sizes = [8, 16, 128], strides = [1, 1, 1]} : vector<10x24x128xbf16> to vector<8x16x128xbf16>
    %55 = vector.extract_strided_slice %50 {offsets = [1, 1, 0], sizes = [8, 16, 128], strides = [1, 1, 1]} : vector<10x24x128xbf16> to vector<8x16x128xbf16>
    %56 = vector.extract_strided_slice %50 {offsets = [1, 2, 0], sizes = [8, 16, 128], strides = [1, 1, 1]} : vector<10x24x128xbf16> to vector<8x16x128xbf16>
    %57 = vector.extract_strided_slice %50 {offsets = [2, 0, 0], sizes = [8, 16, 128], strides = [1, 1, 1]} : vector<10x24x128xbf16> to vector<8x16x128xbf16>
    %58 = vector.extract_strided_slice %50 {offsets = [2, 1, 0], sizes = [8, 16, 128], strides = [1, 1, 1]} : vector<10x24x128xbf16> to vector<8x16x128xbf16>
    %59 = vector.extract_strided_slice %50 {offsets = [2, 2, 0], sizes = [8, 16, 128], strides = [1, 1, 1]} : vector<10x24x128xbf16> to vector<8x16x128xbf16>
    %60 = tpu.concatenate %51, %52, %53, %54, %55, %56, %57, %58, %59 in 2 : vector<8x16x128xbf16>, vector<8x16x128xbf16>, vector<8x16x128xbf16>, vector<8x16x128xbf16>, vector<8x16x128xbf16>, vector<8x16x128xbf16>, vector<8x16x128xbf16>, vector<8x16x128xbf16>, vector<8x16x128xbf16> -> vector<8x16x1152xbf16>
    %61 = vector.shape_cast %60 : vector<8x16x1152xbf16> to vector<128x1152xbf16>
    %c0_15 = arith.constant 0 : index
    %c0_16 = arith.constant 0 : index
    %62 = vector.load %arg6[%c0_15, %c0_16] : memref<1152x128xbf16, #tpu.memory_space<vmem>>, vector<1152x128xbf16>
    %cst_17 = arith.constant dense<0.000000e+00> : vector<128x128xf32>
    %63 = tpu.matmul %61, %62, %cst_17 {dimension_numbers = #tpu.dot_dimension_numbers<[1], [0], [0], [1], [0, 0, 1, 1], [], []>} : vector<128x1152xbf16>, vector<1152x128xbf16>, vector<128x128xf32> -> vector<128x128xf32>
    %64 = vector.shape_cast %63 : vector<128x128xf32> to vector<8x16x128xf32>
    %c0_18 = arith.constant 0 : index
    %c0_19 = arith.constant 0 : index
    %65 = vector.load %arg7[%c0_18, %c0_19] : memref<1x128xf32, #tpu.memory_space<vmem>>, vector<1x128xf32>
    %66 = vector.shape_cast %65 : vector<1x128xf32> to vector<1x1x128xf32>
    %67 = vector.broadcast %66 : vector<1x1x128xf32> to vector<8x16x128xf32>
    %68 = arith.mulf %64, %67 : vector<8x16x128xf32>
    %c0_20 = arith.constant 0 : index
    %c0_21 = arith.constant 0 : index
    %69 = vector.load %arg8[%c0_20, %c0_21] : memref<1x128xf32, #tpu.memory_space<vmem>>, vector<1x128xf32>
    %70 = vector.shape_cast %69 : vector<1x128xf32> to vector<1x1x128xf32>
    %71 = vector.broadcast %70 : vector<1x1x128xf32> to vector<8x16x128xf32>
    %72 = arith.addf %68, %71 : vector<8x16x128xf32>
    %73 = vector.extract_strided_slice %16 {offsets = [1, 1, 128], sizes = [8, 16, 128], strides = [1, 1, 1]} : vector<10x24x256xf32> to vector<8x16x128xf32>
    %c0_22 = arith.constant 0 : index
    %c0_23 = arith.constant 0 : index
    %74 = vector.load %arg9[%c0_22, %c0_23] : memref<1x128xf32, #tpu.memory_space<vmem>>, vector<1x128xf32>
    %75 = vector.shape_cast %74 : vector<1x128xf32> to vector<1x1x128xf32>
    %76 = vector.broadcast %75 : vector<1x1x128xf32> to vector<8x16x128xf32>
    %77 = arith.mulf %73, %76 : vector<8x16x128xf32>
    %c0_24 = arith.constant 0 : index
    %c0_25 = arith.constant 0 : index
    %78 = vector.load %arg10[%c0_24, %c0_25] : memref<1x128xf32, #tpu.memory_space<vmem>>, vector<1x128xf32>
    %79 = vector.shape_cast %78 : vector<1x128xf32> to vector<1x1x128xf32>
    %80 = vector.broadcast %79 : vector<1x1x128xf32> to vector<8x16x128xf32>
    %81 = arith.addf %77, %80 : vector<8x16x128xf32>
    %82 = arith.addf %72, %81 : vector<8x16x128xf32>
    %cst_26 = arith.constant 0.000000e+00 : f32
    %83 = vector.broadcast %cst_26 : f32 to vector<8x16x128xf32>
    %84 = arith.maximumf %82, %83 : vector<8x16x128xf32>
    %c0_27 = arith.constant 0 : index
    %c0_28 = arith.constant 0 : index
    %c0_29 = arith.constant 0 : index
    %c0_30 = arith.constant 0 : index
    %85 = vector.load %arg11[%c0_27, %c0_28, %c0_29, %c0_30] : memref<1x8x16x128xf32, #tpu.memory_space<vmem>>, vector<1x8x16x128xf32>
    %86 = vector.shape_cast %85 : vector<1x8x16x128xf32> to vector<8x16x128xf32>
    %87 = vector.shape_cast %84 : vector<8x16x128xf32> to vector<1x8x16x128xf32>
    tpu.vector_store %arg11[%c0_27, %c0_28, %c0_29, %c0_30], %87 {strides = array<i32>} : memref<1x8x16x128xf32, #tpu.memory_space<vmem>>, vector<1x8x16x128xf32>,
    return
  }
  func.func @transform_0(%arg0: i32, %arg1: i32) -> (i32, i32, i32, i32, i32) {
    %c0_i32 = arith.constant 0 : i32
    %c0_i32_0 = arith.constant 0 : i32
    %c0_i32_1 = arith.constant 0 : i32
    %c0_i32_2 = arith.constant 0 : i32
    return %arg0, %arg1, %c0_i32, %c0_i32_0, %c0_i32_1 : i32, i32, i32, i32, i32
  }
  func.func @transform_1(%arg0: i32, %arg1: i32) -> (i32, i32) {
    %c0_i32 = arith.constant 0 : i32
    %c0_i32_0 = arith.constant 0 : i32
    %c0_i32_1 = arith.constant 0 : i32
    return %c0_i32, %c0_i32_0 : i32, i32
  }
  func.func @transform_2(%arg0: i32, %arg1: i32) -> (i32, i32) {
    %c0_i32 = arith.constant 0 : i32
    %c0_i32_0 = arith.constant 0 : i32
    %c0_i32_1 = arith.constant 0 : i32
    return %c0_i32, %c0_i32_0 : i32, i32
  }
  func.func @transform_3(%arg0: i32, %arg1: i32) -> (i32, i32) {
    %c0_i32 = arith.constant 0 : i32
    %c0_i32_0 = arith.constant 0 : i32
    %c0_i32_1 = arith.constant 0 : i32
    return %c0_i32, %c0_i32_0 : i32, i32
  }
  func.func @transform_4(%arg0: i32, %arg1: i32) -> (i32, i32) {
    %c0_i32 = arith.constant 0 : i32
    %c0_i32_0 = arith.constant 0 : i32
    %c0_i32_1 = arith.constant 0 : i32
    return %c0_i32, %c0_i32_0 : i32, i32
  }
  func.func @transform_5(%arg0: i32, %arg1: i32) -> (i32, i32) {
    %c0_i32 = arith.constant 0 : i32
    %c0_i32_0 = arith.constant 0 : i32
    %c0_i32_1 = arith.constant 0 : i32
    return %c0_i32, %c0_i32_0 : i32, i32
  }
  func.func @transform_6(%arg0: i32, %arg1: i32) -> (i32, i32) {
    %c0_i32 = arith.constant 0 : i32
    %c0_i32_0 = arith.constant 0 : i32
    %c0_i32_1 = arith.constant 0 : i32
    return %c0_i32, %c0_i32_0 : i32, i32
  }
  func.func @transform_7(%arg0: i32, %arg1: i32) -> (i32, i32) {
    %c0_i32 = arith.constant 0 : i32
    %c0_i32_0 = arith.constant 0 : i32
    %c0_i32_1 = arith.constant 0 : i32
    return %c0_i32, %c0_i32_0 : i32, i32
  }
  func.func @transform_8(%arg0: i32, %arg1: i32) -> (i32, i32) {
    %c0_i32 = arith.constant 0 : i32
    %c0_i32_0 = arith.constant 0 : i32
    %c0_i32_1 = arith.constant 0 : i32
    return %c0_i32, %c0_i32_0 : i32, i32
  }
  func.func @transform_9(%arg0: i32, %arg1: i32) -> (i32, i32, i32, i32) {
    %c0_i32 = arith.constant 0 : i32
    %c0_i32_0 = arith.constant 0 : i32
    %c0_i32_1 = arith.constant 0 : i32
    return %arg0, %arg1, %c0_i32, %c0_i32_0 : i32, i32, i32, i32
  }
}

</mosaic_0001>

<llo_original>
// kernel: tpu_custom_call.1
$region0: #{tpu_custom_call.1}
  #allocation0 [shape = 'u32[]', space=smem, size = 0x4, offset = 0x4, fixed_abs, tag = 'smem constant byte address 0x4 - core index']
  #allocation1 [shape = 'u32[72,128]{1,0:T(1,128)}', space=vmem, size = 0x9000, scoped, tag = 'internal scratch']
  %s0 = inlined_call_operand.vmem [shape: bf16[2,2,12,26,128], index: 0, kind: input, shape index: {}]
  %s1 = inlined_call_operand.vmem [shape: bf16[1152,256], index: 1, kind: input, shape index: {}]
  %s2 = inlined_call_operand.vmem [shape: f32[1,128], index: 2, kind: input, shape index: {}]
  %s3 = inlined_call_operand.vmem [shape: f32[1,128], index: 3, kind: input, shape index: {}]
  %s4 = inlined_call_operand.hbm [shape: bf16[1152,128], index: 4, kind: input, shape index: {}]
  %s5 = inlined_call_operand.vmem [shape: f32[1,128], index: 5, kind: input, shape index: {}]
  %s6 = inlined_call_operand.vmem [shape: f32[1,128], index: 6, kind: input, shape index: {}]
  %s7 = inlined_call_operand.vmem [shape: f32[1,128], index: 7, kind: input, shape index: {}]
  %s8 = inlined_call_operand.vmem [shape: f32[1,128], index: 8, kind: input, shape index: {}]
  %s9 = inlined_call_operand.hbm [shape: f32[2,16,16,128], index: 9, kind: output, shape index: {}]
  %s10 = sld [smem:[#allocation0]]
  $region73: #{tpu_custom_call.1} parent=0
    _
  %s12 = ssub.s32 1, %s10
  %s13 = scalar_select 0, %s12, %s10
  $region1: #{tpu_custom_call.1} parent=0
    #allocation2 [shape = 'u8[294912]{0}', space=vmem, size = 0x48000, scoped, tag = 'input window, operand 4, single buffered']
    #allocation3 [shape = 's32[2]{0}', space=sflag, size = 0x8, scoped, tag = 'scoped memory for tpu_custom_call.1']
    #allocation4 [shape = 's32[2]{0}', space=sflag, size = 0x8, scoped, tag = 'scoped memory for tpu_custom_call.1']
    #allocation5 [shape = 'u8[131072]{0}', space=vmem, size = 0x20000, scoped, tag = 'output window, operand 0']
    %14 = vsyncpa [#allocation3], 0
    %15 = vsyncpa [#allocation4], 0
    %s16 = scalar_lea.sflag [#allocation4], 1
    %17 = vsyncpa %s16, 0
    loop: start=0, step=1, limit=6
    $region2: #{tpu_custom_call.1} parent=1 // loop_pre_header
      _
    $region3: #{tpu_custom_call.1} parent=1 // loop_header
      %s19 = sphi 0, %s23
      %p20 = scmp.ge.s32.totalorder %s19, 6
      %s26 = sphi 0, %s38
      %s27 = sphi 0, %s34
      %s28 = sphi 0, %s26
      %s29 = sphi 0, %s27
      %s30 = sphi 0, %s28
      %s31 = sphi 0, %s29
      %s43 = sphi 0, %s45
      %s46 = sphi 0, %s43
      %s47 = sphi 0, %s46
      %s63 = sphi 0, %s47
      %s67 = sphi 0, %s67
      %s69 = sphi 0, %s67
      %s70 = sphi 0, %s69
      %s84 = sphi 0, %s70
      %s88 = sphi 0, %s88
      %s90 = sphi 0, %s88
      %s91 = sphi 0, %s90
      %s105 = sphi 0, %s91
      %s109 = sphi 0, %s109
      %s111 = sphi 0, %s109
      %s112 = sphi 0, %s111
      %s126 = sphi 0, %s112
      %s130 = sphi 0, %s130
      %s132 = sphi 0, %s130
      %s133 = sphi 0, %s132
      %s147 = sphi 0, %s133
      %s151 = sphi 0, %s151
      %s153 = sphi 0, %s151
      %s154 = sphi 0, %s153
      %s168 = sphi 0, %s154
      %s172 = sphi 0, %s172
      %s174 = sphi 0, %s172
      %s175 = sphi 0, %s174
      %s189 = sphi 0, %s175
      %s193 = sphi 0, %s193
      %s195 = sphi 0, %s193
      %s196 = sphi 0, %s195
      %s210 = sphi 0, %s196
      %s214 = sphi 0, %s214
      %s216 = sphi 0, %s214
      %s217 = sphi 0, %s216
      %s231 = sphi 0, %s217
      %s239 = sphi 0, %s241
      %s242 = sphi 0, %s239
      %s243 = sphi 0, %s242
      %s259 = sphi 0, %s243
    $region4: #{tpu_custom_call.1} parent=1 // loop_header_branch
      %22 = sbr.rel (%p20) target = $region8
    $region5: #{tpu_custom_call.1} parent=1 // loop_body
      %s24 = ssub.s32 %s19, 1
      %s25 = ssub.s32 %s19, 2
      %s32 = sadd.s32 1, %s27
      %p33 = scmp.ge.s32.totalorder %s32, 2
      %s34 = scalar_select %p33, 0, %s32
      %s35 = sadd.s32 1, %s26
      %s36 = scalar_select %p33, %s35, %s26
      %p37 = scmp.ge.s32.totalorder %s36, 2
      %s38 = scalar_select %p37, 0, %s36
      %s39 = ssub.s32 %s26, %s38
      %s40 = ssub.s32 %s27, %s34
      %s41 = sor.u32 %s39, %s40
      %p42 = scmp.eq.s32.totalorder %s41, 0
      %s44 = sadd.s32 %s43, 1
      %s45 = scalar_select %p42, %s43, %s44
      %p48 = pneg %p42
      %p49 = scmp.eq.s32.totalorder %s19, 3
      %p50 = por %p48, %p49
      %p51 = scmp.ne.s32.totalorder %s43, %s46
      %p52 = scmp.eq.s32.totalorder %s19, 0
      %p53 = por %p51, %p52
      %p54 = scmp.ne.s32.totalorder %s43, %s46
      %p55 = scmp.eq.s32.totalorder %s24, 3
      %p56 = por %p54, %p55
      %p57 = scmp.ne.s32.totalorder %s46, %s47
      %p58 = scmp.eq.s32.totalorder %s24, 0
      %p59 = por %p57, %p58
      %p60 = scmp.ne.s32.totalorder %s46, %s47
      %p61 = scmp.eq.s32.totalorder %s25, 3
      %p62 = por %p60, %p61
      %p64 = scmp.ne.s32.totalorder %s47, %s63
      %p65 = scmp.eq.s32.totalorder %s25, 0
      %p66 = por %p64, %p65
      %s68 = sadd.s32 %s67, 1
      %p71 = scmp.eq.s32.totalorder %s19, 3
      %p72 = scmp.ne.s32.totalorder %s67, %s69
      %p73 = scmp.eq.s32.totalorder %s19, 0
      %p74 = por %p72, %p73
      %p75 = scmp.ne.s32.totalorder %s67, %s69
      %p76 = scmp.eq.s32.totalorder %s24, 3
      %p77 = por %p75, %p76
      %p78 = scmp.ne.s32.totalorder %s69, %s70
      %p79 = scmp.eq.s32.totalorder %s24, 0
      %p80 = por %p78, %p79
      %p81 = scmp.ne.s32.totalorder %s69, %s70
      %p82 = scmp.eq.s32.totalorder %s25, 3
      %p83 = por %p81, %p82
      %p85 = scmp.ne.s32.totalorder %s70, %s84
      %p86 = scmp.eq.s32.totalorder %s25, 0
      %p87 = por %p85, %p86
      %s89 = sadd.s32 %s88, 1
      %p92 = scmp.eq.s32.totalorder %s19, 3
      %p93 = scmp.ne.s32.totalorder %s88, %s90
      %p94 = scmp.eq.s32.totalorder %s19, 0
      %p95 = por %p93, %p94
      %p96 = scmp.ne.s32.totalorder %s88, %s90
      %p97 = scmp.eq.s32.totalorder %s24, 3
      %p98 = por %p96, %p97
      %p99 = scmp.ne.s32.totalorder %s90, %s91
      %p100 = scmp.eq.s32.totalorder %s24, 0
      %p101 = por %p99, %p100
      %p102 = scmp.ne.s32.totalorder %s90, %s91
      %p103 = scmp.eq.s32.totalorder %s25, 3
      %p104 = por %p102, %p103
      %p106 = scmp.ne.s32.totalorder %s91, %s105
      %p107 = scmp.eq.s32.totalorder %s25, 0
      %p108 = por %p106, %p107
      %s110 = sadd.s32 %s109, 1
      %p113 = scmp.eq.s32.totalorder %s19, 3
      %p114 = scmp.ne.s32.totalorder %s109, %s111
      %p115 = scmp.eq.s32.totalorder %s19, 0
      %p116 = por %p114, %p115
      %p117 = scmp.ne.s32.totalorder %s109, %s111
      %p118 = scmp.eq.s32.totalorder %s24, 3
      %p119 = por %p117, %p118
      %p120 = scmp.ne.s32.totalorder %s111, %s112
      %p121 = scmp.eq.s32.totalorder %s24, 0
      %p122 = por %p120, %p121
      %p123 = scmp.ne.s32.totalorder %s111, %s112
      %p124 = scmp.eq.s32.totalorder %s25, 3
      %p125 = por %p123, %p124
      %p127 = scmp.ne.s32.totalorder %s112, %s126
      %p128 = scmp.eq.s32.totalorder %s25, 0
      %p129 = por %p127, %p128
      %s131 = sadd.s32 %s130, 1
      %p134 = scmp.eq.s32.totalorder %s19, 3
      %p135 = scmp.ne.s32.totalorder %s130, %s132
      %p136 = scmp.eq.s32.totalorder %s19, 0
      %p137 = por %p135, %p136
      %p138 = scmp.ne.s32.totalorder %s130, %s132
      %p139 = scmp.eq.s32.totalorder %s24, 3
      %p140 = por %p138, %p139
      %p141 = scmp.ne.s32.totalorder %s132, %s133
      %p142 = scmp.eq.s32.totalorder %s24, 0
      %p143 = por %p141, %p142
      %p144 = scmp.ne.s32.totalorder %s132, %s133
      %p145 = scmp.eq.s32.totalorder %s25, 3
      %p146 = por %p144, %p145
      %p148 = scmp.ne.s32.totalorder %s133, %s147
      %p149 = scmp.eq.s32.totalorder %s25, 0
      %p150 = por %p148, %p149
      %s152 = sadd.s32 %s151, 1
      %p155 = scmp.eq.s32.totalorder %s19, 3
      %p156 = scmp.ne.s32.totalorder %s151, %s153
      %p157 = scmp.eq.s32.totalorder %s19, 0
      %p158 = por %p156, %p157
      %p159 = scmp.ne.s32.totalorder %s151, %s153
      %p160 = scmp.eq.s32.totalorder %s24, 3
      %p161 = por %p159, %p160
      %p162 = scmp.ne.s32.totalorder %s153, %s154
      %p163 = scmp.eq.s32.totalorder %s24, 0
      %p164 = por %p162, %p163
      %p165 = scmp.ne.s32.totalorder %s153, %s154
      %p166 = scmp.eq.s32.totalorder %s25, 3
      %p167 = por %p165, %p166
      %p169 = scmp.ne.s32.totalorder %s154, %s168
      %p170 = scmp.eq.s32.totalorder %s25, 0
      %p171 = por %p169, %p170
      %s173 = sadd.s32 %s172, 1
      %p176 = scmp.eq.s32.totalorder %s19, 3
      %p177 = scmp.ne.s32.totalorder %s172, %s174
      %p178 = scmp.eq.s32.totalorder %s19, 0
      %p179 = por %p177, %p178
      %p180 = scmp.ne.s32.totalorder %s172, %s174
      %p181 = scmp.eq.s32.totalorder %s24, 3
      %p182 = por %p180, %p181
      %p183 = scmp.ne.s32.totalorder %s174, %s175
      %p184 = scmp.eq.s32.totalorder %s24, 0
      %p185 = por %p183, %p184
      %p186 = scmp.ne.s32.totalorder %s174, %s175
      %p187 = scmp.eq.s32.totalorder %s25, 3
      %p188 = por %p186, %p187
      %p190 = scmp.ne.s32.totalorder %s175, %s189
      %p191 = scmp.eq.s32.totalorder %s25, 0
      %p192 = por %p190, %p191
      %s194 = sadd.s32 %s193, 1
      %p197 = scmp.eq.s32.totalorder %s19, 3
      %p198 = scmp.ne.s32.totalorder %s193, %s195
      %p199 = scmp.eq.s32.totalorder %s19, 0
      %p200 = por %p198, %p199
      %p201 = scmp.ne.s32.totalorder %s193, %s195
      %p202 = scmp.eq.s32.totalorder %s24, 3
      %p203 = por %p201, %p202
      %p204 = scmp.ne.s32.totalorder %s195, %s196
      %p205 = scmp.eq.s32.totalorder %s24, 0
      %p206 = por %p204, %p205
      %p207 = scmp.ne.s32.totalorder %s195, %s196
      %p208 = scmp.eq.s32.totalorder %s25, 3
      %p209 = por %p207, %p208
      %p211 = scmp.ne.s32.totalorder %s196, %s210
      %p212 = scmp.eq.s32.totalorder %s25, 0
      %p213 = por %p211, %p212
      %s215 = sadd.s32 %s214, 1
      %p218 = scmp.eq.s32.totalorder %s19, 3
      %p219 = scmp.ne.s32.totalorder %s214, %s216
      %p220 = scmp.eq.s32.totalorder %s19, 0
      %p221 = por %p219, %p220
      %p222 = scmp.ne.s32.totalorder %s214, %s216
      %p223 = scmp.eq.s32.totalorder %s24, 3
      %p224 = por %p222, %p223
      %p225 = scmp.ne.s32.totalorder %s216, %s217
      %p226 = scmp.eq.s32.totalorder %s24, 0
      %p227 = por %p225, %p226
      %p228 = scmp.ne.s32.totalorder %s216, %s217
      %p229 = scmp.eq.s32.totalorder %s25, 3
      %p230 = por %p228, %p229
      %p232 = scmp.ne.s32.totalorder %s217, %s231
      %p233 = scmp.eq.s32.totalorder %s25, 0
      %p234 = por %p232, %p233
      %s235 = ssub.s32 %s26, %s38
      %s236 = ssub.s32 %s27, %s34
      %s237 = sor.u32 %s235, %s236
      %p238 = scmp.eq.s32.totalorder %s237, 0
      %s240 = sadd.s32 %s239, 1
      %s241 = scalar_select %p238, %s239, %s240
      %p244 = pneg %p238
      %p245 = scmp.eq.s32.totalorder %s19, 3
      %p246 = por %p244, %p245
      %p247 = scmp.ne.s32.totalorder %s239, %s242
      %p248 = scmp.eq.s32.totalorder %s19, 0
      %p249 = por %p247, %p248
      %p250 = scmp.ne.s32.totalorder %s239, %s242
      %p251 = scmp.eq.s32.totalorder %s24, 3
      %p252 = por %p250, %p251
      %p253 = scmp.ne.s32.totalorder %s242, %s243
      %p254 = scmp.eq.s32.totalorder %s24, 0
      %p255 = por %p253, %p254
      %p256 = scmp.ne.s32.totalorder %s242, %s243
      %p257 = scmp.eq.s32.totalorder %s25, 3
      %p258 = por %p256, %p257
      %p260 = scmp.ne.s32.totalorder %s243, %s259
      %p261 = scmp.eq.s32.totalorder %s25, 0
      %p262 = por %p260, %p261
      %p263 = scmp.le.s32.totalorder 1, %s19
      %p264 = scmp.lt.s32.totalorder %s19, 5
      %p265 = pnand %p263, %p264
      %p266 = pneg %p265
      // Predicated region
      $region9: #{tpu_custom_call.1} parent=5 // pred_check
        _
      $region10: #{tpu_custom_call.1} parent=5 // pred_check_branch
        %268 = sbr.rel (%p265) target = $region12
      $region11: #{tpu_custom_call.1} parent=5 // pred_region
        %s269 = ssub.s32 %s19, 1
        // Predicated region
        $region13: #{tpu_custom_call.1} parent=11 // pred_check
          %p270 = pneg %p80
        $region14: #{tpu_custom_call.1} parent=11 // pred_check_branch
          %272 = sbr.rel (%p270) target = $region16
        $region15: #{tpu_custom_call.1} parent=11 // pred_region
          _
        $region16: #{tpu_custom_call.1} parent=11 // pred_fallthru
          _
        // Predicated region
        $region17: #{tpu_custom_call.1} parent=11 // pred_check
          %p273 = pneg %p101
        $region18: #{tpu_custom_call.1} parent=11 // pred_check_branch
          %275 = sbr.rel (%p273) target = $region20
        $region19: #{tpu_custom_call.1} parent=11 // pred_region
          _
        $region20: #{tpu_custom_call.1} parent=11 // pred_fallthru
          _
        // Predicated region
        $region21: #{tpu_custom_call.1} parent=11 // pred_check
          %p276 = pneg %p122
        $region22: #{tpu_custom_call.1} parent=11 // pred_check_branch
          %278 = sbr.rel (%p276) target = $region24
        $region23: #{tpu_custom_call.1} parent=11 // pred_region
          _
        $region24: #{tpu_custom_call.1} parent=11 // pred_fallthru
          _
        // Predicated region
        $region25: #{tpu_custom_call.1} parent=11 // pred_check
          %p279 = pneg %p143
        $region26: #{tpu_custom_call.1} parent=11 // pred_check_branch
          %281 = sbr.rel (%p279) target = $region28
        $region27: #{tpu_custom_call.1} parent=11 // pred_region
          %283 = vsyncadd [#allocation3], 0
          %s284 = sshll.u32 %s4, 4
          %s285 = int_to_ptr.hbm [resolvable:$true] %s284
          %s286 = sshll.u32 [#allocation2], 4
          %s287 = int_to_ptr.vmem [resolvable:$true] %s286
          %292 = dma.hbm_to_vmem [thread:$0]  %s285, 9216, %s287, [#allocation3], 64, 64, 4
        $region28: #{tpu_custom_call.1} parent=11 // pred_fallthru
          _
        // Predicated region
        $region29: #{tpu_custom_call.1} parent=11 // pred_check
          %p293 = pneg %p164
        $region30: #{tpu_custom_call.1} parent=11 // pred_check_branch
          %295 = sbr.rel (%p293) target = $region32
        $region31: #{tpu_custom_call.1} parent=11 // pred_region
          _
        $region32: #{tpu_custom_call.1} parent=11 // pred_fallthru
          _
        // Predicated region
        $region33: #{tpu_custom_call.1} parent=11 // pred_check
          %p296 = pneg %p185
        $region34: #{tpu_custom_call.1} parent=11 // pred_check_branch
          %298 = sbr.rel (%p296) target = $region36
        $region35: #{tpu_custom_call.1} parent=11 // pred_region
          _
        $region36: #{tpu_custom_call.1} parent=11 // pred_fallthru
          _
        // Predicated region
        $region37: #{tpu_custom_call.1} parent=11 // pred_check
          %p299 = pneg %p206
        $region38: #{tpu_custom_call.1} parent=11 // pred_check_branch
          %301 = sbr.rel (%p299) target = $region40
        $region39: #{tpu_custom_call.1} parent=11 // pred_region
          _
        $region40: #{tpu_custom_call.1} parent=11 // pred_fallthru
          _
        // Predicated region
        $region41: #{tpu_custom_call.1} parent=11 // pred_check
          %p302 = pneg %p227
        $region42: #{tpu_custom_call.1} parent=11 // pred_check_branch
          %304 = sbr.rel (%p302) target = $region44
        $region43: #{tpu_custom_call.1} parent=11 // pred_region
          _
        $region44: #{tpu_custom_call.1} parent=11 // pred_fallthru
          _
      $region12: #{tpu_custom_call.1} parent=5 // pred_fallthru
        _
      %p305 = scmp.lt.s32.totalorder %s19, 4
      // Predicated region
      $region45: #{tpu_custom_call.1} parent=5 // pred_check
        %p306 = pneg %p305
      $region46: #{tpu_custom_call.1} parent=5 // pred_check_branch
        %308 = sbr.rel (%p306) target = $region48
      $region47: #{tpu_custom_call.1} parent=5 // pred_region
        // Predicated region
        $region49: #{tpu_custom_call.1} parent=47 // pred_check
          %p309 = pneg %p53
        $region50: #{tpu_custom_call.1} parent=47 // pred_check_branch
          %311 = sbr.rel (%p309) target = $region52
        $region51: #{tpu_custom_call.1} parent=47 // pred_region
          %p312 = scmp.lt.s32.totalorder %s26, 1
          %s313 = scalar_select %p312, %s26, 1
          %p314 = scmp.lt.s32.totalorder %s27, 1
          %s315 = scalar_select %p314, %s27, 1
          %s316 = smul.addr %s315, 48
          %s317 = smul.addr %s313, 96
          %s318 = sadd.s32 %s316, %s317
          %s319 = smul.addr %s318, 4
          %s320 = scalar_lea.vmem %s0, %s319
        $region52: #{tpu_custom_call.1} parent=47 // pred_fallthru
          _
      $region48: #{tpu_custom_call.1} parent=5 // pred_fallthru
        _
      %p321 = scmp.le.s32.totalorder 1, %s19
      %p322 = scmp.lt.s32.totalorder %s19, 5
      %p323 = pnand %p321, %p322
      %p324 = pneg %p323
      // Predicated region
      $region53: #{tpu_custom_call.1} parent=5 // pred_check
        _
      $region54: #{tpu_custom_call.1} parent=5 // pred_check_branch
        %326 = sbr.rel (%p323) target = $region56
      $region55: #{tpu_custom_call.1} parent=5 // pred_region
        %s327 = ssub.s32 %s19, 1
        // Predicated region
        $region57: #{tpu_custom_call.1} parent=55 // pred_check
          %p328 = pneg %p143
        $region58: #{tpu_custom_call.1} parent=55 // pred_check_branch
          %330 = sbr.rel (%p328) target = $region60
        $region59: #{tpu_custom_call.1} parent=55 // pred_region
          %332 = dma.done [#allocation3], 9216
        $region60: #{tpu_custom_call.1} parent=55 // pred_fallthru
          _
        %p333 = scmp.lt.s32.totalorder %s28, 1
        %s334 = scalar_select %p333, %s28, 1
        %p335 = scmp.lt.s32.totalorder %s29, 1
        %s336 = scalar_select %p335, %s29, 1
        %s337 = smul.addr %s336, 48
        %s338 = smul.addr %s334, 96
        %s339 = sadd.s32 %s337, %s338
        %s340 = smul.addr %s339, 4
        %s341 = scalar_lea.vmem %s0, %s340
        %p342 = pneg %p59
        %p343 = pneg %p56
        %p344 = pneg %p80
        %p345 = pneg %p77
        %p346 = pneg %p101
        %p347 = pneg %p98
        %p348 = pneg %p122
        %p349 = pneg %p119
        %p350 = pneg %p143
        %p351 = pneg %p140
        %p352 = pneg %p164
        %p353 = pneg %p161
        %p354 = pneg %p185
        %p355 = pneg %p182
        %p356 = pneg %p206
        %p357 = pneg %p203
        %p358 = pneg %p227
        %p359 = pneg %p224
        %p360 = pneg %p255
        %p361 = pneg %p252
        %s362 = sand.u32 %s242, 1
        %s363 = scalar_lea.sflag [#allocation4], %s362
        %s364 = sand.u32 %s242, 1
        %s365 = smul.addr %s364, 128
        %s366 = scalar_lea.vmem [#allocation5], %s365
        %p367 = scmp.lt.s32.totalorder %s28, 1
        %s368 = scalar_select %p367, %s28, 1
        %p369 = scmp.lt.s32.totalorder %s29, 1
        %s370 = scalar_select %p369, %s29, 1
        %s371 = smul.addr %s370, 48
        %s372 = smul.addr %s368, 96
        %s373 = sadd.s32 %s371, %s372
        %s374 = smul.addr %s373, 4
        %s375 = scalar_lea.vmem %s0, %s374
        %s376 = smul.u32 8, %s29
        %s377 = smul.u32 %s29, 8
        %v378 = vld [vmem:[%s375] sm:$0xf]
        %v379 = vld [vmem:[%s375 + $0x4] sm:$0xf]
        %v380 = vld [vmem:[%s375 + $0x8] sm:$0xf]
        %v381 = vld [vmem:[%s375 + $0xc] sm:$0x1]
        %v382 = vld [vmem:[%s375 + $0x10] sm:$0xf]
        %v383 = vld [vmem:[%s375 + $0x14] sm:$0xf]
        %v384 = vld [vmem:[%s375 + $0x18] sm:$0xf]
        %v385 = vld [vmem:[%s375 + $0x1c] sm:$0x1]
        %v386 = vld [vmem:[%s375 + $0x20] sm:$0xf]
        %v387 = vld [vmem:[%s375 + $0x24] sm:$0xf]
        %v388 = vld [vmem:[%s375 + $0x28] sm:$0xf]
        %v389 = vld [vmem:[%s375 + $0x2c] sm:$0x1]
        %v390 = vld [vmem:[%s375 + $0x30] sm:$0xf]
        %v391 = vld [vmem:[%s375 + $0x34] sm:$0xf]
        %v392 = vld [vmem:[%s375 + $0x38] sm:$0xf]
        %v393 = vld [vmem:[%s375 + $0x3c] sm:$0x1]
        %v394 = vld [vmem:[%s375 + $0x40] sm:$0xf]
        %v395 = vld [vmem:[%s375 + $0x44] sm:$0xf]
        %v396 = vld [vmem:[%s375 + $0x48] sm:$0xf]
        %v397 = vld [vmem:[%s375 + $0x4c] sm:$0x1]
        %v398 = vld [vmem:[%s375 + $0x50] sm:$0xf]
        %v399 = vld [vmem:[%s375 + $0x54] sm:$0xf]
        %v400 = vld [vmem:[%s375 + $0x58] sm:$0xf]
        %v401 = vld [vmem:[%s375 + $0x5c] sm:$0x1]
        %v402 = vld [vmem:[%s375 + $0x60] sm:$0xf]
        %v403 = vld [vmem:[%s375 + $0x64] sm:$0xf]
        %v404 = vld [vmem:[%s375 + $0x68] sm:$0xf]
        %v405 = vld [vmem:[%s375 + $0x6c] sm:$0x1]
        %v406 = vld [vmem:[%s375 + $0x70] sm:$0xf]
        %v407 = vld [vmem:[%s375 + $0x74] sm:$0xf]
        %v408 = vld [vmem:[%s375 + $0x78] sm:$0xf]
        %v409 = vld [vmem:[%s375 + $0x7c] sm:$0x1]
        %v410 = vld [vmem:[%s375 + $0x80] sm:$0xf]
        %v411 = vld [vmem:[%s375 + $0x84] sm:$0xf]
        %v412 = vld [vmem:[%s375 + $0x88] sm:$0xf]
        %v413 = vld [vmem:[%s375 + $0x8c] sm:$0x1]
        %v414 = vld [vmem:[%s375 + $0x90] sm:$0xf]
        %v415 = vld [vmem:[%s375 + $0x94] sm:$0xf]
        %v416 = vld [vmem:[%s375 + $0x98] sm:$0xf]
        %v417 = vld [vmem:[%s375 + $0x9c] sm:$0x1]
        %v418 = vld [vmem:[%s375 + $0xa0] sm:$0xf]
        %v419 = vld [vmem:[%s375 + $0xa4] sm:$0xf]
        %v420 = vld [vmem:[%s375 + $0xa8] sm:$0xf]
        %v421 = vld [vmem:[%s375 + $0xac] sm:$0x1]
        %v422 = vld [vmem:[%s375 + $0xb0] sm:$0xf]
        %v423 = vld [vmem:[%s375 + $0xb4] sm:$0xf]
        %v424 = vld [vmem:[%s375 + $0xb8] sm:$0xf]
        %v425 = vld [vmem:[%s375 + $0xbc] sm:$0x1]
        %v456 = vunpack.c.l.b16 %v378
        %v457 = vunpack.c.l.b16 %v379
        %v458 = vunpack.c.l.b16 %v380
        %v459 = vunpack.c.l.b16 %v382
        %v460 = vunpack.c.l.b16 %v383
        %v461 = vunpack.c.l.b16 %v384
        %v462 = vunpack.c.l.b16 %v386
        %v463 = vunpack.c.l.b16 %v387
        %v464 = vunpack.c.l.b16 %v388
        %v465 = vunpack.c.l.b16 %v390
        %v466 = vunpack.c.l.b16 %v391
        %v467 = vunpack.c.l.b16 %v392
        %v468 = vunpack.c.l.b16 %v394
        %v469 = vunpack.c.l.b16 %v395
        %v470 = vunpack.c.l.b16 %v396
        %v471 = vunpack.c.l.b16 %v398
        %v472 = vunpack.c.l.b16 %v399
        %v473 = vunpack.c.l.b16 %v400
        %v474 = vunpack.c.l.b16 %v402
        %v475 = vunpack.c.l.b16 %v403
        %v476 = vunpack.c.l.b16 %v404
        %v477 = vunpack.c.l.b16 %v406
        %v478 = vunpack.c.l.b16 %v407
        %v479 = vunpack.c.l.b16 %v408
        %v480 = vunpack.c.l.b16 %v410
        %v481 = vunpack.c.l.b16 %v411
        %v482 = vunpack.c.l.b16 %v412
        %v483 = vunpack.c.l.b16 %v414
        %v484 = vunpack.c.l.b16 %v415
        %v485 = vunpack.c.l.b16 %v416
        %v496 = vunpack.c.l.b16 %v381
        %v497 = vunpack.c.l.b16 %v385
        %v498 = vunpack.c.l.b16 %v389
        %v499 = vunpack.c.l.b16 %v393
        %v500 = vunpack.c.l.b16 %v397
        %v501 = vunpack.c.l.b16 %v401
        %v502 = vunpack.c.l.b16 %v405
        %v503 = vunpack.c.l.b16 %v409
        %v504 = vunpack.c.l.b16 %v413
        %v505 = vunpack.c.l.b16 %v417
        %v506 = vpack.c.b16 %v457, %v456
        %v507 = vpack.c.b16 %v496, %v458
        %v508 = vpack.c.b16 %v460, %v459
        %v509 = vpack.c.b16 %v497, %v461
        %v510 = vpack.c.b16 %v463, %v462
        %v511 = vpack.c.b16 %v498, %v464
        %v512 = vpack.c.b16 %v466, %v465
        %v513 = vpack.c.b16 %v499, %v467
        %v514 = vpack.c.b16 %v469, %v468
        %v515 = vpack.c.b16 %v500, %v470
        %v516 = vpack.c.b16 %v472, %v471
        %v517 = vpack.c.b16 %v501, %v473
        %v518 = vpack.c.b16 %v475, %v474
        %v519 = vpack.c.b16 %v502, %v476
        %v520 = vpack.c.b16 %v478, %v477
        %v521 = vpack.c.b16 %v503, %v479
        %v522 = vpack.c.b16 %v481, %v480
        %v523 = vpack.c.b16 %v504, %v482
        %v524 = vpack.c.b16 %v484, %v483
        %v525 = vpack.c.b16 %v505, %v485
        %vm526 = vsmask.f32 7424
        %v528 = vshrl.u32 %v506, 16
        %v530 = vshll.u32 %v506, 16
        %v532 = vrot.slane %v530, 1
        %v533 = vor.u32 %v528, %v532
        %v535 = vshll.u32 %v507, 16
        %v537 = vrot.slane %v535, 1
        %v538 = vsel %vm526, %v533, %v537
        %v539 = vshrl.u32 %v507, 16
        %v541 = vor.u32 %v539, %v537
        %v543 = vshrl.u32 %v508, 16
        %v545 = vshll.u32 %v508, 16
        %v547 = vrot.slane %v545, 1
        %v548 = vor.u32 %v543, %v547
        %v550 = vshll.u32 %v509, 16
        %v552 = vrot.slane %v550, 1
        %v553 = vsel %vm526, %v548, %v552
        %v554 = vshrl.u32 %v509, 16
        %v556 = vor.u32 %v554, %v552
        %v558 = vshrl.u32 %v510, 16
        %v560 = vshll.u32 %v510, 16
        %v562 = vrot.slane %v560, 1
        %v563 = vor.u32 %v558, %v562
        %v565 = vshll.u32 %v511, 16
        %v567 = vrot.slane %v565, 1
        %v568 = vsel %vm526, %v563, %v567
        %v569 = vshrl.u32 %v511, 16
        %v571 = vor.u32 %v569, %v567
        %v573 = vshrl.u32 %v512, 16
        %v575 = vshll.u32 %v512, 16
        %v577 = vrot.slane %v575, 1
        %v578 = vor.u32 %v573, %v577
        %v580 = vshll.u32 %v513, 16
        %v582 = vrot.slane %v580, 1
        %v583 = vsel %vm526, %v578, %v582
        %v584 = vshrl.u32 %v513, 16
        %v586 = vor.u32 %v584, %v582
        %v588 = vshrl.u32 %v514, 16
        %v590 = vshll.u32 %v514, 16
        %v592 = vrot.slane %v590, 1
        %v593 = vor.u32 %v588, %v592
        %v595 = vshll.u32 %v515, 16
        %v597 = vrot.slane %v595, 1
        %v598 = vsel %vm526, %v593, %v597
        %v599 = vshrl.u32 %v515, 16
        %v601 = vor.u32 %v599, %v597
        %v603 = vshrl.u32 %v516, 16
        %v605 = vshll.u32 %v516, 16
        %v607 = vrot.slane %v605, 1
        %v608 = vor.u32 %v603, %v607
        %v610 = vshll.u32 %v517, 16
        %v612 = vrot.slane %v610, 1
        %v613 = vsel %vm526, %v608, %v612
        %v614 = vshrl.u32 %v517, 16
        %v616 = vor.u32 %v614, %v612
        %v618 = vshrl.u32 %v518, 16
        %v620 = vshll.u32 %v518, 16
        %v622 = vrot.slane %v620, 1
        %v623 = vor.u32 %v618, %v622
        %v625 = vshll.u32 %v519, 16
        %v627 = vrot.slane %v625, 1
        %v628 = vsel %vm526, %v623, %v627
        %v629 = vshrl.u32 %v519, 16
        %v631 = vor.u32 %v629, %v627
        %v633 = vshrl.u32 %v520, 16
        %v635 = vshll.u32 %v520, 16
        %v637 = vrot.slane %v635, 1
        %v638 = vor.u32 %v633, %v637
        %v640 = vshll.u32 %v521, 16
        %v642 = vrot.slane %v640, 1
        %v643 = vsel %vm526, %v638, %v642
        %v644 = vshrl.u32 %v521, 16
        %v646 = vor.u32 %v644, %v642
        %v648 = vshrl.u32 %v522, 16
        %v650 = vshll.u32 %v522, 16
        %v652 = vrot.slane %v650, 1
        %v653 = vor.u32 %v648, %v652
        %v655 = vshll.u32 %v523, 16
        %v657 = vrot.slane %v655, 1
        %v658 = vsel %vm526, %v653, %v657
        %v659 = vshrl.u32 %v523, 16
        %v661 = vor.u32 %v659, %v657
        %v663 = vshrl.u32 %v524, 16
        %v665 = vshll.u32 %v524, 16
        %v667 = vrot.slane %v665, 1
        %v668 = vor.u32 %v663, %v667
        %v670 = vshll.u32 %v525, 16
        %v672 = vrot.slane %v670, 1
        %v673 = vsel %vm526, %v668, %v672
        %v674 = vshrl.u32 %v525, 16
        %v676 = vor.u32 %v674, %v672
        %vm677 = vcmask 1046528
        %v678 = vrot.slane %v506, 1
        %v679 = vrot.slane %v507, 1
        %v680 = vsel %vm677, %v678, %v679
        %v681 = vrot.slane %v508, 1
        %v682 = vrot.slane %v509, 1
        %v683 = vsel %vm677, %v681, %v682
        %v684 = vrot.slane %v510, 1
        %v685 = vrot.slane %v511, 1
        %v686 = vsel %vm677, %v684, %v685
        %v687 = vrot.slane %v512, 1
        %v688 = vrot.slane %v513, 1
        %v689 = vsel %vm677, %v687, %v688
        %v690 = vrot.slane %v514, 1
        %v691 = vrot.slane %v515, 1
        %v692 = vsel %vm677, %v690, %v691
        %v693 = vrot.slane %v516, 1
        %v694 = vrot.slane %v517, 1
        %v695 = vsel %vm677, %v693, %v694
        %v696 = vrot.slane %v518, 1
        %v697 = vrot.slane %v519, 1
        %v698 = vsel %vm677, %v696, %v697
        %v699 = vrot.slane %v520, 1
        %v700 = vrot.slane %v521, 1
        %v701 = vsel %vm677, %v699, %v700
        %v702 = vrot.slane %v522, 1
        %v703 = vrot.slane %v523, 1
        %v704 = vsel %vm677, %v702, %v703
        %v705 = vrot.slane %v524, 1
        %v706 = vrot.slane %v525, 1
        %v707 = vsel %vm677, %v705, %v706
        %v711 = vunpack.c.l.b16 %v418
        %v712 = vunpack.c.l.b16 %v419
        %v713 = vunpack.c.l.b16 %v420
        %v715 = vunpack.c.l.b16 %v421
        %v716 = vpack.c.b16 %v712, %v711
        %v717 = vpack.c.b16 %v715, %v713
        %v719 = vshrl.u32 %v716, 16
        %v721 = vshll.u32 %v716, 16
        %v723 = vrot.slane %v721, 1
        %v724 = vor.u32 %v719, %v723
        %v726 = vshll.u32 %v717, 16
        %v728 = vrot.slane %v726, 1
        %v729 = vsel %vm526, %v724, %v728
        %v730 = vshrl.u32 %v717, 16
        %v732 = vor.u32 %v730, %v728
        %v733 = vrot.slane %v716, 1
        %v734 = vrot.slane %v717, 1
        %v735 = vsel %vm677, %v733, %v734
        %v739 = vunpack.c.l.b16 %v422
        %v740 = vunpack.c.l.b16 %v423
        %v741 = vunpack.c.l.b16 %v424
        %v743 = vunpack.c.l.b16 %v425
        %v744 = vpack.c.b16 %v740, %v739
        %v745 = vpack.c.b16 %v743, %v741
        %v747 = vshrl.u32 %v744, 16
        %v749 = vshll.u32 %v744, 16
        %v751 = vrot.slane %v749, 1
        %v752 = vor.u32 %v747, %v751
        %v754 = vshll.u32 %v745, 16
        %v756 = vrot.slane %v754, 1
        %v757 = vsel %vm526, %v752, %v756
        %v758 = vshrl.u32 %v745, 16
        %v760 = vor.u32 %v758, %v756
        %v761 = vrot.slane %v744, 1
        %v762 = vrot.slane %v745, 1
        %v763 = vsel %vm677, %v761, %v762
        %v764 = vunpack.c.l.b16 %v538
        %v765 = vunpack.c.l.b16 %v680
        %v766 = vunpack.c.l.b16 %v553
        %v767 = vunpack.c.l.b16 %v683
        %v768 = vunpack.c.l.b16 %v568
        %v769 = vunpack.c.l.b16 %v686
        %v770 = vunpack.c.h.b16 %v538
        %v771 = vunpack.c.h.b16 %v680
        %v772 = vunpack.c.h.b16 %v553
        %v773 = vunpack.c.h.b16 %v683
        %v774 = vunpack.c.h.b16 %v568
        %v775 = vunpack.c.h.b16 %v686
        %v776 = vunpack.c.l.b16 %v541
        %v777 = vunpack.c.l.b16 %v679
        %v778 = vunpack.c.l.b16 %v556
        %v779 = vunpack.c.l.b16 %v682
        %v780 = vunpack.c.l.b16 %v571
        %v781 = vunpack.c.l.b16 %v685
        %v782 = vunpack.c.l.b16 %v583
        %v783 = vunpack.c.l.b16 %v689
        %v784 = vunpack.c.h.b16 %v583
        %v785 = vunpack.c.h.b16 %v689
        %v786 = vunpack.c.l.b16 %v586
        %v787 = vunpack.c.l.b16 %v688
        %v788 = vunpack.c.l.b16 %v598
        %v789 = vunpack.c.l.b16 %v692
        %v790 = vunpack.c.h.b16 %v598
        %v791 = vunpack.c.h.b16 %v692
        %v792 = vunpack.c.l.b16 %v601
        %v793 = vunpack.c.l.b16 %v691
        %v794 = vunpack.c.l.b16 %v613
        %v795 = vunpack.c.l.b16 %v695
        %v796 = vunpack.c.h.b16 %v613
        %v797 = vunpack.c.h.b16 %v695
        %v798 = vunpack.c.l.b16 %v616
        %v799 = vunpack.c.l.b16 %v694
        %v800 = vunpack.c.l.b16 %v628
        %v801 = vunpack.c.l.b16 %v698
        %v802 = vunpack.c.h.b16 %v628
        %v803 = vunpack.c.h.b16 %v698
        %v804 = vunpack.c.l.b16 %v631
        %v805 = vunpack.c.l.b16 %v697
        %v806 = vunpack.c.l.b16 %v643
        %v807 = vunpack.c.l.b16 %v701
        %v808 = vunpack.c.h.b16 %v643
        %v809 = vunpack.c.h.b16 %v701
        %v810 = vunpack.c.l.b16 %v646
        %v811 = vunpack.c.l.b16 %v700
        %v812 = vunpack.c.l.b16 %v658
        %v813 = vunpack.c.l.b16 %v704
        %v814 = vunpack.c.h.b16 %v658
        %v815 = vunpack.c.h.b16 %v704
        %v816 = vunpack.c.l.b16 %v661
        %v817 = vunpack.c.l.b16 %v703
        %v818 = vunpack.c.l.b16 %v673
        %v819 = vunpack.c.l.b16 %v707
        %v820 = vunpack.c.h.b16 %v673
        %v821 = vunpack.c.h.b16 %v707
        %v822 = vunpack.c.l.b16 %v676
        %v823 = vunpack.c.l.b16 %v706
        %v824 = vunpack.c.l.b16 %v729
        %v825 = vunpack.c.l.b16 %v735
        %v826 = vunpack.c.h.b16 %v729
        %v827 = vunpack.c.h.b16 %v735
        %v828 = vunpack.c.l.b16 %v732
        %v829 = vunpack.c.l.b16 %v734
        %v830 = vunpack.c.l.b16 %v757
        %v831 = vunpack.c.l.b16 %v763
        %v832 = vunpack.c.h.b16 %v757
        %v833 = vunpack.c.h.b16 %v763
        %v834 = vunpack.c.l.b16 %v760
        %v835 = vunpack.c.l.b16 %v762
        %v836 = vld [vmem:[%s1] sm:$0xff]
        %v837 = vld [vmem:[%s1 + $0x8] sm:$0xff]
        %v838 = vld [vmem:[%s1 + $0x10] sm:$0xff]
        %v839 = vld [vmem:[%s1 + $0x18] sm:$0xff]
        %v840 = vld [vmem:[%s1 + $0x20] sm:$0xff]
        %v841 = vld [vmem:[%s1 + $0x28] sm:$0xff]
        %v842 = vld [vmem:[%s1 + $0x30] sm:$0xff]
        %v843 = vld [vmem:[%s1 + $0x38] sm:$0xff]
        %v844 = vld [vmem:[%s1 + $0x40] sm:$0xff]
        %v845 = vld [vmem:[%s1 + $0x48] sm:$0xff]
        %v846 = vld [vmem:[%s1 + $0x50] sm:$0xff]
        %v847 = vld [vmem:[%s1 + $0x58] sm:$0xff]
        %v848 = vld [vmem:[%s1 + $0x60] sm:$0xff]
        %v849 = vld [vmem:[%s1 + $0x68] sm:$0xff]
        %v850 = vld [vmem:[%s1 + $0x70] sm:$0xff]
        %v851 = vld [vmem:[%s1 + $0x78] sm:$0xff]
        %v852 = vld [vmem:[%s1 + $0x80] sm:$0xff]
        %v853 = vld [vmem:[%s1 + $0x88] sm:$0xff]
        %v854 = vld [vmem:[%s1 + $0x90] sm:$0xff]
        %v855 = vld [vmem:[%s1 + $0x98] sm:$0xff]
        %v856 = vld [vmem:[%s1 + $0xa0] sm:$0xff]
        %v857 = vld [vmem:[%s1 + $0xa8] sm:$0xff]
        %v858 = vld [vmem:[%s1 + $0xb0] sm:$0xff]
        %v859 = vld [vmem:[%s1 + $0xb8] sm:$0xff]
        %v860 = vld [vmem:[%s1 + $0xc0] sm:$0xff]
        %v861 = vld [vmem:[%s1 + $0xc8] sm:$0xff]
        %v862 = vld [vmem:[%s1 + $0xd0] sm:$0xff]
        %v863 = vld [vmem:[%s1 + $0xd8] sm:$0xff]
        %v864 = vld [vmem:[%s1 + $0xe0] sm:$0xff]
        %v865 = vld [vmem:[%s1 + $0xe8] sm:$0xff]
        %v866 = vld [vmem:[%s1 + $0xf0] sm:$0xff]
        %v867 = vld [vmem:[%s1 + $0xf8] sm:$0xff]
        %v868 = vld [vmem:[%s1 + $0x100] sm:$0xff]
        %v869 = vld [vmem:[%s1 + $0x108] sm:$0xff]
        %v870 = vld [vmem:[%s1 + $0x110] sm:$0xff]
        %v871 = vld [vmem:[%s1 + $0x118] sm:$0xff]
        %v872 = vld [vmem:[%s1 + $0x120] sm:$0xff]
        %v873 = vld [vmem:[%s1 + $0x128] sm:$0xff]
        %v874 = vld [vmem:[%s1 + $0x130] sm:$0xff]
        %v875 = vld [vmem:[%s1 + $0x138] sm:$0xff]
        %v876 = vld [vmem:[%s1 + $0x140] sm:$0xff]
        %v877 = vld [vmem:[%s1 + $0x148] sm:$0xff]
        %v878 = vld [vmem:[%s1 + $0x150] sm:$0xff]
        %v879 = vld [vmem:[%s1 + $0x158] sm:$0xff]
        %v880 = vld [vmem:[%s1 + $0x160] sm:$0xff]
        %v881 = vld [vmem:[%s1 + $0x168] sm:$0xff]
        %v882 = vld [vmem:[%s1 + $0x170] sm:$0xff]
        %v883 = vld [vmem:[%s1 + $0x178] sm:$0xff]
        %v884 = vld [vmem:[%s1 + $0x180] sm:$0xff]
        %v885 = vld [vmem:[%s1 + $0x188] sm:$0xff]
        %v886 = vld [vmem:[%s1 + $0x190] sm:$0xff]
        %v887 = vld [vmem:[%s1 + $0x198] sm:$0xff]
        %v888 = vld [vmem:[%s1 + $0x1a0] sm:$0xff]
        %v889 = vld [vmem:[%s1 + $0x1a8] sm:$0xff]
        %v890 = vld [vmem:[%s1 + $0x1b0] sm:$0xff]
        %v891 = vld [vmem:[%s1 + $0x1b8] sm:$0xff]
        %v892 = vld [vmem:[%s1 + $0x1c0] sm:$0xff]
        %v893 = vld [vmem:[%s1 + $0x1c8] sm:$0xff]
        %v894 = vld [vmem:[%s1 + $0x1d0] sm:$0xff]
        %v895 = vld [vmem:[%s1 + $0x1d8] sm:$0xff]
        %v896 = vld [vmem:[%s1 + $0x1e0] sm:$0xff]
        %v897 = vld [vmem:[%s1 + $0x1e8] sm:$0xff]
        %v898 = vld [vmem:[%s1 + $0x1f0] sm:$0xff]
        %v899 = vld [vmem:[%s1 + $0x1f8] sm:$0xff]
        %v900 = vld [vmem:[%s1 + $0x200] sm:$0xff]
        %v901 = vld [vmem:[%s1 + $0x208] sm:$0xff]
        %v902 = vld [vmem:[%s1 + $0x210] sm:$0xff]
        %v903 = vld [vmem:[%s1 + $0x218] sm:$0xff]
        %v904 = vld [vmem:[%s1 + $0x220] sm:$0xff]
        %v905 = vld [vmem:[%s1 + $0x228] sm:$0xff]
        %v906 = vld [vmem:[%s1 + $0x230] sm:$0xff]
        %v907 = vld [vmem:[%s1 + $0x238] sm:$0xff]
        %v908 = vld [vmem:[%s1 + $0x240] sm:$0xff]
        %v909 = vld [vmem:[%s1 + $0x248] sm:$0xff]
        %v910 = vld [vmem:[%s1 + $0x250] sm:$0xff]
        %v911 = vld [vmem:[%s1 + $0x258] sm:$0xff]
        %v912 = vld [vmem:[%s1 + $0x260] sm:$0xff]
        %v913 = vld [vmem:[%s1 + $0x268] sm:$0xff]
        %v914 = vld [vmem:[%s1 + $0x270] sm:$0xff]
        %v915 = vld [vmem:[%s1 + $0x278] sm:$0xff]
        %v916 = vld [vmem:[%s1 + $0x280] sm:$0xff]
        %v917 = vld [vmem:[%s1 + $0x288] sm:$0xff]
        %v918 = vld [vmem:[%s1 + $0x290] sm:$0xff]
        %v919 = vld [vmem:[%s1 + $0x298] sm:$0xff]
        %v920 = vld [vmem:[%s1 + $0x2a0] sm:$0xff]
        %v921 = vld [vmem:[%s1 + $0x2a8] sm:$0xff]
        %v922 = vld [vmem:[%s1 + $0x2b0] sm:$0xff]
        %v923 = vld [vmem:[%s1 + $0x2b8] sm:$0xff]
        %v924 = vld [vmem:[%s1 + $0x2c0] sm:$0xff]
        %v925 = vld [vmem:[%s1 + $0x2c8] sm:$0xff]
        %v926 = vld [vmem:[%s1 + $0x2d0] sm:$0xff]
        %v927 = vld [vmem:[%s1 + $0x2d8] sm:$0xff]
        %v928 = vld [vmem:[%s1 + $0x2e0] sm:$0xff]
        %v929 = vld [vmem:[%s1 + $0x2e8] sm:$0xff]
        %v930 = vld [vmem:[%s1 + $0x2f0] sm:$0xff]
        %v931 = vld [vmem:[%s1 + $0x2f8] sm:$0xff]
        %v932 = vld [vmem:[%s1 + $0x300] sm:$0xff]
        %v933 = vld [vmem:[%s1 + $0x308] sm:$0xff]
        %v934 = vld [vmem:[%s1 + $0x310] sm:$0xff]
        %v935 = vld [vmem:[%s1 + $0x318] sm:$0xff]
        %v936 = vld [vmem:[%s1 + $0x320] sm:$0xff]
        %v937 = vld [vmem:[%s1 + $0x328] sm:$0xff]
        %v938 = vld [vmem:[%s1 + $0x330] sm:$0xff]
        %v939 = vld [vmem:[%s1 + $0x338] sm:$0xff]
        %v940 = vld [vmem:[%s1 + $0x340] sm:$0xff]
        %v941 = vld [vmem:[%s1 + $0x348] sm:$0xff]
        %v942 = vld [vmem:[%s1 + $0x350] sm:$0xff]
        %v943 = vld [vmem:[%s1 + $0x358] sm:$0xff]
        %v944 = vld [vmem:[%s1 + $0x360] sm:$0xff]
        %v945 = vld [vmem:[%s1 + $0x368] sm:$0xff]
        %v946 = vld [vmem:[%s1 + $0x370] sm:$0xff]
        %v947 = vld [vmem:[%s1 + $0x378] sm:$0xff]
        %v948 = vld [vmem:[%s1 + $0x380] sm:$0xff]
        %v949 = vld [vmem:[%s1 + $0x388] sm:$0xff]
        %v950 = vld [vmem:[%s1 + $0x390] sm:$0xff]
        %v951 = vld [vmem:[%s1 + $0x398] sm:$0xff]
        %v952 = vld [vmem:[%s1 + $0x3a0] sm:$0xff]
        %v953 = vld [vmem:[%s1 + $0x3a8] sm:$0xff]
        %v954 = vld [vmem:[%s1 + $0x3b0] sm:$0xff]
        %v955 = vld [vmem:[%s1 + $0x3b8] sm:$0xff]
        %v956 = vld [vmem:[%s1 + $0x3c0] sm:$0xff]
        %v957 = vld [vmem:[%s1 + $0x3c8] sm:$0xff]
        %v958 = vld [vmem:[%s1 + $0x3d0] sm:$0xff]
        %v959 = vld [vmem:[%s1 + $0x3d8] sm:$0xff]
        %v960 = vld [vmem:[%s1 + $0x3e0] sm:$0xff]
        %v961 = vld [vmem:[%s1 + $0x3e8] sm:$0xff]
        %v962 = vld [vmem:[%s1 + $0x3f0] sm:$0xff]
        %v963 = vld [vmem:[%s1 + $0x3f8] sm:$0xff]
        %v964 = vld [vmem:[%s1 + $0x400] sm:$0xff]
        %v965 = vld [vmem:[%s1 + $0x408] sm:$0xff]
        %v966 = vld [vmem:[%s1 + $0x410] sm:$0xff]
        %v967 = vld [vmem:[%s1 + $0x418] sm:$0xff]
        %v968 = vld [vmem:[%s1 + $0x420] sm:$0xff]
        %v969 = vld [vmem:[%s1 + $0x428] sm:$0xff]
        %v970 = vld [vmem:[%s1 + $0x430] sm:$0xff]
        %v971 = vld [vmem:[%s1 + $0x438] sm:$0xff]
        %v972 = vld [vmem:[%s1 + $0x440] sm:$0xff]
        %v973 = vld [vmem:[%s1 + $0x448] sm:$0xff]
        %v974 = vld [vmem:[%s1 + $0x450] sm:$0xff]
        %v975 = vld [vmem:[%s1 + $0x458] sm:$0xff]
        %v976 = vld [vmem:[%s1 + $0x460] sm:$0xff]
        %v977 = vld [vmem:[%s1 + $0x468] sm:$0xff]
        %v978 = vld [vmem:[%s1 + $0x470] sm:$0xff]
        %v979 = vld [vmem:[%s1 + $0x478] sm:$0xff]
        %v980 = vpack.c.b16 %v770, %v764
        %v981 = vpack.c.b16 %v771, %v765
        %v982 = vpack.c.b16 %v772, %v766
        %v983 = vpack.c.b16 %v773, %v767
        %v984 = vpack.c.b16 %v774, %v768
        %v985 = vpack.c.b16 %v775, %v769
        %v986 = vpack.c.b16 %v459, %v458
        %v987 = vpack.c.b16 %v766, %v776
        %v988 = vpack.c.b16 %v767, %v777
        %v989 = vpack.c.b16 %v462, %v461
        %v990 = vpack.c.b16 %v768, %v778
        %v991 = vpack.c.b16 %v769, %v779
        %v992 = vpack.c.b16 %v465, %v464
        %v993 = vpack.c.b16 %v782, %v780
        %v994 = vpack.c.b16 %v783, %v781
        %v995 = vpack.c.b16 %v461, %v460
        %v996 = vpack.c.b16 %v778, %v772
        %v997 = vpack.c.b16 %v779, %v773
        %v998 = vpack.c.b16 %v464, %v463
        %v999 = vpack.c.b16 %v780, %v774
        %v1000 = vpack.c.b16 %v781, %v775
        %v1001 = vpack.c.b16 %v467, %v466
        %v1002 = vpack.c.b16 %v786, %v784
        %v1003 = vpack.c.b16 %v787, %v785
        %v1004 = vpack.c.b16 %v784, %v782
        %v1005 = vpack.c.b16 %v785, %v783
        %v1006 = vpack.c.b16 %v790, %v788
        %v1007 = vpack.c.b16 %v791, %v789
        %v1008 = vpack.c.b16 %v468, %v467
        %v1009 = vpack.c.b16 %v788, %v786
        %v1010 = vpack.c.b16 %v789, %v787
        %v1011 = vpack.c.b16 %v471, %v470
        %v1012 = vpack.c.b16 %v794, %v792
        %v1013 = vpack.c.b16 %v795, %v793
        %v1014 = vpack.c.b16 %v470, %v469
        %v1015 = vpack.c.b16 %v792, %v790
        %v1016 = vpack.c.b16 %v793, %v791
        %v1017 = vpack.c.b16 %v473, %v472
        %v1018 = vpack.c.b16 %v798, %v796
        %v1019 = vpack.c.b16 %v799, %v797
        %v1020 = vpack.c.b16 %v796, %v794
        %v1021 = vpack.c.b16 %v797, %v795
        %v1022 = vpack.c.b16 %v802, %v800
        %v1023 = vpack.c.b16 %v803, %v801
        %v1024 = vpack.c.b16 %v474, %v473
        %v1025 = vpack.c.b16 %v800, %v798
        %v1026 = vpack.c.b16 %v801, %v799
        %v1027 = vpack.c.b16 %v477, %v476
        %v1028 = vpack.c.b16 %v806, %v804
        %v1029 = vpack.c.b16 %v807, %v805
        %v1030 = vpack.c.b16 %v476, %v475
        %v1031 = vpack.c.b16 %v804, %v802
        %v1032 = vpack.c.b16 %v805, %v803
        %v1033 = vpack.c.b16 %v479, %v478
        %v1034 = vpack.c.b16 %v810, %v808
        %v1035 = vpack.c.b16 %v811, %v809
        %v1036 = vpack.c.b16 %v808, %v806
        %v1037 = vpack.c.b16 %v809, %v807
        %v1038 = vpack.c.b16 %v814, %v812
        %v1039 = vpack.c.b16 %v815, %v813
        %v1040 = vpack.c.b16 %v480, %v479
        %v1041 = vpack.c.b16 %v812, %v810
        %v1042 = vpack.c.b16 %v813, %v811
        %v1043 = vpack.c.b16 %v483, %v482
        %v1044 = vpack.c.b16 %v818, %v816
        %v1045 = vpack.c.b16 %v819, %v817
        %v1046 = vpack.c.b16 %v482, %v481
        %v1047 = vpack.c.b16 %v816, %v814
        %v1048 = vpack.c.b16 %v817, %v815
        %v1049 = vpack.c.b16 %v485, %v484
        %v1050 = vpack.c.b16 %v822, %v820
        %v1051 = vpack.c.b16 %v823, %v821
        %v1052 = vpack.c.b16 %v820, %v818
        %v1053 = vpack.c.b16 %v821, %v819
        %v1054 = vpack.c.b16 %v826, %v824
        %v1055 = vpack.c.b16 %v827, %v825
        %v1056 = vpack.c.b16 %v711, %v485
        %v1057 = vpack.c.b16 %v824, %v822
        %v1058 = vpack.c.b16 %v825, %v823
        %v1059 = vpack.c.b16 %v739, %v713
        %v1060 = vpack.c.b16 %v830, %v828
        %v1061 = vpack.c.b16 %v831, %v829
        %v1062 = vpack.c.b16 %v713, %v712
        %v1063 = vpack.c.b16 %v828, %v826
        %v1064 = vpack.c.b16 %v829, %v827
        %v1065 = vpack.c.b16 %v741, %v740
        %v1066 = vpack.c.b16 %v834, %v832
        %v1067 = vpack.c.b16 %v835, %v833
        %v1311 = vunpack.c.l.b16 %v836
        %v1312 = vunpack.c.h.b16 %v836
        %v1313 = vunpack.c.l.b16 %v837
        %v1314 = vunpack.c.h.b16 %v837
        %v1315 = vunpack.c.l.b16 %v838
        %v1316 = vunpack.c.h.b16 %v838
        %v1317 = vunpack.c.l.b16 %v839
        %v1318 = vunpack.c.h.b16 %v839
        %v1319 = vunpack.c.l.b16 %v840
        %v1320 = vunpack.c.h.b16 %v840
        %v1321 = vunpack.c.l.b16 %v841
        %v1322 = vunpack.c.h.b16 %v841
        %v1323 = vunpack.c.l.b16 %v842
        %v1324 = vunpack.c.h.b16 %v842
        %v1325 = vunpack.c.l.b16 %v843
        %v1326 = vunpack.c.h.b16 %v843
        %v1327 = vunpack.c.l.b16 %v844
        %v1328 = vunpack.c.h.b16 %v844
        %v1329 = vunpack.c.l.b16 %v845
        %v1330 = vunpack.c.h.b16 %v845
        %v1331 = vunpack.c.l.b16 %v846
        %v1332 = vunpack.c.h.b16 %v846
        %v1333 = vunpack.c.l.b16 %v847
        %v1334 = vunpack.c.h.b16 %v847
        %v1335 = vunpack.c.l.b16 %v848
        %v1336 = vunpack.c.h.b16 %v848
        %v1337 = vunpack.c.l.b16 %v849
        %v1338 = vunpack.c.h.b16 %v849
        %v1339 = vunpack.c.l.b16 %v850
        %v1340 = vunpack.c.h.b16 %v850
        %v1341 = vunpack.c.l.b16 %v851
        %v1342 = vunpack.c.h.b16 %v851
        %v1343 = vunpack.c.l.b16 %v852
        %v1344 = vunpack.c.h.b16 %v852
        %v1345 = vunpack.c.l.b16 %v853
        %v1346 = vunpack.c.h.b16 %v853
        %v1347 = vunpack.c.l.b16 %v854
        %v1348 = vunpack.c.h.b16 %v854
        %v1349 = vunpack.c.l.b16 %v855
        %v1350 = vunpack.c.h.b16 %v855
        %v1351 = vunpack.c.l.b16 %v856
        %v1352 = vunpack.c.h.b16 %v856
        %v1353 = vunpack.c.l.b16 %v857
        %v1354 = vunpack.c.h.b16 %v857
        %v1355 = vunpack.c.l.b16 %v858
        %v1356 = vunpack.c.h.b16 %v858
        %v1357 = vunpack.c.l.b16 %v859
        %v1358 = vunpack.c.h.b16 %v859
        %v1359 = vunpack.c.l.b16 %v860
        %v1360 = vunpack.c.h.b16 %v860
        %v1361 = vunpack.c.l.b16 %v861
        %v1362 = vunpack.c.h.b16 %v861
        %v1363 = vunpack.c.l.b16 %v862
        %v1364 = vunpack.c.h.b16 %v862
        %v1365 = vunpack.c.l.b16 %v863
        %v1366 = vunpack.c.h.b16 %v863
        %v1367 = vunpack.c.l.b16 %v864
        %v1368 = vunpack.c.h.b16 %v864
        %v1369 = vunpack.c.l.b16 %v865
        %v1370 = vunpack.c.h.b16 %v865
        %v1371 = vunpack.c.l.b16 %v866
        %v1372 = vunpack.c.h.b16 %v866
        %v1373 = vunpack.c.l.b16 %v867
        %v1374 = vunpack.c.h.b16 %v867
        %v1375 = vunpack.c.l.b16 %v868
        %v1376 = vunpack.c.h.b16 %v868
        %v1377 = vunpack.c.l.b16 %v869
        %v1378 = vunpack.c.h.b16 %v869
        %v1379 = vunpack.c.l.b16 %v870
        %v1380 = vunpack.c.h.b16 %v870
        %v1381 = vunpack.c.l.b16 %v871
        %v1382 = vunpack.c.h.b16 %v871
        %v1383 = vunpack.c.l.b16 %v872
        %v1384 = vunpack.c.h.b16 %v872
        %v1385 = vunpack.c.l.b16 %v873
        %v1386 = vunpack.c.h.b16 %v873
        %v1387 = vunpack.c.l.b16 %v874
        %v1388 = vunpack.c.h.b16 %v874
        %v1389 = vunpack.c.l.b16 %v875
        %v1390 = vunpack.c.h.b16 %v875
        %v1391 = vunpack.c.l.b16 %v876
        %v1392 = vunpack.c.h.b16 %v876
        %v1393 = vunpack.c.l.b16 %v877
        %v1394 = vunpack.c.h.b16 %v877
        %v1395 = vunpack.c.l.b16 %v878
        %v1396 = vunpack.c.h.b16 %v878
        %v1397 = vunpack.c.l.b16 %v879
        %v1398 = vunpack.c.h.b16 %v879
        %v1399 = vunpack.c.l.b16 %v880
        %v1400 = vunpack.c.h.b16 %v880
        %v1401 = vunpack.c.l.b16 %v881
        %v1402 = vunpack.c.h.b16 %v881
        %v1403 = vunpack.c.l.b16 %v882
        %v1404 = vunpack.c.h.b16 %v882
        %v1405 = vunpack.c.l.b16 %v883
        %v1406 = vunpack.c.h.b16 %v883
        %v1407 = vunpack.c.l.b16 %v884
        %v1408 = vunpack.c.h.b16 %v884
        %v1409 = vunpack.c.l.b16 %v885
        %v1410 = vunpack.c.h.b16 %v885
        %v1411 = vunpack.c.l.b16 %v886
        %v1412 = vunpack.c.h.b16 %v886
        %v1413 = vunpack.c.l.b16 %v887
        %v1414 = vunpack.c.h.b16 %v887
        %v1415 = vunpack.c.l.b16 %v888
        %v1416 = vunpack.c.h.b16 %v888
        %v1417 = vunpack.c.l.b16 %v889
        %v1418 = vunpack.c.h.b16 %v889
        %v1419 = vunpack.c.l.b16 %v890
        %v1420 = vunpack.c.h.b16 %v890
        %v1421 = vunpack.c.l.b16 %v891
        %v1422 = vunpack.c.h.b16 %v891
        %v1423 = vunpack.c.l.b16 %v892
        %v1424 = vunpack.c.h.b16 %v892
        %v1425 = vunpack.c.l.b16 %v893
        %v1426 = vunpack.c.h.b16 %v893
        %v1427 = vunpack.c.l.b16 %v894
        %v1428 = vunpack.c.h.b16 %v894
        %v1429 = vunpack.c.l.b16 %v895
        %v1430 = vunpack.c.h.b16 %v895
        %v1431 = vunpack.c.l.b16 %v896
        %v1432 = vunpack.c.h.b16 %v896
        %v1433 = vunpack.c.l.b16 %v897
        %v1434 = vunpack.c.h.b16 %v897
        %v1435 = vunpack.c.l.b16 %v898
        %v1436 = vunpack.c.h.b16 %v898
        %v1437 = vunpack.c.l.b16 %v899
        %v1438 = vunpack.c.h.b16 %v899
        %v1439 = vunpack.c.l.b16 %v900
        %v1440 = vunpack.c.h.b16 %v900
        %v1441 = vunpack.c.l.b16 %v901
        %v1442 = vunpack.c.h.b16 %v901
        %v1443 = vunpack.c.l.b16 %v902
        %v1444 = vunpack.c.h.b16 %v902
        %v1445 = vunpack.c.l.b16 %v903
        %v1446 = vunpack.c.h.b16 %v903
        %v1447 = vunpack.c.l.b16 %v904
        %v1448 = vunpack.c.h.b16 %v904
        %v1449 = vunpack.c.l.b16 %v905
        %v1450 = vunpack.c.h.b16 %v905
        %v1451 = vunpack.c.l.b16 %v906
        %v1452 = vunpack.c.h.b16 %v906
        %v1453 = vunpack.c.l.b16 %v907
        %v1454 = vunpack.c.h.b16 %v907
        %v1455 = vunpack.c.l.b16 %v908
        %v1456 = vunpack.c.h.b16 %v908
        %v1457 = vunpack.c.l.b16 %v909
        %v1458 = vunpack.c.h.b16 %v909
        %v1459 = vunpack.c.l.b16 %v910
        %v1460 = vunpack.c.h.b16 %v910
        %v1461 = vunpack.c.l.b16 %v911
        %v1462 = vunpack.c.h.b16 %v911
        %v1463 = vunpack.c.l.b16 %v912
        %v1464 = vunpack.c.h.b16 %v912
        %v1465 = vunpack.c.l.b16 %v913
        %v1466 = vunpack.c.h.b16 %v913
        %v1467 = vunpack.c.l.b16 %v914
        %v1468 = vunpack.c.h.b16 %v914
        %v1469 = vunpack.c.l.b16 %v915
        %v1470 = vunpack.c.h.b16 %v915
        %v1471 = vunpack.c.l.b16 %v916
        %v1472 = vunpack.c.h.b16 %v916
        %v1473 = vunpack.c.l.b16 %v917
        %v1474 = vunpack.c.h.b16 %v917
        %v1475 = vunpack.c.l.b16 %v918
        %v1476 = vunpack.c.h.b16 %v918
        %v1477 = vunpack.c.l.b16 %v919
        %v1478 = vunpack.c.h.b16 %v919
        %v1479 = vunpack.c.l.b16 %v920
        %v1480 = vunpack.c.h.b16 %v920
        %v1481 = vunpack.c.l.b16 %v921
        %v1482 = vunpack.c.h.b16 %v921
        %v1483 = vunpack.c.l.b16 %v922
        %v1484 = vunpack.c.h.b16 %v922
        %v1485 = vunpack.c.l.b16 %v923
        %v1486 = vunpack.c.h.b16 %v923
        %v1487 = vunpack.c.l.b16 %v924
        %v1488 = vunpack.c.h.b16 %v924
        %v1489 = vunpack.c.l.b16 %v925
        %v1490 = vunpack.c.h.b16 %v925
        %v1491 = vunpack.c.l.b16 %v926
        %v1492 = vunpack.c.h.b16 %v926
        %v1493 = vunpack.c.l.b16 %v927
        %v1494 = vunpack.c.h.b16 %v927
        %v1495 = vunpack.c.l.b16 %v928
        %v1496 = vunpack.c.h.b16 %v928
        %v1497 = vunpack.c.l.b16 %v929
        %v1498 = vunpack.c.h.b16 %v929
        %v1499 = vunpack.c.l.b16 %v930
        %v1500 = vunpack.c.h.b16 %v930
        %v1501 = vunpack.c.l.b16 %v931
        %v1502 = vunpack.c.h.b16 %v931
        %v1503 = vunpack.c.l.b16 %v932
        %v1504 = vunpack.c.h.b16 %v932
        %v1505 = vunpack.c.l.b16 %v933
        %v1506 = vunpack.c.h.b16 %v933
        %v1507 = vunpack.c.l.b16 %v934
        %v1508 = vunpack.c.h.b16 %v934
        %v1509 = vunpack.c.l.b16 %v935
        %v1510 = vunpack.c.h.b16 %v935
        %v1511 = vunpack.c.l.b16 %v936
        %v1512 = vunpack.c.h.b16 %v936
        %v1513 = vunpack.c.l.b16 %v937
        %v1514 = vunpack.c.h.b16 %v937
        %v1515 = vunpack.c.l.b16 %v938
        %v1516 = vunpack.c.h.b16 %v938
        %v1517 = vunpack.c.l.b16 %v939
        %v1518 = vunpack.c.h.b16 %v939
        %v1519 = vunpack.c.l.b16 %v940
        %v1520 = vunpack.c.h.b16 %v940
        %v1521 = vunpack.c.l.b16 %v941
        %v1522 = vunpack.c.h.b16 %v941
        %v1523 = vunpack.c.l.b16 %v942
        %v1524 = vunpack.c.h.b16 %v942
        %v1525 = vunpack.c.l.b16 %v943
        %v1526 = vunpack.c.h.b16 %v943
        %v1527 = vunpack.c.l.b16 %v944
        %v1528 = vunpack.c.h.b16 %v944
        %v1529 = vunpack.c.l.b16 %v945
        %v1530 = vunpack.c.h.b16 %v945
        %v1531 = vunpack.c.l.b16 %v946
        %v1532 = vunpack.c.h.b16 %v946
        %v1533 = vunpack.c.l.b16 %v947
        %v1534 = vunpack.c.h.b16 %v947
        %v1535 = vunpack.c.l.b16 %v948
        %v1536 = vunpack.c.h.b16 %v948
        %v1537 = vunpack.c.l.b16 %v949
        %v1538 = vunpack.c.h.b16 %v949
        %v1539 = vunpack.c.l.b16 %v950
        %v1540 = vunpack.c.h.b16 %v950
        %v1541 = vunpack.c.l.b16 %v951
        %v1542 = vunpack.c.h.b16 %v951
        %v1543 = vunpack.c.l.b16 %v952
        %v1544 = vunpack.c.h.b16 %v952
        %v1545 = vunpack.c.l.b16 %v953
        %v1546 = vunpack.c.h.b16 %v953
        %v1547 = vunpack.c.l.b16 %v954
        %v1548 = vunpack.c.h.b16 %v954
        %v1549 = vunpack.c.l.b16 %v955
        %v1550 = vunpack.c.h.b16 %v955
        %v1551 = vunpack.c.l.b16 %v956
        %v1552 = vunpack.c.h.b16 %v956
        %v1553 = vunpack.c.l.b16 %v957
        %v1554 = vunpack.c.h.b16 %v957
        %v1555 = vunpack.c.l.b16 %v958
        %v1556 = vunpack.c.h.b16 %v958
        %v1557 = vunpack.c.l.b16 %v959
        %v1558 = vunpack.c.h.b16 %v959
        %v1559 = vunpack.c.l.b16 %v960
        %v1560 = vunpack.c.h.b16 %v960
        %v1561 = vunpack.c.l.b16 %v961
        %v1562 = vunpack.c.h.b16 %v961
        %v1563 = vunpack.c.l.b16 %v962
        %v1564 = vunpack.c.h.b16 %v962
        %v1565 = vunpack.c.l.b16 %v963
        %v1566 = vunpack.c.h.b16 %v963
        %v1567 = vunpack.c.l.b16 %v964
        %v1568 = vunpack.c.h.b16 %v964
        %v1569 = vunpack.c.l.b16 %v965
        %v1570 = vunpack.c.h.b16 %v965
        %v1571 = vunpack.c.l.b16 %v966
        %v1572 = vunpack.c.h.b16 %v966
        %v1573 = vunpack.c.l.b16 %v967
        %v1574 = vunpack.c.h.b16 %v967
        %v1575 = vunpack.c.l.b16 %v968
        %v1576 = vunpack.c.h.b16 %v968
        %v1577 = vunpack.c.l.b16 %v969
        %v1578 = vunpack.c.h.b16 %v969
        %v1579 = vunpack.c.l.b16 %v970
        %v1580 = vunpack.c.h.b16 %v970
        %v1581 = vunpack.c.l.b16 %v971
        %v1582 = vunpack.c.h.b16 %v971
        %v1583 = vunpack.c.l.b16 %v972
        %v1584 = vunpack.c.h.b16 %v972
        %v1585 = vunpack.c.l.b16 %v973
        %v1586 = vunpack.c.h.b16 %v973
        %v1587 = vunpack.c.l.b16 %v974
        %v1588 = vunpack.c.h.b16 %v974
        %v1589 = vunpack.c.l.b16 %v975
        %v1590 = vunpack.c.h.b16 %v975
        %v1591 = vunpack.c.l.b16 %v976
        %v1592 = vunpack.c.h.b16 %v976
        %v1593 = vunpack.c.l.b16 %v977
        %v1594 = vunpack.c.h.b16 %v977
        %v1595 = vunpack.c.l.b16 %v978
        %v1596 = vunpack.c.h.b16 %v978
        %v1597 = vunpack.c.l.b16 %v979
        %v1598 = vunpack.c.h.b16 %v979
        %v1599 = vpack.c.b16 %v1313, %v1311
        %v1600 = vpack.c.b16 %v1314, %v1312
        %v1601 = vpack.c.b16 %v1317, %v1315
        %v1602 = vpack.c.b16 %v1318, %v1316
        %v1603 = vpack.c.b16 %v1321, %v1319
        %v1604 = vpack.c.b16 %v1322, %v1320
        %v1605 = vpack.c.b16 %v1325, %v1323
        %v1606 = vpack.c.b16 %v1326, %v1324
        %v1607 = vpack.c.b16 %v1329, %v1327
        %v1608 = vpack.c.b16 %v1330, %v1328
        %v1609 = vpack.c.b16 %v1333, %v1331
        %v1610 = vpack.c.b16 %v1334, %v1332
        %v1611 = vpack.c.b16 %v1337, %v1335
        %v1612 = vpack.c.b16 %v1338, %v1336
        %v1613 = vpack.c.b16 %v1341, %v1339
        %v1614 = vpack.c.b16 %v1342, %v1340
        %v1615 = vpack.c.b16 %v1345, %v1343
        %v1616 = vpack.c.b16 %v1346, %v1344
        %v1617 = vpack.c.b16 %v1349, %v1347
        %v1618 = vpack.c.b16 %v1350, %v1348
        %v1619 = vpack.c.b16 %v1353, %v1351
        %v1620 = vpack.c.b16 %v1354, %v1352
        %v1621 = vpack.c.b16 %v1357, %v1355
        %v1622 = vpack.c.b16 %v1358, %v1356
        %v1623 = vpack.c.b16 %v1361, %v1359
        %v1624 = vpack.c.b16 %v1362, %v1360
        %v1625 = vpack.c.b16 %v1365, %v1363
        %v1626 = vpack.c.b16 %v1366, %v1364
        %v1627 = vpack.c.b16 %v1369, %v1367
        %v1628 = vpack.c.b16 %v1370, %v1368
        %v1629 = vpack.c.b16 %v1373, %v1371
        %v1630 = vpack.c.b16 %v1374, %v1372
        %v1631 = vpack.c.b16 %v1377, %v1375
        %v1632 = vpack.c.b16 %v1378, %v1376
        %v1633 = vpack.c.b16 %v1381, %v1379
        %v1634 = vpack.c.b16 %v1382, %v1380
        %v1635 = vpack.c.b16 %v1385, %v1383
        %v1636 = vpack.c.b16 %v1386, %v1384
        %v1637 = vpack.c.b16 %v1389, %v1387
        %v1638 = vpack.c.b16 %v1390, %v1388
        %v1639 = vpack.c.b16 %v1393, %v1391
        %v1640 = vpack.c.b16 %v1394, %v1392
        %v1641 = vpack.c.b16 %v1397, %v1395
        %v1642 = vpack.c.b16 %v1398, %v1396
        %v1643 = vpack.c.b16 %v1401, %v1399
        %v1644 = vpack.c.b16 %v1402, %v1400
        %v1645 = vpack.c.b16 %v1405, %v1403
        %v1646 = vpack.c.b16 %v1406, %v1404
        %v1647 = vpack.c.b16 %v1409, %v1407
        %v1648 = vpack.c.b16 %v1410, %v1408
        %v1649 = vpack.c.b16 %v1413, %v1411
        %v1650 = vpack.c.b16 %v1414, %v1412
        %v1651 = vpack.c.b16 %v1417, %v1415
        %v1652 = vpack.c.b16 %v1418, %v1416
        %v1653 = vpack.c.b16 %v1421, %v1419
        %v1654 = vpack.c.b16 %v1422, %v1420
        %v1655 = vpack.c.b16 %v1425, %v1423
        %v1656 = vpack.c.b16 %v1426, %v1424
        %v1657 = vpack.c.b16 %v1429, %v1427
        %v1658 = vpack.c.b16 %v1430, %v1428
        %v1659 = vpack.c.b16 %v1433, %v1431
        %v1660 = vpack.c.b16 %v1434, %v1432
        %v1661 = vpack.c.b16 %v1437, %v1435
        %v1662 = vpack.c.b16 %v1438, %v1436
        %v1663 = vpack.c.b16 %v1441, %v1439
        %v1664 = vpack.c.b16 %v1442, %v1440
        %v1665 = vpack.c.b16 %v1445, %v1443
        %v1666 = vpack.c.b16 %v1446, %v1444
        %v1667 = vpack.c.b16 %v1449, %v1447
        %v1668 = vpack.c.b16 %v1450, %v1448
        %v1669 = vpack.c.b16 %v1453, %v1451
        %v1670 = vpack.c.b16 %v1454, %v1452
        %v1671 = vpack.c.b16 %v1457, %v1455
        %v1672 = vpack.c.b16 %v1458, %v1456
        %v1673 = vpack.c.b16 %v1461, %v1459
        %v1674 = vpack.c.b16 %v1462, %v1460
        %v1675 = vpack.c.b16 %v1465, %v1463
        %v1676 = vpack.c.b16 %v1466, %v1464
        %v1677 = vpack.c.b16 %v1469, %v1467
        %v1678 = vpack.c.b16 %v1470, %v1468
        %v1679 = vpack.c.b16 %v1473, %v1471
        %v1680 = vpack.c.b16 %v1474, %v1472
        %v1681 = vpack.c.b16 %v1477, %v1475
        %v1682 = vpack.c.b16 %v1478, %v1476
        %v1683 = vpack.c.b16 %v1481, %v1479
        %v1684 = vpack.c.b16 %v1482, %v1480
        %v1685 = vpack.c.b16 %v1485, %v1483
        %v1686 = vpack.c.b16 %v1486, %v1484
        %v1687 = vpack.c.b16 %v1489, %v1487
        %v1688 = vpack.c.b16 %v1490, %v1488
        %v1689 = vpack.c.b16 %v1493, %v1491
        %v1690 = vpack.c.b16 %v1494, %v1492
        %v1691 = vpack.c.b16 %v1497, %v1495
        %v1692 = vpack.c.b16 %v1498, %v1496
        %v1693 = vpack.c.b16 %v1501, %v1499
        %v1694 = vpack.c.b16 %v1502, %v1500
        %v1695 = vpack.c.b16 %v1505, %v1503
        %v1696 = vpack.c.b16 %v1506, %v1504
        %v1697 = vpack.c.b16 %v1509, %v1507
        %v1698 = vpack.c.b16 %v1510, %v1508
        %v1699 = vpack.c.b16 %v1513, %v1511
        %v1700 = vpack.c.b16 %v1514, %v1512
        %v1701 = vpack.c.b16 %v1517, %v1515
        %v1702 = vpack.c.b16 %v1518, %v1516
        %v1703 = vpack.c.b16 %v1521, %v1519
        %v1704 = vpack.c.b16 %v1522, %v1520
        %v1705 = vpack.c.b16 %v1525, %v1523
        %v1706 = vpack.c.b16 %v1526, %v1524
        %v1707 = vpack.c.b16 %v1529, %v1527
        %v1708 = vpack.c.b16 %v1530, %v1528
        %v1709 = vpack.c.b16 %v1533, %v1531
        %v1710 = vpack.c.b16 %v1534, %v1532
        %v1711 = vpack.c.b16 %v1537, %v1535
        %v1712 = vpack.c.b16 %v1538, %v1536
        %v1713 = vpack.c.b16 %v1541, %v1539
        %v1714 = vpack.c.b16 %v1542, %v1540
        %v1715 = vpack.c.b16 %v1545, %v1543
        %v1716 = vpack.c.b16 %v1546, %v1544
        %v1717 = vpack.c.b16 %v1549, %v1547
        %v1718 = vpack.c.b16 %v1550, %v1548
        %v1719 = vpack.c.b16 %v1553, %v1551
        %v1720 = vpack.c.b16 %v1554, %v1552
        %v1721 = vpack.c.b16 %v1557, %v1555
        %v1722 = vpack.c.b16 %v1558, %v1556
        %v1723 = vpack.c.b16 %v1561, %v1559
        %v1724 = vpack.c.b16 %v1562, %v1560
        %v1725 = vpack.c.b16 %v1565, %v1563
        %v1726 = vpack.c.b16 %v1566, %v1564
        %v1727 = vpack.c.b16 %v1569, %v1567
        %v1728 = vpack.c.b16 %v1570, %v1568
        %v1729 = vpack.c.b16 %v1573, %v1571
        %v1730 = vpack.c.b16 %v1574, %v1572
        %v1731 = vpack.c.b16 %v1577, %v1575
        %v1732 = vpack.c.b16 %v1578, %v1576
        %v1733 = vpack.c.b16 %v1581, %v1579
        %v1734 = vpack.c.b16 %v1582, %v1580
        %v1735 = vpack.c.b16 %v1585, %v1583
        %v1736 = vpack.c.b16 %v1586, %v1584
        %v1737 = vpack.c.b16 %v1589, %v1587
        %v1738 = vpack.c.b16 %v1590, %v1588
        %v1739 = vpack.c.b16 %v1593, %v1591
        %v1740 = vpack.c.b16 %v1594, %v1592
        %v1741 = vpack.c.b16 %v1597, %v1595
        %v1742 = vpack.c.b16 %v1598, %v1596
        %1887 = vmatpush.bf16.msra.mxu0 %v1613
        %1888 = vmatpush.bf16.msra.mxu0 %v1611
        %1889 = vmatpush.bf16.msra.mxu0 %v1609
        %1890 = vmatpush.bf16.msra.mxu0 %v1607
        %1891 = vmatpush.bf16.msra.mxu0 %v1605
        %1892 = vmatpush.bf16.msra.mxu0 %v1603
        %1893 = vmatpush.bf16.msra.mxu0 %v1601
        %1894 = vmatpush.bf16.msra.mxu0 %v1599
        %1895 = vmatmul.bf16.gmra.mxu0 %v506
        %v1896 = vpop.f32.mrf.mxu0
        %v1897 = vadd.f32 0.0, %v1896
        %v1898 = vpop.f32.mrf.mxu0
        %v1899 = vadd.f32 0.0, %v1898
        %1900 = vmatmul.bf16.gmra.mxu0 %v986
        %v1901 = vpop.f32.mrf.mxu0
        %v1902 = vadd.f32 0.0, %v1901
        %v1903 = vpop.f32.mrf.mxu0
        %v1904 = vadd.f32 0.0, %v1903
        %1905 = vmatmul.bf16.gmra.mxu0 %v995
        %v1906 = vpop.f32.mrf.mxu0
        %v1907 = vadd.f32 0.0, %v1906
        %v1908 = vpop.f32.mrf.mxu0
        %v1909 = vadd.f32 0.0, %v1908
        %1910 = vmatmul.bf16.gmra.mxu0 %v510
        %v1911 = vpop.f32.mrf.mxu0
        %v1912 = vadd.f32 0.0, %v1911
        %v1913 = vpop.f32.mrf.mxu0
        %v1914 = vadd.f32 0.0, %v1913
        %1915 = vmatmul.bf16.gmra.mxu0 %v992
        %v1916 = vpop.f32.mrf.mxu0
        %v1917 = vadd.f32 0.0, %v1916
        %v1918 = vpop.f32.mrf.mxu0
        %v1919 = vadd.f32 0.0, %v1918
        %1920 = vmatmul.bf16.gmra.mxu0 %v1001
        %v1921 = vpop.f32.mrf.mxu0
        %v1922 = vadd.f32 0.0, %v1921
        %v1923 = vpop.f32.mrf.mxu0
        %v1924 = vadd.f32 0.0, %v1923
        %1925 = vmatmul.bf16.gmra.mxu0 %v514
        %v1926 = vpop.f32.mrf.mxu0
        %v1927 = vadd.f32 0.0, %v1926
        %v1928 = vpop.f32.mrf.mxu0
        %v1929 = vadd.f32 0.0, %v1928
        %1930 = vmatmul.bf16.gmra.mxu0 %v1011
        %v1931 = vpop.f32.mrf.mxu0
        %v1932 = vadd.f32 0.0, %v1931
        %v1933 = vpop.f32.mrf.mxu0
        %v1934 = vadd.f32 0.0, %v1933
        %1935 = vmatmul.bf16.gmra.mxu0 %v1017
        %v1936 = vpop.f32.mrf.mxu0
        %v1937 = vadd.f32 0.0, %v1936
        %v1938 = vpop.f32.mrf.mxu0
        %v1939 = vadd.f32 0.0, %v1938
        %1940 = vmatmul.bf16.gmra.mxu0 %v518
        %v1941 = vpop.f32.mrf.mxu0
        %v1942 = vadd.f32 0.0, %v1941
        %v1943 = vpop.f32.mrf.mxu0
        %v1944 = vadd.f32 0.0, %v1943
        %1945 = vmatmul.bf16.gmra.mxu0 %v1027
        %v1946 = vpop.f32.mrf.mxu0
        %v1947 = vadd.f32 0.0, %v1946
        %v1948 = vpop.f32.mrf.mxu0
        %v1949 = vadd.f32 0.0, %v1948
        %1950 = vmatmul.bf16.gmra.mxu0 %v1033
        %v1951 = vpop.f32.mrf.mxu0
        %v1952 = vadd.f32 0.0, %v1951
        %v1953 = vpop.f32.mrf.mxu0
        %v1954 = vadd.f32 0.0, %v1953
        %1955 = vmatmul.bf16.gmra.mxu0 %v522
        %v1956 = vpop.f32.mrf.mxu0
        %v1957 = vadd.f32 0.0, %v1956
        %v1958 = vpop.f32.mrf.mxu0
        %v1959 = vadd.f32 0.0, %v1958
        %1960 = vmatmul.bf16.gmra.mxu0 %v1043
        %v1961 = vpop.f32.mrf.mxu0
        %v1962 = vadd.f32 0.0, %v1961
        %v1963 = vpop.f32.mrf.mxu0
        %v1964 = vadd.f32 0.0, %v1963
        %1965 = vmatmul.bf16.gmra.mxu0 %v1049
        %v1966 = vpop.f32.mrf.mxu0
        %v1967 = vadd.f32 0.0, %v1966
        %v1968 = vpop.f32.mrf.mxu0
        %v1969 = vadd.f32 0.0, %v1968
        %1970 = vdwg.mxu0
        %1971 = vmatpush.bf16.msra.mxu0 %v1629
        %1972 = vmatpush.bf16.msra.mxu0 %v1627
        %1973 = vmatpush.bf16.msra.mxu0 %v1625
        %1974 = vmatpush.bf16.msra.mxu0 %v1623
        %1975 = vmatpush.bf16.msra.mxu0 %v1621
        %1976 = vmatpush.bf16.msra.mxu0 %v1619
        %1977 = vmatpush.bf16.msra.mxu0 %v1617
        %1978 = vmatpush.bf16.msra.mxu0 %v1615
        %1979 = vmatmul.bf16.gmra.mxu0 %v980
        %v1980 = vpop.f32.mrf.mxu0
        %v1981 = vadd.f32 %v1897, %v1980
        %v1982 = vpop.f32.mrf.mxu0
        %v1983 = vadd.f32 %v1899, %v1982
        %1984 = vmatmul.bf16.gmra.mxu0 %v987
        %v1985 = vpop.f32.mrf.mxu0
        %v1986 = vadd.f32 %v1902, %v1985
        %v1987 = vpop.f32.mrf.mxu0
        %v1988 = vadd.f32 %v1904, %v1987
        %1989 = vmatmul.bf16.gmra.mxu0 %v996
        %v1990 = vpop.f32.mrf.mxu0
        %v1991 = vadd.f32 %v1907, %v1990
        %v1992 = vpop.f32.mrf.mxu0
        %v1993 = vadd.f32 %v1909, %v1992
        %1994 = vmatmul.bf16.gmra.mxu0 %v984
        %v1995 = vpop.f32.mrf.mxu0
        %v1996 = vadd.f32 %v1912, %v1995
        %v1997 = vpop.f32.mrf.mxu0
        %v1998 = vadd.f32 %v1914, %v1997
        %1999 = vmatmul.bf16.gmra.mxu0 %v993
        %v2000 = vpop.f32.mrf.mxu0
        %v2001 = vadd.f32 %v1917, %v2000
        %v2002 = vpop.f32.mrf.mxu0
        %v2003 = vadd.f32 %v1919, %v2002
        %2004 = vmatmul.bf16.gmra.mxu0 %v1002
        %v2005 = vpop.f32.mrf.mxu0
        %v2006 = vadd.f32 %v1922, %v2005
        %v2007 = vpop.f32.mrf.mxu0
        %v2008 = vadd.f32 %v1924, %v2007
        %2009 = vmatmul.bf16.gmra.mxu0 %v1006
        %v2010 = vpop.f32.mrf.mxu0
        %v2011 = vadd.f32 %v1927, %v2010
        %v2012 = vpop.f32.mrf.mxu0
        %v2013 = vadd.f32 %v1929, %v2012
        %2014 = vmatmul.bf16.gmra.mxu0 %v1012
        %v2015 = vpop.f32.mrf.mxu0
        %v2016 = vadd.f32 %v1932, %v2015
        %v2017 = vpop.f32.mrf.mxu0
        %v2018 = vadd.f32 %v1934, %v2017
        %2019 = vmatmul.bf16.gmra.mxu0 %v1018
        %v2020 = vpop.f32.mrf.mxu0
        %v2021 = vadd.f32 %v1937, %v2020
        %v2022 = vpop.f32.mrf.mxu0
        %v2023 = vadd.f32 %v1939, %v2022
        %2024 = vmatmul.bf16.gmra.mxu0 %v1022
        %v2025 = vpop.f32.mrf.mxu0
        %v2026 = vadd.f32 %v1942, %v2025
        %v2027 = vpop.f32.mrf.mxu0
        %v2028 = vadd.f32 %v1944, %v2027
        %2029 = vmatmul.bf16.gmra.mxu0 %v1028
        %v2030 = vpop.f32.mrf.mxu0
        %v2031 = vadd.f32 %v1947, %v2030
        %v2032 = vpop.f32.mrf.mxu0
        %v2033 = vadd.f32 %v1949, %v2032
        %2034 = vmatmul.bf16.gmra.mxu0 %v1034
        %v2035 = vpop.f32.mrf.mxu0
        %v2036 = vadd.f32 %v1952, %v2035
        %v2037 = vpop.f32.mrf.mxu0
        %v2038 = vadd.f32 %v1954, %v2037
        %2039 = vmatmul.bf16.gmra.mxu0 %v1038
        %v2040 = vpop.f32.mrf.mxu0
        %v2041 = vadd.f32 %v1957, %v2040
        %v2042 = vpop.f32.mrf.mxu0
        %v2043 = vadd.f32 %v1959, %v2042
        %2044 = vmatmul.bf16.gmra.mxu0 %v1044
        %v2045 = vpop.f32.mrf.mxu0
        %v2046 = vadd.f32 %v1962, %v2045
        %v2047 = vpop.f32.mrf.mxu0
        %v2048 = vadd.f32 %v1964, %v2047
        %2049 = vmatmul.bf16.gmra.mxu0 %v1050
        %v2050 = vpop.f32.mrf.mxu0
        %v2051 = vadd.f32 %v1967, %v2050
        %v2052 = vpop.f32.mrf.mxu0
        %v2053 = vadd.f32 %v1969, %v2052
        %2054 = vdwg.mxu0
        %2055 = vmatpush.bf16.msra.mxu0 %v1645
        %2056 = vmatpush.bf16.msra.mxu0 %v1643
        %2057 = vmatpush.bf16.msra.mxu0 %v1641
        %2058 = vmatpush.bf16.msra.mxu0 %v1639
        %2059 = vmatpush.bf16.msra.mxu0 %v1637
        %2060 = vmatpush.bf16.msra.mxu0 %v1635
        %2061 = vmatpush.bf16.msra.mxu0 %v1633
        %2062 = vmatpush.bf16.msra.mxu0 %v1631
        %2063 = vmatmul.bf16.gmra.mxu0 %v981
        %v2064 = vpop.f32.mrf.mxu0
        %v2065 = vadd.f32 %v1981, %v2064
        %v2066 = vpop.f32.mrf.mxu0
        %v2067 = vadd.f32 %v1983, %v2066
        %2068 = vmatmul.bf16.gmra.mxu0 %v988
        %v2069 = vpop.f32.mrf.mxu0
        %v2070 = vadd.f32 %v1986, %v2069
        %v2071 = vpop.f32.mrf.mxu0
        %v2072 = vadd.f32 %v1988, %v2071
        %2073 = vmatmul.bf16.gmra.mxu0 %v997
        %v2074 = vpop.f32.mrf.mxu0
        %v2075 = vadd.f32 %v1991, %v2074
        %v2076 = vpop.f32.mrf.mxu0
        %v2077 = vadd.f32 %v1993, %v2076
        %2078 = vmatmul.bf16.gmra.mxu0 %v985
        %v2079 = vpop.f32.mrf.mxu0
        %v2080 = vadd.f32 %v1996, %v2079
        %v2081 = vpop.f32.mrf.mxu0
        %v2082 = vadd.f32 %v1998, %v2081
        %2083 = vmatmul.bf16.gmra.mxu0 %v994
        %v2084 = vpop.f32.mrf.mxu0
        %v2085 = vadd.f32 %v2001, %v2084
        %v2086 = vpop.f32.mrf.mxu0
        %v2087 = vadd.f32 %v2003, %v2086
        %2088 = vmatmul.bf16.gmra.mxu0 %v1003
        %v2089 = vpop.f32.mrf.mxu0
        %v2090 = vadd.f32 %v2006, %v2089
        %v2091 = vpop.f32.mrf.mxu0
        %v2092 = vadd.f32 %v2008, %v2091
        %2093 = vmatmul.bf16.gmra.mxu0 %v1007
        %v2094 = vpop.f32.mrf.mxu0
        %v2095 = vadd.f32 %v2011, %v2094
        %v2096 = vpop.f32.mrf.mxu0
        %v2097 = vadd.f32 %v2013, %v2096
        %2098 = vmatmul.bf16.gmra.mxu0 %v1013
        %v2099 = vpop.f32.mrf.mxu0
        %v2100 = vadd.f32 %v2016, %v2099
        %v2101 = vpop.f32.mrf.mxu0
        %v2102 = vadd.f32 %v2018, %v2101
        %2103 = vmatmul.bf16.gmra.mxu0 %v1019
        %v2104 = vpop.f32.mrf.mxu0
        %v2105 = vadd.f32 %v2021, %v2104
        %v2106 = vpop.f32.mrf.mxu0
        %v2107 = vadd.f32 %v2023, %v2106
        %2108 = vmatmul.bf16.gmra.mxu0 %v1023
        %v2109 = vpop.f32.mrf.mxu0
        %v2110 = vadd.f32 %v2026, %v2109
        %v2111 = vpop.f32.mrf.mxu0
        %v2112 = vadd.f32 %v2028, %v2111
        %2113 = vmatmul.bf16.gmra.mxu0 %v1029
        %v2114 = vpop.f32.mrf.mxu0
        %v2115 = vadd.f32 %v2031, %v2114
        %v2116 = vpop.f32.mrf.mxu0
        %v2117 = vadd.f32 %v2033, %v2116
        %2118 = vmatmul.bf16.gmra.mxu0 %v1035
        %v2119 = vpop.f32.mrf.mxu0
        %v2120 = vadd.f32 %v2036, %v2119
        %v2121 = vpop.f32.mrf.mxu0
        %v2122 = vadd.f32 %v2038, %v2121
        %2123 = vmatmul.bf16.gmra.mxu0 %v1039
        %v2124 = vpop.f32.mrf.mxu0
        %v2125 = vadd.f32 %v2041, %v2124
        %v2126 = vpop.f32.mrf.mxu0
        %v2127 = vadd.f32 %v2043, %v2126
        %2128 = vmatmul.bf16.gmra.mxu0 %v1045
        %v2129 = vpop.f32.mrf.mxu0
        %v2130 = vadd.f32 %v2046, %v2129
        %v2131 = vpop.f32.mrf.mxu0
        %v2132 = vadd.f32 %v2048, %v2131
        %2133 = vmatmul.bf16.gmra.mxu0 %v1051
        %v2134 = vpop.f32.mrf.mxu0
        %v2135 = vadd.f32 %v2051, %v2134
        %v2136 = vpop.f32.mrf.mxu0
        %v2137 = vadd.f32 %v2053, %v2136
        %2138 = vdwg.mxu0
        %2139 = vmatpush.bf16.msra.mxu0 %v1661
        %2140 = vmatpush.bf16.msra.mxu0 %v1659
        %2141 = vmatpush.bf16.msra.mxu0 %v1657
        %2142 = vmatpush.bf16.msra.mxu0 %v1655
        %2143 = vmatpush.bf16.msra.mxu0 %v1653
        %2144 = vmatpush.bf16.msra.mxu0 %v1651
        %2145 = vmatpush.bf16.msra.mxu0 %v1649
        %2146 = vmatpush.bf16.msra.mxu0 %v1647
        %2147 = vmatmul.bf16.gmra.mxu0 %v508
        %v2148 = vpop.f32.mrf.mxu0
        %v2149 = vadd.f32 %v2065, %v2148
        %v2150 = vpop.f32.mrf.mxu0
        %v2151 = vadd.f32 %v2067, %v2150
        %2152 = vmatmul.bf16.gmra.mxu0 %v989
        %v2153 = vpop.f32.mrf.mxu0
        %v2154 = vadd.f32 %v2070, %v2153
        %v2155 = vpop.f32.mrf.mxu0
        %v2156 = vadd.f32 %v2072, %v2155
        %2157 = vmatmul.bf16.gmra.mxu0 %v998
        %v2158 = vpop.f32.mrf.mxu0
        %v2159 = vadd.f32 %v2075, %v2158
        %v2160 = vpop.f32.mrf.mxu0
        %v2161 = vadd.f32 %v2077, %v2160
        %2162 = vmatmul.bf16.gmra.mxu0 %v512
        %v2163 = vpop.f32.mrf.mxu0
        %v2164 = vadd.f32 %v2080, %v2163
        %v2165 = vpop.f32.mrf.mxu0
        %v2166 = vadd.f32 %v2082, %v2165
        %2167 = vmatmul.bf16.gmra.mxu0 %v1008
        %v2168 = vpop.f32.mrf.mxu0
        %v2169 = vadd.f32 %v2085, %v2168
        %v2170 = vpop.f32.mrf.mxu0
        %v2171 = vadd.f32 %v2087, %v2170
        %2172 = vmatmul.bf16.gmra.mxu0 %v1014
        %v2173 = vpop.f32.mrf.mxu0
        %v2174 = vadd.f32 %v2090, %v2173
        %v2175 = vpop.f32.mrf.mxu0
        %v2176 = vadd.f32 %v2092, %v2175
        %2177 = vmatmul.bf16.gmra.mxu0 %v516
        %v2178 = vpop.f32.mrf.mxu0
        %v2179 = vadd.f32 %v2095, %v2178
        %v2180 = vpop.f32.mrf.mxu0
        %v2181 = vadd.f32 %v2097, %v2180
        %2182 = vmatmul.bf16.gmra.mxu0 %v1024
        %v2183 = vpop.f32.mrf.mxu0
        %v2184 = vadd.f32 %v2100, %v2183
        %v2185 = vpop.f32.mrf.mxu0
        %v2186 = vadd.f32 %v2102, %v2185
        %2187 = vmatmul.bf16.gmra.mxu0 %v1030
        %v2188 = vpop.f32.mrf.mxu0
        %v2189 = vadd.f32 %v2105, %v2188
        %v2190 = vpop.f32.mrf.mxu0
        %v2191 = vadd.f32 %v2107, %v2190
        %2192 = vmatmul.bf16.gmra.mxu0 %v520
        %v2193 = vpop.f32.mrf.mxu0
        %v2194 = vadd.f32 %v2110, %v2193
        %v2195 = vpop.f32.mrf.mxu0
        %v2196 = vadd.f32 %v2112, %v2195
        %2197 = vmatmul.bf16.gmra.mxu0 %v1040
        %v2198 = vpop.f32.mrf.mxu0
        %v2199 = vadd.f32 %v2115, %v2198
        %v2200 = vpop.f32.mrf.mxu0
        %v2201 = vadd.f32 %v2117, %v2200
        %2202 = vmatmul.bf16.gmra.mxu0 %v1046
        %v2203 = vpop.f32.mrf.mxu0
        %v2204 = vadd.f32 %v2120, %v2203
        %v2205 = vpop.f32.mrf.mxu0
        %v2206 = vadd.f32 %v2122, %v2205
        %2207 = vmatmul.bf16.gmra.mxu0 %v524
        %v2208 = vpop.f32.mrf.mxu0
        %v2209 = vadd.f32 %v2125, %v2208
        %v2210 = vpop.f32.mrf.mxu0
        %v2211 = vadd.f32 %v2127, %v2210
        %2212 = vmatmul.bf16.gmra.mxu0 %v1056
        %v2213 = vpop.f32.mrf.mxu0
        %v2214 = vadd.f32 %v2130, %v2213
        %v2215 = vpop.f32.mrf.mxu0
        %v2216 = vadd.f32 %v2132, %v2215
        %2217 = vmatmul.bf16.gmra.mxu0 %v1062
        %v2218 = vpop.f32.mrf.mxu0
        %v2219 = vadd.f32 %v2135, %v2218
        %v2220 = vpop.f32.mrf.mxu0
        %v2221 = vadd.f32 %v2137, %v2220
        %2222 = vdwg.mxu0
        %2223 = vmatpush.bf16.msra.mxu0 %v1677
        %2224 = vmatpush.bf16.msra.mxu0 %v1675
        %2225 = vmatpush.bf16.msra.mxu0 %v1673
        %2226 = vmatpush.bf16.msra.mxu0 %v1671
        %2227 = vmatpush.bf16.msra.mxu0 %v1669
        %2228 = vmatpush.bf16.msra.mxu0 %v1667
        %2229 = vmatpush.bf16.msra.mxu0 %v1665
        %2230 = vmatpush.bf16.msra.mxu0 %v1663
        %2231 = vmatmul.bf16.gmra.mxu0 %v982
        %v2232 = vpop.f32.mrf.mxu0
        %v2233 = vadd.f32 %v2149, %v2232
        %v2234 = vpop.f32.mrf.mxu0
        %v2235 = vadd.f32 %v2151, %v2234
        %2236 = vmatmul.bf16.gmra.mxu0 %v990
        %v2237 = vpop.f32.mrf.mxu0
        %v2238 = vadd.f32 %v2154, %v2237
        %v2239 = vpop.f32.mrf.mxu0
        %v2240 = vadd.f32 %v2156, %v2239
        %2241 = vmatmul.bf16.gmra.mxu0 %v999
        %v2242 = vpop.f32.mrf.mxu0
        %v2243 = vadd.f32 %v2159, %v2242
        %v2244 = vpop.f32.mrf.mxu0
        %v2245 = vadd.f32 %v2161, %v2244
        %2246 = vmatmul.bf16.gmra.mxu0 %v1004
        %v2247 = vpop.f32.mrf.mxu0
        %v2248 = vadd.f32 %v2164, %v2247
        %v2249 = vpop.f32.mrf.mxu0
        %v2250 = vadd.f32 %v2166, %v2249
        %2251 = vmatmul.bf16.gmra.mxu0 %v1009
        %v2252 = vpop.f32.mrf.mxu0
        %v2253 = vadd.f32 %v2169, %v2252
        %v2254 = vpop.f32.mrf.mxu0
        %v2255 = vadd.f32 %v2171, %v2254
        %2256 = vmatmul.bf16.gmra.mxu0 %v1015
        %v2257 = vpop.f32.mrf.mxu0
        %v2258 = vadd.f32 %v2174, %v2257
        %v2259 = vpop.f32.mrf.mxu0
        %v2260 = vadd.f32 %v2176, %v2259
        %2261 = vmatmul.bf16.gmra.mxu0 %v1020
        %v2262 = vpop.f32.mrf.mxu0
        %v2263 = vadd.f32 %v2179, %v2262
        %v2264 = vpop.f32.mrf.mxu0
        %v2265 = vadd.f32 %v2181, %v2264
        %2266 = vmatmul.bf16.gmra.mxu0 %v1025
        %v2267 = vpop.f32.mrf.mxu0
        %v2268 = vadd.f32 %v2184, %v2267
        %v2269 = vpop.f32.mrf.mxu0
        %v2270 = vadd.f32 %v2186, %v2269
        %2271 = vmatmul.bf16.gmra.mxu0 %v1031
        %v2272 = vpop.f32.mrf.mxu0
        %v2273 = vadd.f32 %v2189, %v2272
        %v2274 = vpop.f32.mrf.mxu0
        %v2275 = vadd.f32 %v2191, %v2274
        %2276 = vmatmul.bf16.gmra.mxu0 %v1036
        %v2277 = vpop.f32.mrf.mxu0
        %v2278 = vadd.f32 %v2194, %v2277
        %v2279 = vpop.f32.mrf.mxu0
        %v2280 = vadd.f32 %v2196, %v2279
        %2281 = vmatmul.bf16.gmra.mxu0 %v1041
        %v2282 = vpop.f32.mrf.mxu0
        %v2283 = vadd.f32 %v2199, %v2282
        %v2284 = vpop.f32.mrf.mxu0
        %v2285 = vadd.f32 %v2201, %v2284
        %2286 = vmatmul.bf16.gmra.mxu0 %v1047
        %v2287 = vpop.f32.mrf.mxu0
        %v2288 = vadd.f32 %v2204, %v2287
        %v2289 = vpop.f32.mrf.mxu0
        %v2290 = vadd.f32 %v2206, %v2289
        %2291 = vmatmul.bf16.gmra.mxu0 %v1052
        %v2292 = vpop.f32.mrf.mxu0
        %v2293 = vadd.f32 %v2209, %v2292
        %v2294 = vpop.f32.mrf.mxu0
        %v2295 = vadd.f32 %v2211, %v2294
        %2296 = vmatmul.bf16.gmra.mxu0 %v1057
        %v2297 = vpop.f32.mrf.mxu0
        %v2298 = vadd.f32 %v2214, %v2297
        %v2299 = vpop.f32.mrf.mxu0
        %v2300 = vadd.f32 %v2216, %v2299
        %2301 = vmatmul.bf16.gmra.mxu0 %v1063
        %v2302 = vpop.f32.mrf.mxu0
        %v2303 = vadd.f32 %v2219, %v2302
        %v2304 = vpop.f32.mrf.mxu0
        %v2305 = vadd.f32 %v2221, %v2304
        %2306 = vdwg.mxu0
        %2307 = vmatpush.bf16.msra.mxu0 %v1693
        %2308 = vmatpush.bf16.msra.mxu0 %v1691
        %2309 = vmatpush.bf16.msra.mxu0 %v1689
        %2310 = vmatpush.bf16.msra.mxu0 %v1687
        %2311 = vmatpush.bf16.msra.mxu0 %v1685
        %2312 = vmatpush.bf16.msra.mxu0 %v1683
        %2313 = vmatpush.bf16.msra.mxu0 %v1681
        %2314 = vmatpush.bf16.msra.mxu0 %v1679
        %2315 = vmatmul.bf16.gmra.mxu0 %v983
        %v2316 = vpop.f32.mrf.mxu0
        %v2317 = vadd.f32 %v2233, %v2316
        %v2318 = vpop.f32.mrf.mxu0
        %v2319 = vadd.f32 %v2235, %v2318
        %2320 = vmatmul.bf16.gmra.mxu0 %v991
        %v2321 = vpop.f32.mrf.mxu0
        %v2322 = vadd.f32 %v2238, %v2321
        %v2323 = vpop.f32.mrf.mxu0
        %v2324 = vadd.f32 %v2240, %v2323
        %2325 = vmatmul.bf16.gmra.mxu0 %v1000
        %v2326 = vpop.f32.mrf.mxu0
        %v2327 = vadd.f32 %v2243, %v2326
        %v2328 = vpop.f32.mrf.mxu0
        %v2329 = vadd.f32 %v2245, %v2328
        %2330 = vmatmul.bf16.gmra.mxu0 %v1005
        %v2331 = vpop.f32.mrf.mxu0
        %v2332 = vadd.f32 %v2248, %v2331
        %v2333 = vpop.f32.mrf.mxu0
        %v2334 = vadd.f32 %v2250, %v2333
        %2335 = vmatmul.bf16.gmra.mxu0 %v1010
        %v2336 = vpop.f32.mrf.mxu0
        %v2337 = vadd.f32 %v2253, %v2336
        %v2338 = vpop.f32.mrf.mxu0
        %v2339 = vadd.f32 %v2255, %v2338
        %2340 = vmatmul.bf16.gmra.mxu0 %v1016
        %v2341 = vpop.f32.mrf.mxu0
        %v2342 = vadd.f32 %v2258, %v2341
        %v2343 = vpop.f32.mrf.mxu0
        %v2344 = vadd.f32 %v2260, %v2343
        %2345 = vmatmul.bf16.gmra.mxu0 %v1021
        %v2346 = vpop.f32.mrf.mxu0
        %v2347 = vadd.f32 %v2263, %v2346
        %v2348 = vpop.f32.mrf.mxu0
        %v2349 = vadd.f32 %v2265, %v2348
        %2350 = vmatmul.bf16.gmra.mxu0 %v1026
        %v2351 = vpop.f32.mrf.mxu0
        %v2352 = vadd.f32 %v2268, %v2351
        %v2353 = vpop.f32.mrf.mxu0
        %v2354 = vadd.f32 %v2270, %v2353
        %2355 = vmatmul.bf16.gmra.mxu0 %v1032
        %v2356 = vpop.f32.mrf.mxu0
        %v2357 = vadd.f32 %v2273, %v2356
        %v2358 = vpop.f32.mrf.mxu0
        %v2359 = vadd.f32 %v2275, %v2358
        %2360 = vmatmul.bf16.gmra.mxu0 %v1037
        %v2361 = vpop.f32.mrf.mxu0
        %v2362 = vadd.f32 %v2278, %v2361
        %v2363 = vpop.f32.mrf.mxu0
        %v2364 = vadd.f32 %v2280, %v2363
        %2365 = vmatmul.bf16.gmra.mxu0 %v1042
        %v2366 = vpop.f32.mrf.mxu0
        %v2367 = vadd.f32 %v2283, %v2366
        %v2368 = vpop.f32.mrf.mxu0
        %v2369 = vadd.f32 %v2285, %v2368
        %2370 = vmatmul.bf16.gmra.mxu0 %v1048
        %v2371 = vpop.f32.mrf.mxu0
        %v2372 = vadd.f32 %v2288, %v2371
        %v2373 = vpop.f32.mrf.mxu0
        %v2374 = vadd.f32 %v2290, %v2373
        %2375 = vmatmul.bf16.gmra.mxu0 %v1053
        %v2376 = vpop.f32.mrf.mxu0
        %v2377 = vadd.f32 %v2293, %v2376
        %v2378 = vpop.f32.mrf.mxu0
        %v2379 = vadd.f32 %v2295, %v2378
        %2380 = vmatmul.bf16.gmra.mxu0 %v1058
        %v2381 = vpop.f32.mrf.mxu0
        %v2382 = vadd.f32 %v2298, %v2381
        %v2383 = vpop.f32.mrf.mxu0
        %v2384 = vadd.f32 %v2300, %v2383
        %2385 = vmatmul.bf16.gmra.mxu0 %v1064
        %v2386 = vpop.f32.mrf.mxu0
        %v2387 = vadd.f32 %v2303, %v2386
        %v2388 = vpop.f32.mrf.mxu0
        %v2389 = vadd.f32 %v2305, %v2388
        %2390 = vdwg.mxu0
        %2391 = vmatpush.bf16.msra.mxu0 %v1709
        %2392 = vmatpush.bf16.msra.mxu0 %v1707
        %2393 = vmatpush.bf16.msra.mxu0 %v1705
        %2394 = vmatpush.bf16.msra.mxu0 %v1703
        %2395 = vmatpush.bf16.msra.mxu0 %v1701
        %2396 = vmatpush.bf16.msra.mxu0 %v1699
        %2397 = vmatpush.bf16.msra.mxu0 %v1697
        %2398 = vmatpush.bf16.msra.mxu0 %v1695
        %2399 = vmatmul.bf16.gmra.mxu0 %v510
        %v2400 = vpop.f32.mrf.mxu0
        %v2401 = vadd.f32 %v2317, %v2400
        %v2402 = vpop.f32.mrf.mxu0
        %v2403 = vadd.f32 %v2319, %v2402
        %2404 = vmatmul.bf16.gmra.mxu0 %v992
        %v2405 = vpop.f32.mrf.mxu0
        %v2406 = vadd.f32 %v2322, %v2405
        %v2407 = vpop.f32.mrf.mxu0
        %v2408 = vadd.f32 %v2324, %v2407
        %2409 = vmatmul.bf16.gmra.mxu0 %v1001
        %v2410 = vpop.f32.mrf.mxu0
        %v2411 = vadd.f32 %v2327, %v2410
        %v2412 = vpop.f32.mrf.mxu0
        %v2413 = vadd.f32 %v2329, %v2412
        %2414 = vmatmul.bf16.gmra.mxu0 %v514
        %v2415 = vpop.f32.mrf.mxu0
        %v2416 = vadd.f32 %v2332, %v2415
        %v2417 = vpop.f32.mrf.mxu0
        %v2418 = vadd.f32 %v2334, %v2417
        %2419 = vmatmul.bf16.gmra.mxu0 %v1011
        %v2420 = vpop.f32.mrf.mxu0
        %v2421 = vadd.f32 %v2337, %v2420
        %v2422 = vpop.f32.mrf.mxu0
        %v2423 = vadd.f32 %v2339, %v2422
        %2424 = vmatmul.bf16.gmra.mxu0 %v1017
        %v2425 = vpop.f32.mrf.mxu0
        %v2426 = vadd.f32 %v2342, %v2425
        %v2427 = vpop.f32.mrf.mxu0
        %v2428 = vadd.f32 %v2344, %v2427
        %2429 = vmatmul.bf16.gmra.mxu0 %v518
        %v2430 = vpop.f32.mrf.mxu0
        %v2431 = vadd.f32 %v2347, %v2430
        %v2432 = vpop.f32.mrf.mxu0
        %v2433 = vadd.f32 %v2349, %v2432
        %2434 = vmatmul.bf16.gmra.mxu0 %v1027
        %v2435 = vpop.f32.mrf.mxu0
        %v2436 = vadd.f32 %v2352, %v2435
        %v2437 = vpop.f32.mrf.mxu0
        %v2438 = vadd.f32 %v2354, %v2437
        %2439 = vmatmul.bf16.gmra.mxu0 %v1033
        %v2440 = vpop.f32.mrf.mxu0
        %v2441 = vadd.f32 %v2357, %v2440
        %v2442 = vpop.f32.mrf.mxu0
        %v2443 = vadd.f32 %v2359, %v2442
        %2444 = vmatmul.bf16.gmra.mxu0 %v522
        %v2445 = vpop.f32.mrf.mxu0
        %v2446 = vadd.f32 %v2362, %v2445
        %v2447 = vpop.f32.mrf.mxu0
        %v2448 = vadd.f32 %v2364, %v2447
        %2449 = vmatmul.bf16.gmra.mxu0 %v1043
        %v2450 = vpop.f32.mrf.mxu0
        %v2451 = vadd.f32 %v2367, %v2450
        %v2452 = vpop.f32.mrf.mxu0
        %v2453 = vadd.f32 %v2369, %v2452
        %2454 = vmatmul.bf16.gmra.mxu0 %v1049
        %v2455 = vpop.f32.mrf.mxu0
        %v2456 = vadd.f32 %v2372, %v2455
        %v2457 = vpop.f32.mrf.mxu0
        %v2458 = vadd.f32 %v2374, %v2457
        %2459 = vmatmul.bf16.gmra.mxu0 %v716
        %v2460 = vpop.f32.mrf.mxu0
        %v2461 = vadd.f32 %v2377, %v2460
        %v2462 = vpop.f32.mrf.mxu0
        %v2463 = vadd.f32 %v2379, %v2462
        %2464 = vmatmul.bf16.gmra.mxu0 %v1059
        %v2465 = vpop.f32.mrf.mxu0
        %v2466 = vadd.f32 %v2382, %v2465
        %v2467 = vpop.f32.mrf.mxu0
        %v2468 = vadd.f32 %v2384, %v2467
        %2469 = vmatmul.bf16.gmra.mxu0 %v1065
        %v2470 = vpop.f32.mrf.mxu0
        %v2471 = vadd.f32 %v2387, %v2470
        %v2472 = vpop.f32.mrf.mxu0
        %v2473 = vadd.f32 %v2389, %v2472
        %2474 = vdwg.mxu0
        %2475 = vmatpush.bf16.msra.mxu0 %v1725
        %2476 = vmatpush.bf16.msra.mxu0 %v1723
        %2477 = vmatpush.bf16.msra.mxu0 %v1721
        %2478 = vmatpush.bf16.msra.mxu0 %v1719
        %2479 = vmatpush.bf16.msra.mxu0 %v1717
        %2480 = vmatpush.bf16.msra.mxu0 %v1715
        %2481 = vmatpush.bf16.msra.mxu0 %v1713
        %2482 = vmatpush.bf16.msra.mxu0 %v1711
        %2483 = vmatmul.bf16.gmra.mxu0 %v984
        %v2484 = vpop.f32.mrf.mxu0
        %v2485 = vadd.f32 %v2401, %v2484
        %v2486 = vpop.f32.mrf.mxu0
        %v2487 = vadd.f32 %v2403, %v2486
        %2488 = vmatmul.bf16.gmra.mxu0 %v993
        %v2489 = vpop.f32.mrf.mxu0
        %v2490 = vadd.f32 %v2406, %v2489
        %v2491 = vpop.f32.mrf.mxu0
        %v2492 = vadd.f32 %v2408, %v2491
        %2493 = vmatmul.bf16.gmra.mxu0 %v1002
        %v2494 = vpop.f32.mrf.mxu0
        %v2495 = vadd.f32 %v2411, %v2494
        %v2496 = vpop.f32.mrf.mxu0
        %v2497 = vadd.f32 %v2413, %v2496
        %2498 = vmatmul.bf16.gmra.mxu0 %v1006
        %v2499 = vpop.f32.mrf.mxu0
        %v2500 = vadd.f32 %v2416, %v2499
        %v2501 = vpop.f32.mrf.mxu0
        %v2502 = vadd.f32 %v2418, %v2501
        %2503 = vmatmul.bf16.gmra.mxu0 %v1012
        %v2504 = vpop.f32.mrf.mxu0
        %v2505 = vadd.f32 %v2421, %v2504
        %v2506 = vpop.f32.mrf.mxu0
        %v2507 = vadd.f32 %v2423, %v2506
        %2508 = vmatmul.bf16.gmra.mxu0 %v1018
        %v2509 = vpop.f32.mrf.mxu0
        %v2510 = vadd.f32 %v2426, %v2509
        %v2511 = vpop.f32.mrf.mxu0
        %v2512 = vadd.f32 %v2428, %v2511
        %2513 = vmatmul.bf16.gmra.mxu0 %v1022
        %v2514 = vpop.f32.mrf.mxu0
        %v2515 = vadd.f32 %v2431, %v2514
        %v2516 = vpop.f32.mrf.mxu0
        %v2517 = vadd.f32 %v2433, %v2516
        %2518 = vmatmul.bf16.gmra.mxu0 %v1028
        %v2519 = vpop.f32.mrf.mxu0
        %v2520 = vadd.f32 %v2436, %v2519
        %v2521 = vpop.f32.mrf.mxu0
        %v2522 = vadd.f32 %v2438, %v2521
        %2523 = vmatmul.bf16.gmra.mxu0 %v1034
        %v2524 = vpop.f32.mrf.mxu0
        %v2525 = vadd.f32 %v2441, %v2524
        %v2526 = vpop.f32.mrf.mxu0
        %v2527 = vadd.f32 %v2443, %v2526
        %2528 = vmatmul.bf16.gmra.mxu0 %v1038
        %v2529 = vpop.f32.mrf.mxu0
        %v2530 = vadd.f32 %v2446, %v2529
        %v2531 = vpop.f32.mrf.mxu0
        %v2532 = vadd.f32 %v2448, %v2531
        %2533 = vmatmul.bf16.gmra.mxu0 %v1044
        %v2534 = vpop.f32.mrf.mxu0
        %v2535 = vadd.f32 %v2451, %v2534
        %v2536 = vpop.f32.mrf.mxu0
        %v2537 = vadd.f32 %v2453, %v2536
        %2538 = vmatmul.bf16.gmra.mxu0 %v1050
        %v2539 = vpop.f32.mrf.mxu0
        %v2540 = vadd.f32 %v2456, %v2539
        %v2541 = vpop.f32.mrf.mxu0
        %v2542 = vadd.f32 %v2458, %v2541
        %2543 = vmatmul.bf16.gmra.mxu0 %v1054
        %v2544 = vpop.f32.mrf.mxu0
        %v2545 = vadd.f32 %v2461, %v2544
        %v2546 = vpop.f32.mrf.mxu0
        %v2547 = vadd.f32 %v2463, %v2546
        %2548 = vmatmul.bf16.gmra.mxu0 %v1060
        %v2549 = vpop.f32.mrf.mxu0
        %v2550 = vadd.f32 %v2466, %v2549
        %v2551 = vpop.f32.mrf.mxu0
        %v2552 = vadd.f32 %v2468, %v2551
        %2553 = vmatmul.bf16.gmra.mxu0 %v1066
        %v2554 = vpop.f32.mrf.mxu0
        %v2555 = vadd.f32 %v2471, %v2554
        %v2556 = vpop.f32.mrf.mxu0
        %v2557 = vadd.f32 %v2473, %v2556
        %2558 = vdwg.mxu0
        %2559 = vmatpush.bf16.msra.mxu0 %v1741
        %2560 = vmatpush.bf16.msra.mxu0 %v1739
        %2561 = vmatpush.bf16.msra.mxu0 %v1737
        %2562 = vmatpush.bf16.msra.mxu0 %v1735
        %2563 = vmatpush.bf16.msra.mxu0 %v1733
        %2564 = vmatpush.bf16.msra.mxu0 %v1731
        %2565 = vmatpush.bf16.msra.mxu0 %v1729
        %2566 = vmatpush.bf16.msra.mxu0 %v1727
        %2567 = vmatmul.bf16.gmra.mxu0 %v985
        %v2568 = vpop.f32.mrf.mxu0
        %v2569 = vadd.f32 %v2485, %v2568
        %v2570 = vpop.f32.mrf.mxu0
        %v2571 = vadd.f32 %v2487, %v2570
        %2572 = vmatmul.bf16.gmra.mxu0 %v994
        %v2573 = vpop.f32.mrf.mxu0
        %v2574 = vadd.f32 %v2490, %v2573
        %v2575 = vpop.f32.mrf.mxu0
        %v2576 = vadd.f32 %v2492, %v2575
        %2577 = vmatmul.bf16.gmra.mxu0 %v1003
        %v2578 = vpop.f32.mrf.mxu0
        %v2579 = vadd.f32 %v2495, %v2578
        %v2580 = vpop.f32.mrf.mxu0
        %v2581 = vadd.f32 %v2497, %v2580
        %2582 = vmatmul.bf16.gmra.mxu0 %v1007
        %v2583 = vpop.f32.mrf.mxu0
        %v2584 = vadd.f32 %v2500, %v2583
        %v2585 = vpop.f32.mrf.mxu0
        %v2586 = vadd.f32 %v2502, %v2585
        %2587 = vmatmul.bf16.gmra.mxu0 %v1013
        %v2588 = vpop.f32.mrf.mxu0
        %v2589 = vadd.f32 %v2505, %v2588
        %v2590 = vpop.f32.mrf.mxu0
        %v2591 = vadd.f32 %v2507, %v2590
        %2592 = vmatmul.bf16.gmra.mxu0 %v1019
        %v2593 = vpop.f32.mrf.mxu0
        %v2594 = vadd.f32 %v2510, %v2593
        %v2595 = vpop.f32.mrf.mxu0
        %v2596 = vadd.f32 %v2512, %v2595
        %2597 = vmatmul.bf16.gmra.mxu0 %v1023
        %v2598 = vpop.f32.mrf.mxu0
        %v2599 = vadd.f32 %v2515, %v2598
        %v2600 = vpop.f32.mrf.mxu0
        %v2601 = vadd.f32 %v2517, %v2600
        %2602 = vmatmul.bf16.gmra.mxu0 %v1029
        %v2603 = vpop.f32.mrf.mxu0
        %v2604 = vadd.f32 %v2520, %v2603
        %v2605 = vpop.f32.mrf.mxu0
        %v2606 = vadd.f32 %v2522, %v2605
        %2607 = vmatmul.bf16.gmra.mxu0 %v1035
        %v2608 = vpop.f32.mrf.mxu0
        %v2609 = vadd.f32 %v2525, %v2608
        %v2610 = vpop.f32.mrf.mxu0
        %v2611 = vadd.f32 %v2527, %v2610
        %2612 = vmatmul.bf16.gmra.mxu0 %v1039
        %v2613 = vpop.f32.mrf.mxu0
        %v2614 = vadd.f32 %v2530, %v2613
        %v2615 = vpop.f32.mrf.mxu0
        %v2616 = vadd.f32 %v2532, %v2615
        %2617 = vmatmul.bf16.gmra.mxu0 %v1045
        %v2618 = vpop.f32.mrf.mxu0
        %v2619 = vadd.f32 %v2535, %v2618
        %v2620 = vpop.f32.mrf.mxu0
        %v2621 = vadd.f32 %v2537, %v2620
        %2622 = vmatmul.bf16.gmra.mxu0 %v1051
        %v2623 = vpop.f32.mrf.mxu0
        %v2624 = vadd.f32 %v2540, %v2623
        %v2625 = vpop.f32.mrf.mxu0
        %v2626 = vadd.f32 %v2542, %v2625
        %2627 = vmatmul.bf16.gmra.mxu0 %v1055
        %v2628 = vpop.f32.mrf.mxu0
        %v2629 = vadd.f32 %v2545, %v2628
        %v2630 = vpop.f32.mrf.mxu0
        %v2631 = vadd.f32 %v2547, %v2630
        %2632 = vmatmul.bf16.gmra.mxu0 %v1061
        %v2633 = vpop.f32.mrf.mxu0
        %v2634 = vadd.f32 %v2550, %v2633
        %v2635 = vpop.f32.mrf.mxu0
        %v2636 = vadd.f32 %v2552, %v2635
        %2637 = vmatmul.bf16.gmra.mxu0 %v1067
        %v2638 = vpop.f32.mrf.mxu0
        %v2639 = vadd.f32 %v2555, %v2638
        %v2640 = vpop.f32.mrf.mxu0
        %v2641 = vadd.f32 %v2557, %v2640
        %2642 = vdwg.mxu0
        %2643 = vmatpush.bf16.msra.mxu0 %v1614
        %2644 = vmatpush.bf16.msra.mxu0 %v1612
        %2645 = vmatpush.bf16.msra.mxu0 %v1610
        %2646 = vmatpush.bf16.msra.mxu0 %v1608
        %2647 = vmatpush.bf16.msra.mxu0 %v1606
        %2648 = vmatpush.bf16.msra.mxu0 %v1604
        %2649 = vmatpush.bf16.msra.mxu0 %v1602
        %2650 = vmatpush.bf16.msra.mxu0 %v1600
        %2651 = vmatmul.bf16.gmra.mxu0 %v506
        %v2652 = vpop.f32.mrf.mxu0
        %v2653 = vpop.f32.mrf.mxu0
        %2654 = vmatmul.bf16.gmra.mxu0 %v986
        %v2655 = vpop.f32.mrf.mxu0
        %v2656 = vpop.f32.mrf.mxu0
        %v2657 = vadd.f32 0.0, %v2656
        %2658 = vmatmul.bf16.gmra.mxu0 %v995
        %v2659 = vpop.f32.mrf.mxu0
        %v2660 = vadd.f32 0.0, %v2659
        %v2661 = vpop.f32.mrf.mxu0
        %v2662 = vadd.f32 0.0, %v2661
        %2663 = vmatmul.bf16.gmra.mxu0 %v510
        %v2664 = vpop.f32.mrf.mxu0
        %v2665 = vadd.f32 0.0, %v2664
        %v2666 = vpop.f32.mrf.mxu0
        %v2667 = vadd.f32 0.0, %v2666
        %2668 = vmatmul.bf16.gmra.mxu0 %v992
        %v2669 = vpop.f32.mrf.mxu0
        %v2670 = vadd.f32 0.0, %v2669
        %v2671 = vpop.f32.mrf.mxu0
        %v2672 = vadd.f32 0.0, %v2671
        %2673 = vmatmul.bf16.gmra.mxu0 %v1001
        %v2674 = vpop.f32.mrf.mxu0
        %v2675 = vadd.f32 0.0, %v2674
        %v2676 = vpop.f32.mrf.mxu0
        %v2677 = vadd.f32 0.0, %v2676
        %2678 = vmatmul.bf16.gmra.mxu0 %v514
        %v2679 = vpop.f32.mrf.mxu0
        %v2680 = vadd.f32 0.0, %v2679
        %v2681 = vpop.f32.mrf.mxu0
        %v2682 = vadd.f32 0.0, %v2681
        %2683 = vmatmul.bf16.gmra.mxu0 %v1011
        %v2684 = vpop.f32.mrf.mxu0
        %v2685 = vadd.f32 0.0, %v2684
        %v2686 = vpop.f32.mrf.mxu0
        %v2687 = vadd.f32 0.0, %v2686
        %2688 = vmatmul.bf16.gmra.mxu0 %v1017
        %v2689 = vpop.f32.mrf.mxu0
        %v2690 = vadd.f32 0.0, %v2689
        %v2691 = vpop.f32.mrf.mxu0
        %v2692 = vadd.f32 0.0, %v2691
        %2693 = vmatmul.bf16.gmra.mxu0 %v518
        %v2694 = vpop.f32.mrf.mxu0
        %v2695 = vadd.f32 0.0, %v2694
        %v2696 = vpop.f32.mrf.mxu0
        %v2697 = vadd.f32 0.0, %v2696
        %2698 = vmatmul.bf16.gmra.mxu0 %v1027
        %v2699 = vpop.f32.mrf.mxu0
        %v2700 = vadd.f32 0.0, %v2699
        %v2701 = vpop.f32.mrf.mxu0
        %v2702 = vadd.f32 0.0, %v2701
        %2703 = vmatmul.bf16.gmra.mxu0 %v1033
        %v2704 = vpop.f32.mrf.mxu0
        %v2705 = vadd.f32 0.0, %v2704
        %v2706 = vpop.f32.mrf.mxu0
        %v2707 = vadd.f32 0.0, %v2706
        %2708 = vmatmul.bf16.gmra.mxu0 %v522
        %v2709 = vpop.f32.mrf.mxu0
        %v2710 = vadd.f32 0.0, %v2709
        %v2711 = vpop.f32.mrf.mxu0
        %v2712 = vadd.f32 0.0, %v2711
        %2713 = vmatmul.bf16.gmra.mxu0 %v1043
        %v2714 = vpop.f32.mrf.mxu0
        %v2715 = vadd.f32 0.0, %v2714
        %v2716 = vpop.f32.mrf.mxu0
        %2717 = vmatmul.bf16.gmra.mxu0 %v1049
        %v2718 = vpop.f32.mrf.mxu0
        %v2719 = vpop.f32.mrf.mxu0
        %2720 = vdwg.mxu0
        %2721 = vmatpush.bf16.msra.mxu0 %v1630
        %2722 = vmatpush.bf16.msra.mxu0 %v1628
        %2723 = vmatpush.bf16.msra.mxu0 %v1626
        %2724 = vmatpush.bf16.msra.mxu0 %v1624
        %2725 = vmatpush.bf16.msra.mxu0 %v1622
        %2726 = vmatpush.bf16.msra.mxu0 %v1620
        %2727 = vmatpush.bf16.msra.mxu0 %v1618
        %2728 = vmatpush.bf16.msra.mxu0 %v1616
        %2729 = vmatmul.bf16.gmra.mxu0 %v980
        %v2730 = vpop.f32.mrf.mxu0
        %v2731 = vpop.f32.mrf.mxu0
        %2732 = vmatmul.bf16.gmra.mxu0 %v987
        %v2733 = vpop.f32.mrf.mxu0
        %v2734 = vpop.f32.mrf.mxu0
        %v2735 = vadd.f32 %v2657, %v2734
        %2736 = vmatmul.bf16.gmra.mxu0 %v996
        %v2737 = vpop.f32.mrf.mxu0
        %v2738 = vadd.f32 %v2660, %v2737
        %v2739 = vpop.f32.mrf.mxu0
        %v2740 = vadd.f32 %v2662, %v2739
        %2741 = vmatmul.bf16.gmra.mxu0 %v984
        %v2742 = vpop.f32.mrf.mxu0
        %v2743 = vadd.f32 %v2665, %v2742
        %v2744 = vpop.f32.mrf.mxu0
        %v2745 = vadd.f32 %v2667, %v2744
        %2746 = vmatmul.bf16.gmra.mxu0 %v993
        %v2747 = vpop.f32.mrf.mxu0
        %v2748 = vadd.f32 %v2670, %v2747
        %v2749 = vpop.f32.mrf.mxu0
        %v2750 = vadd.f32 %v2672, %v2749
        %2751 = vmatmul.bf16.gmra.mxu0 %v1002
        %v2752 = vpop.f32.mrf.mxu0
        %v2753 = vadd.f32 %v2675, %v2752
        %v2754 = vpop.f32.mrf.mxu0
        %v2755 = vadd.f32 %v2677, %v2754
        %2756 = vmatmul.bf16.gmra.mxu0 %v1006
        %v2757 = vpop.f32.mrf.mxu0
        %v2758 = vadd.f32 %v2680, %v2757
        %v2759 = vpop.f32.mrf.mxu0
        %v2760 = vadd.f32 %v2682, %v2759
        %2761 = vmatmul.bf16.gmra.mxu0 %v1012
        %v2762 = vpop.f32.mrf.mxu0
        %v2763 = vadd.f32 %v2685, %v2762
        %v2764 = vpop.f32.mrf.mxu0
        %v2765 = vadd.f32 %v2687, %v2764
        %2766 = vmatmul.bf16.gmra.mxu0 %v1018
        %v2767 = vpop.f32.mrf.mxu0
        %v2768 = vadd.f32 %v2690, %v2767
        %v2769 = vpop.f32.mrf.mxu0
        %v2770 = vadd.f32 %v2692, %v2769
        %2771 = vmatmul.bf16.gmra.mxu0 %v1022
        %v2772 = vpop.f32.mrf.mxu0
        %v2773 = vadd.f32 %v2695, %v2772
        %v2774 = vpop.f32.mrf.mxu0
        %v2775 = vadd.f32 %v2697, %v2774
        %2776 = vmatmul.bf16.gmra.mxu0 %v1028
        %v2777 = vpop.f32.mrf.mxu0
        %v2778 = vadd.f32 %v2700, %v2777
        %v2779 = vpop.f32.mrf.mxu0
        %v2780 = vadd.f32 %v2702, %v2779
        %2781 = vmatmul.bf16.gmra.mxu0 %v1034
        %v2782 = vpop.f32.mrf.mxu0
        %v2783 = vadd.f32 %v2705, %v2782
        %v2784 = vpop.f32.mrf.mxu0
        %v2785 = vadd.f32 %v2707, %v2784
        %2786 = vmatmul.bf16.gmra.mxu0 %v1038
        %v2787 = vpop.f32.mrf.mxu0
        %v2788 = vadd.f32 %v2710, %v2787
        %v2789 = vpop.f32.mrf.mxu0
        %v2790 = vadd.f32 %v2712, %v2789
        %2791 = vmatmul.bf16.gmra.mxu0 %v1044
        %v2792 = vpop.f32.mrf.mxu0
        %v2793 = vadd.f32 %v2715, %v2792
        %v2794 = vpop.f32.mrf.mxu0
        %2795 = vmatmul.bf16.gmra.mxu0 %v1050
        %v2796 = vpop.f32.mrf.mxu0
        %v2797 = vpop.f32.mrf.mxu0
        %2798 = vdwg.mxu0
        %2799 = vmatpush.bf16.msra.mxu0 %v1646
        %2800 = vmatpush.bf16.msra.mxu0 %v1644
        %2801 = vmatpush.bf16.msra.mxu0 %v1642
        %2802 = vmatpush.bf16.msra.mxu0 %v1640
        %2803 = vmatpush.bf16.msra.mxu0 %v1638
        %2804 = vmatpush.bf16.msra.mxu0 %v1636
        %2805 = vmatpush.bf16.msra.mxu0 %v1634
        %2806 = vmatpush.bf16.msra.mxu0 %v1632
        %2807 = vmatmul.bf16.gmra.mxu0 %v981
        %v2808 = vpop.f32.mrf.mxu0
        %v2809 = vpop.f32.mrf.mxu0
        %2810 = vmatmul.bf16.gmra.mxu0 %v988
        %v2811 = vpop.f32.mrf.mxu0
        %v2812 = vpop.f32.mrf.mxu0
        %v2813 = vadd.f32 %v2735, %v2812
        %2814 = vmatmul.bf16.gmra.mxu0 %v997
        %v2815 = vpop.f32.mrf.mxu0
        %v2816 = vadd.f32 %v2738, %v2815
        %v2817 = vpop.f32.mrf.mxu0
        %v2818 = vadd.f32 %v2740, %v2817
        %2819 = vmatmul.bf16.gmra.mxu0 %v985
        %v2820 = vpop.f32.mrf.mxu0
        %v2821 = vadd.f32 %v2743, %v2820
        %v2822 = vpop.f32.mrf.mxu0
        %v2823 = vadd.f32 %v2745, %v2822
        %2824 = vmatmul.bf16.gmra.mxu0 %v994
        %v2825 = vpop.f32.mrf.mxu0
        %v2826 = vadd.f32 %v2748, %v2825
        %v2827 = vpop.f32.mrf.mxu0
        %v2828 = vadd.f32 %v2750, %v2827
        %2829 = vmatmul.bf16.gmra.mxu0 %v1003
        %v2830 = vpop.f32.mrf.mxu0
        %v2831 = vadd.f32 %v2753, %v2830
        %v2832 = vpop.f32.mrf.mxu0
        %v2833 = vadd.f32 %v2755, %v2832
        %2834 = vmatmul.bf16.gmra.mxu0 %v1007
        %v2835 = vpop.f32.mrf.mxu0
        %v2836 = vadd.f32 %v2758, %v2835
        %v2837 = vpop.f32.mrf.mxu0
        %v2838 = vadd.f32 %v2760, %v2837
        %2839 = vmatmul.bf16.gmra.mxu0 %v1013
        %v2840 = vpop.f32.mrf.mxu0
        %v2841 = vadd.f32 %v2763, %v2840
        %v2842 = vpop.f32.mrf.mxu0
        %v2843 = vadd.f32 %v2765, %v2842
        %2844 = vmatmul.bf16.gmra.mxu0 %v1019
        %v2845 = vpop.f32.mrf.mxu0
        %v2846 = vadd.f32 %v2768, %v2845
        %v2847 = vpop.f32.mrf.mxu0
        %v2848 = vadd.f32 %v2770, %v2847
        %2849 = vmatmul.bf16.gmra.mxu0 %v1023
        %v2850 = vpop.f32.mrf.mxu0
        %v2851 = vadd.f32 %v2773, %v2850
        %v2852 = vpop.f32.mrf.mxu0
        %v2853 = vadd.f32 %v2775, %v2852
        %2854 = vmatmul.bf16.gmra.mxu0 %v1029
        %v2855 = vpop.f32.mrf.mxu0
        %v2856 = vadd.f32 %v2778, %v2855
        %v2857 = vpop.f32.mrf.mxu0
        %v2858 = vadd.f32 %v2780, %v2857
        %2859 = vmatmul.bf16.gmra.mxu0 %v1035
        %v2860 = vpop.f32.mrf.mxu0
        %v2861 = vadd.f32 %v2783, %v2860
        %v2862 = vpop.f32.mrf.mxu0
        %v2863 = vadd.f32 %v2785, %v2862
        %2864 = vmatmul.bf16.gmra.mxu0 %v1039
        %v2865 = vpop.f32.mrf.mxu0
        %v2866 = vadd.f32 %v2788, %v2865
        %v2867 = vpop.f32.mrf.mxu0
        %v2868 = vadd.f32 %v2790, %v2867
        %2869 = vmatmul.bf16.gmra.mxu0 %v1045
        %v2870 = vpop.f32.mrf.mxu0
        %v2871 = vadd.f32 %v2793, %v2870
        %v2872 = vpop.f32.mrf.mxu0
        %2873 = vmatmul.bf16.gmra.mxu0 %v1051
        %v2874 = vpop.f32.mrf.mxu0
        %v2875 = vpop.f32.mrf.mxu0
        %2876 = vdwg.mxu0
        %2877 = vmatpush.bf16.msra.mxu0 %v1662
        %2878 = vmatpush.bf16.msra.mxu0 %v1660
        %2879 = vmatpush.bf16.msra.mxu0 %v1658
        %2880 = vmatpush.bf16.msra.mxu0 %v1656
        %2881 = vmatpush.bf16.msra.mxu0 %v1654
        %2882 = vmatpush.bf16.msra.mxu0 %v1652
        %2883 = vmatpush.bf16.msra.mxu0 %v1650
        %2884 = vmatpush.bf16.msra.mxu0 %v1648
        %2885 = vmatmul.bf16.gmra.mxu0 %v508
        %v2886 = vpop.f32.mrf.mxu0
        %v2887 = vpop.f32.mrf.mxu0
        %2888 = vmatmul.bf16.gmra.mxu0 %v989
        %v2889 = vpop.f32.mrf.mxu0
        %v2890 = vpop.f32.mrf.mxu0
        %v2891 = vadd.f32 %v2813, %v2890
        %2892 = vmatmul.bf16.gmra.mxu0 %v998
        %v2893 = vpop.f32.mrf.mxu0
        %v2894 = vadd.f32 %v2816, %v2893
        %v2895 = vpop.f32.mrf.mxu0
        %v2896 = vadd.f32 %v2818, %v2895
        %2897 = vmatmul.bf16.gmra.mxu0 %v512
        %v2898 = vpop.f32.mrf.mxu0
        %v2899 = vadd.f32 %v2821, %v2898
        %v2900 = vpop.f32.mrf.mxu0
        %v2901 = vadd.f32 %v2823, %v2900
        %2902 = vmatmul.bf16.gmra.mxu0 %v1008
        %v2903 = vpop.f32.mrf.mxu0
        %v2904 = vadd.f32 %v2826, %v2903
        %v2905 = vpop.f32.mrf.mxu0
        %v2906 = vadd.f32 %v2828, %v2905
        %2907 = vmatmul.bf16.gmra.mxu0 %v1014
        %v2908 = vpop.f32.mrf.mxu0
        %v2909 = vadd.f32 %v2831, %v2908
        %v2910 = vpop.f32.mrf.mxu0
        %v2911 = vadd.f32 %v2833, %v2910
        %2912 = vmatmul.bf16.gmra.mxu0 %v516
        %v2913 = vpop.f32.mrf.mxu0
        %v2914 = vadd.f32 %v2836, %v2913
        %v2915 = vpop.f32.mrf.mxu0
        %v2916 = vadd.f32 %v2838, %v2915
        %2917 = vmatmul.bf16.gmra.mxu0 %v1024
        %v2918 = vpop.f32.mrf.mxu0
        %v2919 = vadd.f32 %v2841, %v2918
        %v2920 = vpop.f32.mrf.mxu0
        %v2921 = vadd.f32 %v2843, %v2920
        %2922 = vmatmul.bf16.gmra.mxu0 %v1030
        %v2923 = vpop.f32.mrf.mxu0
        %v2924 = vadd.f32 %v2846, %v2923
        %v2925 = vpop.f32.mrf.mxu0
        %v2926 = vadd.f32 %v2848, %v2925
        %2927 = vmatmul.bf16.gmra.mxu0 %v520
        %v2928 = vpop.f32.mrf.mxu0
        %v2929 = vadd.f32 %v2851, %v2928
        %v2930 = vpop.f32.mrf.mxu0
        %v2931 = vadd.f32 %v2853, %v2930
        %2932 = vmatmul.bf16.gmra.mxu0 %v1040
        %v2933 = vpop.f32.mrf.mxu0
        %v2934 = vadd.f32 %v2856, %v2933
        %v2935 = vpop.f32.mrf.mxu0
        %v2936 = vadd.f32 %v2858, %v2935
        %2937 = vmatmul.bf16.gmra.mxu0 %v1046
        %v2938 = vpop.f32.mrf.mxu0
        %v2939 = vadd.f32 %v2861, %v2938
        %v2940 = vpop.f32.mrf.mxu0
        %v2941 = vadd.f32 %v2863, %v2940
        %2942 = vmatmul.bf16.gmra.mxu0 %v524
        %v2943 = vpop.f32.mrf.mxu0
        %v2944 = vadd.f32 %v2866, %v2943
        %v2945 = vpop.f32.mrf.mxu0
        %v2946 = vadd.f32 %v2868, %v2945
        %2947 = vmatmul.bf16.gmra.mxu0 %v1056
        %v2948 = vpop.f32.mrf.mxu0
        %v2949 = vadd.f32 %v2871, %v2948
        %v2950 = vpop.f32.mrf.mxu0
        %2951 = vmatmul.bf16.gmra.mxu0 %v1062
        %v2952 = vpop.f32.mrf.mxu0
        %v2953 = vpop.f32.mrf.mxu0
        %2954 = vdwg.mxu0
        %2955 = vmatpush.bf16.msra.mxu0 %v1678
        %2956 = vmatpush.bf16.msra.mxu0 %v1676
        %2957 = vmatpush.bf16.msra.mxu0 %v1674
        %2958 = vmatpush.bf16.msra.mxu0 %v1672
        %2959 = vmatpush.bf16.msra.mxu0 %v1670
        %2960 = vmatpush.bf16.msra.mxu0 %v1668
        %2961 = vmatpush.bf16.msra.mxu0 %v1666
        %2962 = vmatpush.bf16.msra.mxu0 %v1664
        %2963 = vmatmul.bf16.gmra.mxu0 %v982
        %v2964 = vpop.f32.mrf.mxu0
        %v2965 = vpop.f32.mrf.mxu0
        %2966 = vmatmul.bf16.gmra.mxu0 %v990
        %v2967 = vpop.f32.mrf.mxu0
        %v2968 = vpop.f32.mrf.mxu0
        %v2969 = vadd.f32 %v2891, %v2968
        %2970 = vmatmul.bf16.gmra.mxu0 %v999
        %v2971 = vpop.f32.mrf.mxu0
        %v2972 = vadd.f32 %v2894, %v2971
        %v2973 = vpop.f32.mrf.mxu0
        %v2974 = vadd.f32 %v2896, %v2973
        %2975 = vmatmul.bf16.gmra.mxu0 %v1004
        %v2976 = vpop.f32.mrf.mxu0
        %v2977 = vadd.f32 %v2899, %v2976
        %v2978 = vpop.f32.mrf.mxu0
        %v2979 = vadd.f32 %v2901, %v2978
        %2980 = vmatmul.bf16.gmra.mxu0 %v1009
        %v2981 = vpop.f32.mrf.mxu0
        %v2982 = vadd.f32 %v2904, %v2981
        %v2983 = vpop.f32.mrf.mxu0
        %v2984 = vadd.f32 %v2906, %v2983
        %2985 = vmatmul.bf16.gmra.mxu0 %v1015
        %v2986 = vpop.f32.mrf.mxu0
        %v2987 = vadd.f32 %v2909, %v2986
        %v2988 = vpop.f32.mrf.mxu0
        %v2989 = vadd.f32 %v2911, %v2988
        %2990 = vmatmul.bf16.gmra.mxu0 %v1020
        %v2991 = vpop.f32.mrf.mxu0
        %v2992 = vadd.f32 %v2914, %v2991
        %v2993 = vpop.f32.mrf.mxu0
        %v2994 = vadd.f32 %v2916, %v2993
        %2995 = vmatmul.bf16.gmra.mxu0 %v1025
        %v2996 = vpop.f32.mrf.mxu0
        %v2997 = vadd.f32 %v2919, %v2996
        %v2998 = vpop.f32.mrf.mxu0
        %v2999 = vadd.f32 %v2921, %v2998
        %3000 = vmatmul.bf16.gmra.mxu0 %v1031
        %v3001 = vpop.f32.mrf.mxu0
        %v3002 = vadd.f32 %v2924, %v3001
        %v3003 = vpop.f32.mrf.mxu0
        %v3004 = vadd.f32 %v2926, %v3003
        %3005 = vmatmul.bf16.gmra.mxu0 %v1036
        %v3006 = vpop.f32.mrf.mxu0
        %v3007 = vadd.f32 %v2929, %v3006
        %v3008 = vpop.f32.mrf.mxu0
        %v3009 = vadd.f32 %v2931, %v3008
        %3010 = vmatmul.bf16.gmra.mxu0 %v1041
        %v3011 = vpop.f32.mrf.mxu0
        %v3012 = vadd.f32 %v2934, %v3011
        %v3013 = vpop.f32.mrf.mxu0
        %v3014 = vadd.f32 %v2936, %v3013
        %3015 = vmatmul.bf16.gmra.mxu0 %v1047
        %v3016 = vpop.f32.mrf.mxu0
        %v3017 = vadd.f32 %v2939, %v3016
        %v3018 = vpop.f32.mrf.mxu0
        %v3019 = vadd.f32 %v2941, %v3018
        %3020 = vmatmul.bf16.gmra.mxu0 %v1052
        %v3021 = vpop.f32.mrf.mxu0
        %v3022 = vadd.f32 %v2944, %v3021
        %v3023 = vpop.f32.mrf.mxu0
        %v3024 = vadd.f32 %v2946, %v3023
        %3025 = vmatmul.bf16.gmra.mxu0 %v1057
        %v3026 = vpop.f32.mrf.mxu0
        %v3027 = vadd.f32 %v2949, %v3026
        %v3028 = vpop.f32.mrf.mxu0
        %3029 = vmatmul.bf16.gmra.mxu0 %v1063
        %v3030 = vpop.f32.mrf.mxu0
        %v3031 = vpop.f32.mrf.mxu0
        %3032 = vdwg.mxu0
        %3033 = vmatpush.bf16.msra.mxu0 %v1694
        %3034 = vmatpush.bf16.msra.mxu0 %v1692
        %3035 = vmatpush.bf16.msra.mxu0 %v1690
        %3036 = vmatpush.bf16.msra.mxu0 %v1688
        %3037 = vmatpush.bf16.msra.mxu0 %v1686
        %3038 = vmatpush.bf16.msra.mxu0 %v1684
        %3039 = vmatpush.bf16.msra.mxu0 %v1682
        %3040 = vmatpush.bf16.msra.mxu0 %v1680
        %3041 = vmatmul.bf16.gmra.mxu0 %v983
        %v3042 = vpop.f32.mrf.mxu0
        %v3043 = vpop.f32.mrf.mxu0
        %3044 = vmatmul.bf16.gmra.mxu0 %v991
        %v3045 = vpop.f32.mrf.mxu0
        %v3046 = vpop.f32.mrf.mxu0
        %v3047 = vadd.f32 %v2969, %v3046
        %3048 = vmatmul.bf16.gmra.mxu0 %v1000
        %v3049 = vpop.f32.mrf.mxu0
        %v3050 = vadd.f32 %v2972, %v3049
        %v3051 = vpop.f32.mrf.mxu0
        %v3052 = vadd.f32 %v2974, %v3051
        %3053 = vmatmul.bf16.gmra.mxu0 %v1005
        %v3054 = vpop.f32.mrf.mxu0
        %v3055 = vadd.f32 %v2977, %v3054
        %v3056 = vpop.f32.mrf.mxu0
        %v3057 = vadd.f32 %v2979, %v3056
        %3058 = vmatmul.bf16.gmra.mxu0 %v1010
        %v3059 = vpop.f32.mrf.mxu0
        %v3060 = vadd.f32 %v2982, %v3059
        %v3061 = vpop.f32.mrf.mxu0
        %v3062 = vadd.f32 %v2984, %v3061
        %3063 = vmatmul.bf16.gmra.mxu0 %v1016
        %v3064 = vpop.f32.mrf.mxu0
        %v3065 = vadd.f32 %v2987, %v3064
        %v3066 = vpop.f32.mrf.mxu0
        %v3067 = vadd.f32 %v2989, %v3066
        %3068 = vmatmul.bf16.gmra.mxu0 %v1021
        %v3069 = vpop.f32.mrf.mxu0
        %v3070 = vadd.f32 %v2992, %v3069
        %v3071 = vpop.f32.mrf.mxu0
        %v3072 = vadd.f32 %v2994, %v3071
        %3073 = vmatmul.bf16.gmra.mxu0 %v1026
        %v3074 = vpop.f32.mrf.mxu0
        %v3075 = vadd.f32 %v2997, %v3074
        %v3076 = vpop.f32.mrf.mxu0
        %v3077 = vadd.f32 %v2999, %v3076
        %3078 = vmatmul.bf16.gmra.mxu0 %v1032
        %v3079 = vpop.f32.mrf.mxu0
        %v3080 = vadd.f32 %v3002, %v3079
        %v3081 = vpop.f32.mrf.mxu0
        %v3082 = vadd.f32 %v3004, %v3081
        %3083 = vmatmul.bf16.gmra.mxu0 %v1037
        %v3084 = vpop.f32.mrf.mxu0
        %v3085 = vadd.f32 %v3007, %v3084
        %v3086 = vpop.f32.mrf.mxu0
        %v3087 = vadd.f32 %v3009, %v3086
        %3088 = vmatmul.bf16.gmra.mxu0 %v1042
        %v3089 = vpop.f32.mrf.mxu0
        %v3090 = vadd.f32 %v3012, %v3089
        %v3091 = vpop.f32.mrf.mxu0
        %v3092 = vadd.f32 %v3014, %v3091
        %3093 = vmatmul.bf16.gmra.mxu0 %v1048
        %v3094 = vpop.f32.mrf.mxu0
        %v3095 = vadd.f32 %v3017, %v3094
        %v3096 = vpop.f32.mrf.mxu0
        %v3097 = vadd.f32 %v3019, %v3096
        %3098 = vmatmul.bf16.gmra.mxu0 %v1053
        %v3099 = vpop.f32.mrf.mxu0
        %v3100 = vadd.f32 %v3022, %v3099
        %v3101 = vpop.f32.mrf.mxu0
        %v3102 = vadd.f32 %v3024, %v3101
        %3103 = vmatmul.bf16.gmra.mxu0 %v1058
        %v3104 = vpop.f32.mrf.mxu0
        %v3105 = vadd.f32 %v3027, %v3104
        %v3106 = vpop.f32.mrf.mxu0
        %3107 = vmatmul.bf16.gmra.mxu0 %v1064
        %v3108 = vpop.f32.mrf.mxu0
        %v3109 = vpop.f32.mrf.mxu0
        %3110 = vdwg.mxu0
        %3111 = vmatpush.bf16.msra.mxu0 %v1710
        %3112 = vmatpush.bf16.msra.mxu0 %v1708
        %3113 = vmatpush.bf16.msra.mxu0 %v1706
        %3114 = vmatpush.bf16.msra.mxu0 %v1704
        %3115 = vmatpush.bf16.msra.mxu0 %v1702
        %3116 = vmatpush.bf16.msra.mxu0 %v1700
        %3117 = vmatpush.bf16.msra.mxu0 %v1698
        %3118 = vmatpush.bf16.msra.mxu0 %v1696
        %3119 = vmatmul.bf16.gmra.mxu0 %v510
        %v3120 = vpop.f32.mrf.mxu0
        %v3121 = vpop.f32.mrf.mxu0
        %3122 = vmatmul.bf16.gmra.mxu0 %v992
        %v3123 = vpop.f32.mrf.mxu0
        %v3124 = vpop.f32.mrf.mxu0
        %v3125 = vadd.f32 %v3047, %v3124
        %3126 = vmatmul.bf16.gmra.mxu0 %v1001
        %v3127 = vpop.f32.mrf.mxu0
        %v3128 = vadd.f32 %v3050, %v3127
        %v3129 = vpop.f32.mrf.mxu0
        %v3130 = vadd.f32 %v3052, %v3129
        %3131 = vmatmul.bf16.gmra.mxu0 %v514
        %v3132 = vpop.f32.mrf.mxu0
        %v3133 = vadd.f32 %v3055, %v3132
        %v3134 = vpop.f32.mrf.mxu0
        %v3135 = vadd.f32 %v3057, %v3134
        %3136 = vmatmul.bf16.gmra.mxu0 %v1011
        %v3137 = vpop.f32.mrf.mxu0
        %v3138 = vadd.f32 %v3060, %v3137
        %v3139 = vpop.f32.mrf.mxu0
        %v3140 = vadd.f32 %v3062, %v3139
        %3141 = vmatmul.bf16.gmra.mxu0 %v1017
        %v3142 = vpop.f32.mrf.mxu0
        %v3143 = vadd.f32 %v3065, %v3142
        %v3144 = vpop.f32.mrf.mxu0
        %v3145 = vadd.f32 %v3067, %v3144
        %3146 = vmatmul.bf16.gmra.mxu0 %v518
        %v3147 = vpop.f32.mrf.mxu0
        %v3148 = vadd.f32 %v3070, %v3147
        %v3149 = vpop.f32.mrf.mxu0
        %v3150 = vadd.f32 %v3072, %v3149
        %3151 = vmatmul.bf16.gmra.mxu0 %v1027
        %v3152 = vpop.f32.mrf.mxu0
        %v3153 = vadd.f32 %v3075, %v3152
        %v3154 = vpop.f32.mrf.mxu0
        %v3155 = vadd.f32 %v3077, %v3154
        %3156 = vmatmul.bf16.gmra.mxu0 %v1033
        %v3157 = vpop.f32.mrf.mxu0
        %v3158 = vadd.f32 %v3080, %v3157
        %v3159 = vpop.f32.mrf.mxu0
        %v3160 = vadd.f32 %v3082, %v3159
        %3161 = vmatmul.bf16.gmra.mxu0 %v522
        %v3162 = vpop.f32.mrf.mxu0
        %v3163 = vadd.f32 %v3085, %v3162
        %v3164 = vpop.f32.mrf.mxu0
        %v3165 = vadd.f32 %v3087, %v3164
        %3166 = vmatmul.bf16.gmra.mxu0 %v1043
        %v3167 = vpop.f32.mrf.mxu0
        %v3168 = vadd.f32 %v3090, %v3167
        %v3169 = vpop.f32.mrf.mxu0
        %v3170 = vadd.f32 %v3092, %v3169
        %3171 = vmatmul.bf16.gmra.mxu0 %v1049
        %v3172 = vpop.f32.mrf.mxu0
        %v3173 = vadd.f32 %v3095, %v3172
        %v3174 = vpop.f32.mrf.mxu0
        %v3175 = vadd.f32 %v3097, %v3174
        %3176 = vmatmul.bf16.gmra.mxu0 %v716
        %v3177 = vpop.f32.mrf.mxu0
        %v3178 = vadd.f32 %v3100, %v3177
        %v3179 = vpop.f32.mrf.mxu0
        %v3180 = vadd.f32 %v3102, %v3179
        %3181 = vmatmul.bf16.gmra.mxu0 %v1059
        %v3182 = vpop.f32.mrf.mxu0
        %v3183 = vadd.f32 %v3105, %v3182
        %v3184 = vpop.f32.mrf.mxu0
        %3185 = vmatmul.bf16.gmra.mxu0 %v1065
        %v3186 = vpop.f32.mrf.mxu0
        %v3187 = vpop.f32.mrf.mxu0
        %3188 = vdwg.mxu0
        %3189 = vmatpush.bf16.msra.mxu0 %v1726
        %3190 = vmatpush.bf16.msra.mxu0 %v1724
        %3191 = vmatpush.bf16.msra.mxu0 %v1722
        %3192 = vmatpush.bf16.msra.mxu0 %v1720
        %3193 = vmatpush.bf16.msra.mxu0 %v1718
        %3194 = vmatpush.bf16.msra.mxu0 %v1716
        %3195 = vmatpush.bf16.msra.mxu0 %v1714
        %3196 = vmatpush.bf16.msra.mxu0 %v1712
        %3197 = vmatmul.bf16.gmra.mxu0 %v984
        %v3198 = vpop.f32.mrf.mxu0
        %v3199 = vpop.f32.mrf.mxu0
        %3200 = vmatmul.bf16.gmra.mxu0 %v993
        %v3201 = vpop.f32.mrf.mxu0
        %v3202 = vpop.f32.mrf.mxu0
        %v3203 = vadd.f32 %v3125, %v3202
        %3204 = vmatmul.bf16.gmra.mxu0 %v1002
        %v3205 = vpop.f32.mrf.mxu0
        %v3206 = vadd.f32 %v3128, %v3205
        %v3207 = vpop.f32.mrf.mxu0
        %v3208 = vadd.f32 %v3130, %v3207
        %3209 = vmatmul.bf16.gmra.mxu0 %v1006
        %v3210 = vpop.f32.mrf.mxu0
        %v3211 = vadd.f32 %v3133, %v3210
        %v3212 = vpop.f32.mrf.mxu0
        %v3213 = vadd.f32 %v3135, %v3212
        %3214 = vmatmul.bf16.gmra.mxu0 %v1012
        %v3215 = vpop.f32.mrf.mxu0
        %v3216 = vadd.f32 %v3138, %v3215
        %v3217 = vpop.f32.mrf.mxu0
        %v3218 = vadd.f32 %v3140, %v3217
        %3219 = vmatmul.bf16.gmra.mxu0 %v1018
        %v3220 = vpop.f32.mrf.mxu0
        %v3221 = vadd.f32 %v3143, %v3220
        %v3222 = vpop.f32.mrf.mxu0
        %v3223 = vadd.f32 %v3145, %v3222
        %3224 = vmatmul.bf16.gmra.mxu0 %v1022
        %v3225 = vpop.f32.mrf.mxu0
        %v3226 = vadd.f32 %v3148, %v3225
        %v3227 = vpop.f32.mrf.mxu0
        %v3228 = vadd.f32 %v3150, %v3227
        %3229 = vmatmul.bf16.gmra.mxu0 %v1028
        %v3230 = vpop.f32.mrf.mxu0
        %v3231 = vadd.f32 %v3153, %v3230
        %v3232 = vpop.f32.mrf.mxu0
        %v3233 = vadd.f32 %v3155, %v3232
        %3234 = vmatmul.bf16.gmra.mxu0 %v1034
        %v3235 = vpop.f32.mrf.mxu0
        %v3236 = vadd.f32 %v3158, %v3235
        %v3237 = vpop.f32.mrf.mxu0
        %v3238 = vadd.f32 %v3160, %v3237
        %3239 = vmatmul.bf16.gmra.mxu0 %v1038
        %v3240 = vpop.f32.mrf.mxu0
        %v3241 = vadd.f32 %v3163, %v3240
        %v3242 = vpop.f32.mrf.mxu0
        %v3243 = vadd.f32 %v3165, %v3242
        %3244 = vmatmul.bf16.gmra.mxu0 %v1044
        %v3245 = vpop.f32.mrf.mxu0
        %v3246 = vadd.f32 %v3168, %v3245
        %v3247 = vpop.f32.mrf.mxu0
        %v3248 = vadd.f32 %v3170, %v3247
        %3249 = vmatmul.bf16.gmra.mxu0 %v1050
        %v3250 = vpop.f32.mrf.mxu0
        %v3251 = vadd.f32 %v3173, %v3250
        %v3252 = vpop.f32.mrf.mxu0
        %v3253 = vadd.f32 %v3175, %v3252
        %3254 = vmatmul.bf16.gmra.mxu0 %v1054
        %v3255 = vpop.f32.mrf.mxu0
        %v3256 = vadd.f32 %v3178, %v3255
        %v3257 = vpop.f32.mrf.mxu0
        %v3258 = vadd.f32 %v3180, %v3257
        %3259 = vmatmul.bf16.gmra.mxu0 %v1060
        %v3260 = vpop.f32.mrf.mxu0
        %v3261 = vadd.f32 %v3183, %v3260
        %v3262 = vpop.f32.mrf.mxu0
        %3263 = vmatmul.bf16.gmra.mxu0 %v1066
        %v3264 = vpop.f32.mrf.mxu0
        %v3265 = vpop.f32.mrf.mxu0
        %3266 = vdwg.mxu0
        %3267 = vmatpush.bf16.msra.mxu0 %v1742
        %3268 = vmatpush.bf16.msra.mxu0 %v1740
        %3269 = vmatpush.bf16.msra.mxu0 %v1738
        %3270 = vmatpush.bf16.msra.mxu0 %v1736
        %3271 = vmatpush.bf16.msra.mxu0 %v1734
        %3272 = vmatpush.bf16.msra.mxu0 %v1732
        %3273 = vmatpush.bf16.msra.mxu0 %v1730
        %3274 = vmatpush.bf16.msra.mxu0 %v1728
        %3275 = vmatmul.bf16.gmra.mxu0 %v985
        %v3276 = vpop.f32.mrf.mxu0
        %v3277 = vpop.f32.mrf.mxu0
        %3278 = vmatmul.bf16.gmra.mxu0 %v994
        %v3279 = vpop.f32.mrf.mxu0
        %v3280 = vpop.f32.mrf.mxu0
        %v3281 = vadd.f32 %v3203, %v3280
        %3282 = vmatmul.bf16.gmra.mxu0 %v1003
        %v3283 = vpop.f32.mrf.mxu0
        %v3284 = vadd.f32 %v3206, %v3283
        %v3285 = vpop.f32.mrf.mxu0
        %v3286 = vadd.f32 %v3208, %v3285
        %3287 = vmatmul.bf16.gmra.mxu0 %v1007
        %v3288 = vpop.f32.mrf.mxu0
        %v3289 = vadd.f32 %v3211, %v3288
        %v3290 = vpop.f32.mrf.mxu0
        %v3291 = vadd.f32 %v3213, %v3290
        %3292 = vmatmul.bf16.gmra.mxu0 %v1013
        %v3293 = vpop.f32.mrf.mxu0
        %v3294 = vadd.f32 %v3216, %v3293
        %v3295 = vpop.f32.mrf.mxu0
        %v3296 = vadd.f32 %v3218, %v3295
        %3297 = vmatmul.bf16.gmra.mxu0 %v1019
        %v3298 = vpop.f32.mrf.mxu0
        %v3299 = vadd.f32 %v3221, %v3298
        %v3300 = vpop.f32.mrf.mxu0
        %v3301 = vadd.f32 %v3223, %v3300
        %3302 = vmatmul.bf16.gmra.mxu0 %v1023
        %v3303 = vpop.f32.mrf.mxu0
        %v3304 = vadd.f32 %v3226, %v3303
        %v3305 = vpop.f32.mrf.mxu0
        %v3306 = vadd.f32 %v3228, %v3305
        %3307 = vmatmul.bf16.gmra.mxu0 %v1029
        %v3308 = vpop.f32.mrf.mxu0
        %v3309 = vadd.f32 %v3231, %v3308
        %v3310 = vpop.f32.mrf.mxu0
        %v3311 = vadd.f32 %v3233, %v3310
        %3312 = vmatmul.bf16.gmra.mxu0 %v1035
        %v3313 = vpop.f32.mrf.mxu0
        %v3314 = vadd.f32 %v3236, %v3313
        %v3315 = vpop.f32.mrf.mxu0
        %v3316 = vadd.f32 %v3238, %v3315
        %3317 = vmatmul.bf16.gmra.mxu0 %v1039
        %v3318 = vpop.f32.mrf.mxu0
        %v3319 = vadd.f32 %v3241, %v3318
        %v3320 = vpop.f32.mrf.mxu0
        %v3321 = vadd.f32 %v3243, %v3320
        %3322 = vmatmul.bf16.gmra.mxu0 %v1045
        %v3323 = vpop.f32.mrf.mxu0
        %v3324 = vadd.f32 %v3246, %v3323
        %v3325 = vpop.f32.mrf.mxu0
        %v3326 = vadd.f32 %v3248, %v3325
        %3327 = vmatmul.bf16.gmra.mxu0 %v1051
        %v3328 = vpop.f32.mrf.mxu0
        %v3329 = vadd.f32 %v3251, %v3328
        %v3330 = vpop.f32.mrf.mxu0
        %v3331 = vadd.f32 %v3253, %v3330
        %3332 = vmatmul.bf16.gmra.mxu0 %v1055
        %v3333 = vpop.f32.mrf.mxu0
        %v3334 = vadd.f32 %v3256, %v3333
        %v3335 = vpop.f32.mrf.mxu0
        %v3336 = vadd.f32 %v3258, %v3335
        %3337 = vmatmul.bf16.gmra.mxu0 %v1061
        %v3338 = vpop.f32.mrf.mxu0
        %v3339 = vadd.f32 %v3261, %v3338
        %v3340 = vpop.f32.mrf.mxu0
        %3341 = vmatmul.bf16.gmra.mxu0 %v1067
        %v3342 = vpop.f32.mrf.mxu0
        %v3343 = vpop.f32.mrf.mxu0
        %3344 = vdwg.mxu0
        %v3345 = vld [vmem:[%s2] sm:$0x1]
        %v3347 = vperm.slane %v3345, 0
        %v3349 = vmul.f32 %v2569, %v3347
        %v3350 = vmul.f32 %v2571, %v3347
        %v3351 = vmul.f32 %v2574, %v3347
        %v3352 = vmul.f32 %v2576, %v3347
        %v3353 = vmul.f32 %v2579, %v3347
        %v3354 = vmul.f32 %v2581, %v3347
        %v3355 = vmul.f32 %v2584, %v3347
        %v3356 = vmul.f32 %v2586, %v3347
        %v3357 = vmul.f32 %v2589, %v3347
        %v3358 = vmul.f32 %v2591, %v3347
        %v3359 = vmul.f32 %v2594, %v3347
        %v3360 = vmul.f32 %v2596, %v3347
        %v3361 = vmul.f32 %v2599, %v3347
        %v3362 = vmul.f32 %v2601, %v3347
        %v3363 = vmul.f32 %v2604, %v3347
        %v3364 = vmul.f32 %v2606, %v3347
        %v3365 = vmul.f32 %v2609, %v3347
        %v3366 = vmul.f32 %v2611, %v3347
        %v3367 = vmul.f32 %v2614, %v3347
        %v3368 = vmul.f32 %v2616, %v3347
        %v3369 = vmul.f32 %v2619, %v3347
        %v3370 = vmul.f32 %v2621, %v3347
        %v3371 = vmul.f32 %v2624, %v3347
        %v3372 = vmul.f32 %v2626, %v3347
        %v3373 = vmul.f32 %v2629, %v3347
        %v3374 = vmul.f32 %v2631, %v3347
        %v3375 = vmul.f32 %v2634, %v3347
        %v3376 = vmul.f32 %v2636, %v3347
        %v3377 = vmul.f32 %v2639, %v3347
        %v3378 = vmul.f32 %v2641, %v3347
        %v3379 = vld [vmem:[%s3] sm:$0x1]
        %v3381 = vperm.slane %v3379, 0
        %v3383 = vadd.f32 %v3349, %v3381
        %v3384 = vadd.f32 %v3350, %v3381
        %v3385 = vadd.f32 %v3351, %v3381
        %v3386 = vadd.f32 %v3352, %v3381
        %v3387 = vadd.f32 %v3353, %v3381
        %v3388 = vadd.f32 %v3354, %v3381
        %v3389 = vadd.f32 %v3355, %v3381
        %v3390 = vadd.f32 %v3356, %v3381
        %v3391 = vadd.f32 %v3357, %v3381
        %v3392 = vadd.f32 %v3358, %v3381
        %v3393 = vadd.f32 %v3359, %v3381
        %v3394 = vadd.f32 %v3360, %v3381
        %v3395 = vadd.f32 %v3361, %v3381
        %v3396 = vadd.f32 %v3362, %v3381
        %v3397 = vadd.f32 %v3363, %v3381
        %v3398 = vadd.f32 %v3364, %v3381
        %v3399 = vadd.f32 %v3365, %v3381
        %v3400 = vadd.f32 %v3366, %v3381
        %v3401 = vadd.f32 %v3367, %v3381
        %v3402 = vadd.f32 %v3368, %v3381
        %v3403 = vadd.f32 %v3369, %v3381
        %v3404 = vadd.f32 %v3370, %v3381
        %v3405 = vadd.f32 %v3371, %v3381
        %v3406 = vadd.f32 %v3372, %v3381
        %v3407 = vadd.f32 %v3373, %v3381
        %v3408 = vadd.f32 %v3374, %v3381
        %v3409 = vadd.f32 %v3375, %v3381
        %v3410 = vadd.f32 %v3376, %v3381
        %v3411 = vadd.f32 %v3377, %v3381
        %v3412 = vadd.f32 %v3378, %v3381
        %v3413 = vmax.f32 %v3383, 0.0
        %v3414 = vmax.f32 %v3384, 0.0
        %v3415 = vmax.f32 %v3385, 0.0
        %v3416 = vmax.f32 %v3386, 0.0
        %v3417 = vmax.f32 %v3387, 0.0
        %v3418 = vmax.f32 %v3388, 0.0
        %v3419 = vmax.f32 %v3389, 0.0
        %v3420 = vmax.f32 %v3390, 0.0
        %v3421 = vmax.f32 %v3391, 0.0
        %v3422 = vmax.f32 %v3392, 0.0
        %v3423 = vmax.f32 %v3393, 0.0
        %v3424 = vmax.f32 %v3394, 0.0
        %v3425 = vmax.f32 %v3395, 0.0
        %v3426 = vmax.f32 %v3396, 0.0
        %v3427 = vmax.f32 %v3397, 0.0
        %v3428 = vmax.f32 %v3398, 0.0
        %v3429 = vmax.f32 %v3399, 0.0
        %v3430 = vmax.f32 %v3400, 0.0
        %v3431 = vmax.f32 %v3401, 0.0
        %v3432 = vmax.f32 %v3402, 0.0
        %v3433 = vmax.f32 %v3403, 0.0
        %v3434 = vmax.f32 %v3404, 0.0
        %v3435 = vmax.f32 %v3405, 0.0
        %v3436 = vmax.f32 %v3406, 0.0
        %v3437 = vmax.f32 %v3407, 0.0
        %v3438 = vmax.f32 %v3408, 0.0
        %v3439 = vmax.f32 %v3409, 0.0
        %v3440 = vmax.f32 %v3410, 0.0
        %v3441 = vmax.f32 %v3411, 0.0
        %v3442 = vmax.f32 %v3412, 0.0
        %s3443 = ssub.s32 %s377, 1
        %v3444 = vstv %s3443
        %v3445 = vadd.s32 %v3444, 1
        %v3446 = vadd.s32 %v3444, 2
        %v3447 = vadd.s32 %v3444, 3
        %v3448 = vadd.s32 %v3444, 4
        %v3449 = vadd.s32 %v3444, 5
        %v3450 = vadd.s32 %v3444, 6
        %v3451 = vadd.s32 %v3444, 7
        %v3452 = vadd.s32 %v3444, 8
        %v3453 = vadd.s32 %v3444, 9
        %v3454 = vlaneseq
        %v3455 = vshrl.u32 %v3454, 7
        %v3456 = vadd.s32 %v3455, 8
        %v3457 = vadd.s32 %v3455, 16
        %v3458 = vsub.s32 %v3455, 1
        %v3459 = vsub.s32 %v3456, 1
        %v3460 = vsub.s32 %v3457, 1
        %vm3461 = vcmp.ge.s32.totalorder %v3444, 0
        %vm3462 = vcmp.ge.s32.totalorder %v3445, 0
        %vm3463 = vcmp.ge.s32.totalorder %v3446, 0
        %vm3464 = vcmp.ge.s32.totalorder %v3447, 0
        %vm3465 = vcmp.ge.s32.totalorder %v3448, 0
        %vm3466 = vcmp.ge.s32.totalorder %v3449, 0
        %vm3467 = vcmp.ge.s32.totalorder %v3450, 0
        %vm3468 = vcmp.ge.s32.totalorder %v3451, 0
        %vm3469 = vcmp.ge.s32.totalorder %v3452, 0
        %vm3470 = vcmp.ge.s32.totalorder %v3453, 0
        %vm3471 = vcmp.lt.s32.totalorder %v3444, 16
        %vm3472 = vcmp.lt.s32.totalorder %v3445, 16
        %vm3473 = vcmp.lt.s32.totalorder %v3446, 16
        %vm3474 = vcmp.lt.s32.totalorder %v3447, 16
        %vm3475 = vcmp.lt.s32.totalorder %v3448, 16
        %vm3476 = vcmp.lt.s32.totalorder %v3449, 16
        %vm3477 = vcmp.lt.s32.totalorder %v3450, 16
        %vm3478 = vcmp.lt.s32.totalorder %v3451, 16
        %vm3479 = vcmp.lt.s32.totalorder %v3452, 16
        %vm3480 = vcmp.lt.s32.totalorder %v3453, 16
        %vm3481 = vmand %vm3461, %vm3471
        %vm3482 = vmand %vm3462, %vm3472
        %vm3483 = vmand %vm3463, %vm3473
        %vm3484 = vmand %vm3464, %vm3474
        %vm3485 = vmand %vm3465, %vm3475
        %vm3486 = vmand %vm3466, %vm3476
        %vm3487 = vmand %vm3467, %vm3477
        %vm3488 = vmand %vm3468, %vm3478
        %vm3489 = vmand %vm3469, %vm3479
        %vm3490 = vmand %vm3470, %vm3480
        %vm3491 = vcmp.ge.s32.totalorder %v3458, 0
        %vm3492 = vcmp.ge.s32.totalorder %v3459, 0
        %vm3493 = vcmp.ge.s32.totalorder %v3460, 0
        %vm3494 = vmand %vm3481, %vm3491
        %vm3495 = vmand %vm3481, %vm3492
        %vm3496 = vmand %vm3481, %vm3493
        %vm3497 = vmand %vm3482, %vm3491
        %vm3498 = vmand %vm3482, %vm3492
        %vm3499 = vmand %vm3482, %vm3493
        %vm3500 = vmand %vm3483, %vm3491
        %vm3501 = vmand %vm3483, %vm3492
        %vm3502 = vmand %vm3483, %vm3493
        %vm3503 = vmand %vm3484, %vm3491
        %vm3504 = vmand %vm3484, %vm3492
        %vm3505 = vmand %vm3484, %vm3493
        %vm3506 = vmand %vm3485, %vm3491
        %vm3507 = vmand %vm3485, %vm3492
        %vm3508 = vmand %vm3485, %vm3493
        %vm3509 = vmand %vm3486, %vm3491
        %vm3510 = vmand %vm3486, %vm3492
        %vm3511 = vmand %vm3486, %vm3493
        %vm3512 = vmand %vm3487, %vm3491
        %vm3513 = vmand %vm3487, %vm3492
        %vm3514 = vmand %vm3487, %vm3493
        %vm3515 = vmand %vm3488, %vm3491
        %vm3516 = vmand %vm3488, %vm3492
        %vm3517 = vmand %vm3488, %vm3493
        %vm3518 = vmand %vm3489, %vm3491
        %vm3519 = vmand %vm3489, %vm3492
        %vm3520 = vmand %vm3489, %vm3493
        %vm3521 = vmand %vm3490, %vm3491
        %vm3522 = vmand %vm3490, %vm3492
        %vm3523 = vmand %vm3490, %vm3493
        %vm3524 = vcmp.lt.s32.totalorder %v3458, 16
        %vm3525 = vcmp.lt.s32.totalorder %v3459, 16
        %vm3526 = vcmp.lt.s32.totalorder %v3460, 16
        %vm3527 = vmand %vm3494, %vm3524
        %vm3528 = vmand %vm3495, %vm3525
        %vm3529 = vmand %vm3496, %vm3526
        %vm3530 = vmand %vm3497, %vm3524
        %vm3531 = vmand %vm3498, %vm3525
        %vm3532 = vmand %vm3499, %vm3526
        %vm3533 = vmand %vm3500, %vm3524
        %vm3534 = vmand %vm3501, %vm3525
        %vm3535 = vmand %vm3502, %vm3526
        %vm3536 = vmand %vm3503, %vm3524
        %vm3537 = vmand %vm3504, %vm3525
        %vm3538 = vmand %vm3505, %vm3526
        %vm3539 = vmand %vm3506, %vm3524
        %vm3540 = vmand %vm3507, %vm3525
        %vm3541 = vmand %vm3508, %vm3526
        %vm3542 = vmand %vm3509, %vm3524
        %vm3543 = vmand %vm3510, %vm3525
        %vm3544 = vmand %vm3511, %vm3526
        %vm3545 = vmand %vm3512, %vm3524
        %vm3546 = vmand %vm3513, %vm3525
        %vm3547 = vmand %vm3514, %vm3526
        %vm3548 = vmand %vm3515, %vm3524
        %vm3549 = vmand %vm3516, %vm3525
        %vm3550 = vmand %vm3517, %vm3526
        %vm3551 = vmand %vm3518, %vm3524
        %vm3552 = vmand %vm3519, %vm3525
        %vm3553 = vmand %vm3520, %vm3526
        %vm3554 = vmand %vm3521, %vm3524
        %vm3555 = vmand %vm3522, %vm3525
        %vm3556 = vmand %vm3523, %vm3526
        %v3557 = vsel %vm3527, 1, 0
        %v3558 = vsel %vm3528, 1, 0
        %v3559 = vsel %vm3529, 1, 0
        %v3560 = vsel %vm3530, 1, 0
        %v3561 = vsel %vm3531, 1, 0
        %v3562 = vsel %vm3532, 1, 0
        %v3563 = vsel %vm3533, 1, 0
        %v3564 = vsel %vm3534, 1, 0
        %v3565 = vsel %vm3535, 1, 0
        %v3566 = vsel %vm3536, 1, 0
        %v3567 = vsel %vm3537, 1, 0
        %v3568 = vsel %vm3538, 1, 0
        %v3569 = vsel %vm3539, 1, 0
        %v3570 = vsel %vm3540, 1, 0
        %v3571 = vsel %vm3541, 1, 0
        %v3572 = vsel %vm3542, 1, 0
        %v3573 = vsel %vm3543, 1, 0
        %v3574 = vsel %vm3544, 1, 0
        %v3575 = vsel %vm3545, 1, 0
        %v3576 = vsel %vm3546, 1, 0
        %v3577 = vsel %vm3547, 1, 0
        %v3578 = vsel %vm3548, 1, 0
        %v3579 = vsel %vm3549, 1, 0
        %v3580 = vsel %vm3550, 1, 0
        %v3581 = vsel %vm3551, 1, 0
        %v3582 = vsel %vm3552, 1, 0
        %v3583 = vsel %vm3553, 1, 0
        %v3584 = vsel %vm3554, 1, 0
        %v3585 = vsel %vm3555, 1, 0
        %v3586 = vsel %vm3556, 1, 0
        %vm3587 = vcmp.eq.s32.totalorder %v3557, 1
        %vm3588 = vcmp.eq.s32.totalorder %v3558, 1
        %vm3589 = vcmp.eq.s32.totalorder %v3559, 1
        %vm3590 = vcmp.eq.s32.totalorder %v3560, 1
        %vm3591 = vcmp.eq.s32.totalorder %v3561, 1
        %vm3592 = vcmp.eq.s32.totalorder %v3562, 1
        %vm3593 = vcmp.eq.s32.totalorder %v3563, 1
        %vm3594 = vcmp.eq.s32.totalorder %v3564, 1
        %vm3595 = vcmp.eq.s32.totalorder %v3565, 1
        %vm3596 = vcmp.eq.s32.totalorder %v3566, 1
        %vm3597 = vcmp.eq.s32.totalorder %v3567, 1
        %vm3598 = vcmp.eq.s32.totalorder %v3568, 1
        %vm3599 = vcmp.eq.s32.totalorder %v3569, 1
        %vm3600 = vcmp.eq.s32.totalorder %v3570, 1
        %vm3601 = vcmp.eq.s32.totalorder %v3571, 1
        %vm3602 = vcmp.eq.s32.totalorder %v3572, 1
        %vm3603 = vcmp.eq.s32.totalorder %v3573, 1
        %vm3604 = vcmp.eq.s32.totalorder %v3574, 1
        %vm3605 = vcmp.eq.s32.totalorder %v3575, 1
        %vm3606 = vcmp.eq.s32.totalorder %v3576, 1
        %vm3607 = vcmp.eq.s32.totalorder %v3577, 1
        %vm3608 = vcmp.eq.s32.totalorder %v3578, 1
        %vm3609 = vcmp.eq.s32.totalorder %v3579, 1
        %vm3610 = vcmp.eq.s32.totalorder %v3580, 1
        %vm3611 = vcmp.eq.s32.totalorder %v3581, 1
        %vm3612 = vcmp.eq.s32.totalorder %v3582, 1
        %vm3613 = vcmp.eq.s32.totalorder %v3583, 1
        %vm3614 = vcmp.eq.s32.totalorder %v3584, 1
        %vm3615 = vcmp.eq.s32.totalorder %v3585, 1
        %vm3616 = vcmp.eq.s32.totalorder %v3586, 1
        %v3617 = vsel %vm3587, %v3413, 0.0
        %v3618 = vsel %vm3588, %v3414, 0.0
        %v3619 = vsel %vm3589, %v3415, 0.0
        %v3620 = vsel %vm3590, %v3416, 0.0
        %v3621 = vsel %vm3591, %v3417, 0.0
        %v3622 = vsel %vm3592, %v3418, 0.0
        %v3623 = vsel %vm3593, %v3419, 0.0
        %v3624 = vsel %vm3594, %v3420, 0.0
        %v3625 = vsel %vm3595, %v3421, 0.0
        %v3626 = vsel %vm3596, %v3422, 0.0
        %v3627 = vsel %vm3597, %v3423, 0.0
        %v3628 = vsel %vm3598, %v3424, 0.0
        %v3629 = vsel %vm3599, %v3425, 0.0
        %v3630 = vsel %vm3600, %v3426, 0.0
        %v3631 = vsel %vm3601, %v3427, 0.0
        %v3632 = vsel %vm3602, %v3428, 0.0
        %v3633 = vsel %vm3603, %v3429, 0.0
        %v3634 = vsel %vm3604, %v3430, 0.0
        %v3635 = vsel %vm3605, %v3431, 0.0
        %v3636 = vsel %vm3606, %v3432, 0.0
        %v3637 = vsel %vm3607, %v3433, 0.0
        %v3638 = vsel %vm3608, %v3434, 0.0
        %v3639 = vsel %vm3609, %v3435, 0.0
        %v3640 = vsel %vm3610, %v3436, 0.0
        %v3641 = vsel %vm3611, %v3437, 0.0
        %v3642 = vsel %vm3612, %v3438, 0.0
        %v3643 = vsel %vm3613, %v3439, 0.0
        %v3644 = vsel %vm3614, %v3440, 0.0
        %v3645 = vsel %vm3615, %v3441, 0.0
        %v3646 = vsel %vm3616, %v3442, 0.0
        %v3647 = vpack.c.bf16 %v3617, %v3617
        %v3648 = vpack.c.bf16 %v3618, %v3618
        %v3649 = vpack.c.bf16 %v3619, %v3619
        %v3650 = vpack.c.bf16 %v3620, %v3620
        %v3651 = vpack.c.bf16 %v3621, %v3621
        %v3652 = vpack.c.bf16 %v3622, %v3622
        %v3653 = vpack.c.bf16 %v3623, %v3623
        %v3654 = vpack.c.bf16 %v3624, %v3624
        %v3655 = vpack.c.bf16 %v3625, %v3625
        %v3656 = vpack.c.bf16 %v3626, %v3626
        %v3657 = vpack.c.bf16 %v3627, %v3627
        %v3658 = vpack.c.bf16 %v3628, %v3628
        %v3659 = vpack.c.bf16 %v3629, %v3629
        %v3660 = vpack.c.bf16 %v3630, %v3630
        %v3661 = vpack.c.bf16 %v3631, %v3631
        %v3662 = vpack.c.bf16 %v3632, %v3632
        %v3663 = vpack.c.bf16 %v3633, %v3633
        %v3664 = vpack.c.bf16 %v3634, %v3634
        %v3665 = vpack.c.bf16 %v3635, %v3635
        %v3666 = vpack.c.bf16 %v3636, %v3636
        %v3667 = vpack.c.bf16 %v3637, %v3637
        %v3668 = vpack.c.bf16 %v3638, %v3638
        %v3669 = vpack.c.bf16 %v3639, %v3639
        %v3670 = vpack.c.bf16 %v3640, %v3640
        %v3671 = vpack.c.bf16 %v3641, %v3641
        %v3672 = vpack.c.bf16 %v3642, %v3642
        %v3673 = vpack.c.bf16 %v3643, %v3643
        %v3674 = vpack.c.bf16 %v3644, %v3644
        %v3675 = vpack.c.bf16 %v3645, %v3645
        %v3676 = vpack.c.bf16 %v3646, %v3646
        %v3693 = vunpack.c.l.b16 %v3647
        %v3694 = vunpack.c.l.b16 %v3648
        %v3695 = vunpack.c.l.b16 %v3650
        %v3696 = vunpack.c.l.b16 %v3651
        %v3697 = vunpack.c.l.b16 %v3653
        %v3698 = vunpack.c.l.b16 %v3654
        %v3699 = vunpack.c.l.b16 %v3656
        %v3700 = vunpack.c.l.b16 %v3657
        %v3701 = vunpack.c.l.b16 %v3659
        %v3702 = vunpack.c.l.b16 %v3660
        %v3703 = vunpack.c.l.b16 %v3662
        %v3704 = vunpack.c.l.b16 %v3663
        %v3705 = vunpack.c.l.b16 %v3665
        %v3706 = vunpack.c.l.b16 %v3666
        %v3707 = vunpack.c.l.b16 %v3668
        %v3708 = vunpack.c.l.b16 %v3669
        %v3709 = vpack.c.b16 %v3694, %v3693
        %v3710 = vpack.c.b16 %v3696, %v3695
        %v3711 = vpack.c.b16 %v3698, %v3697
        %v3712 = vpack.c.b16 %v3700, %v3699
        %v3713 = vpack.c.b16 %v3702, %v3701
        %v3714 = vpack.c.b16 %v3704, %v3703
        %v3715 = vpack.c.b16 %v3706, %v3705
        %v3716 = vpack.c.b16 %v3708, %v3707
        %v3733 = vunpack.c.l.b16 %v3649
        %v3734 = vunpack.c.l.b16 %v3652
        %v3735 = vunpack.c.l.b16 %v3655
        %v3736 = vunpack.c.l.b16 %v3658
        %v3737 = vunpack.c.l.b16 %v3661
        %v3738 = vunpack.c.l.b16 %v3664
        %v3739 = vunpack.c.l.b16 %v3667
        %v3740 = vunpack.c.l.b16 %v3670
        %v3741 = vpack.c.b16 %v3733, %v3733
        %v3742 = vpack.c.b16 %v3734, %v3734
        %v3743 = vpack.c.b16 %v3735, %v3735
        %v3744 = vpack.c.b16 %v3736, %v3736
        %v3745 = vpack.c.b16 %v3737, %v3737
        %v3746 = vpack.c.b16 %v3738, %v3738
        %v3747 = vpack.c.b16 %v3739, %v3739
        %v3748 = vpack.c.b16 %v3740, %v3740
        %v3750 = vshrl.u32 %v3709, 16
        %v3752 = vshll.u32 %v3709, 16
        %v3754 = vrot.slane %v3752, 1
        %v3755 = vor.u32 %v3750, %v3754
        %v3757 = vshll.u32 %v3741, 16
        %v3759 = vrot.slane %v3757, 1
        %v3760 = vsel %vm526, %v3755, %v3759
        %v3762 = vshrl.u32 %v3710, 16
        %v3764 = vshll.u32 %v3710, 16
        %v3766 = vrot.slane %v3764, 1
        %v3767 = vor.u32 %v3762, %v3766
        %v3769 = vshll.u32 %v3742, 16
        %v3771 = vrot.slane %v3769, 1
        %v3772 = vsel %vm526, %v3767, %v3771
        %v3774 = vshrl.u32 %v3711, 16
        %v3776 = vshll.u32 %v3711, 16
        %v3778 = vrot.slane %v3776, 1
        %v3779 = vor.u32 %v3774, %v3778
        %v3781 = vshll.u32 %v3743, 16
        %v3783 = vrot.slane %v3781, 1
        %v3784 = vsel %vm526, %v3779, %v3783
        %v3786 = vshrl.u32 %v3712, 16
        %v3788 = vshll.u32 %v3712, 16
        %v3790 = vrot.slane %v3788, 1
        %v3791 = vor.u32 %v3786, %v3790
        %v3793 = vshll.u32 %v3744, 16
        %v3795 = vrot.slane %v3793, 1
        %v3796 = vsel %vm526, %v3791, %v3795
        %v3798 = vshrl.u32 %v3713, 16
        %v3800 = vshll.u32 %v3713, 16
        %v3802 = vrot.slane %v3800, 1
        %v3803 = vor.u32 %v3798, %v3802
        %v3805 = vshll.u32 %v3745, 16
        %v3807 = vrot.slane %v3805, 1
        %v3808 = vsel %vm526, %v3803, %v3807
        %v3810 = vshrl.u32 %v3714, 16
        %v3812 = vshll.u32 %v3714, 16
        %v3814 = vrot.slane %v3812, 1
        %v3815 = vor.u32 %v3810, %v3814
        %v3817 = vshll.u32 %v3746, 16
        %v3819 = vrot.slane %v3817, 1
        %v3820 = vsel %vm526, %v3815, %v3819
        %v3822 = vshrl.u32 %v3715, 16
        %v3824 = vshll.u32 %v3715, 16
        %v3826 = vrot.slane %v3824, 1
        %v3827 = vor.u32 %v3822, %v3826
        %v3829 = vshll.u32 %v3747, 16
        %v3831 = vrot.slane %v3829, 1
        %v3832 = vsel %vm526, %v3827, %v3831
        %v3834 = vshrl.u32 %v3716, 16
        %v3836 = vshll.u32 %v3716, 16
        %v3838 = vrot.slane %v3836, 1
        %v3839 = vor.u32 %v3834, %v3838
        %v3841 = vshll.u32 %v3748, 16
        %v3843 = vrot.slane %v3841, 1
        %v3844 = vsel %vm526, %v3839, %v3843
        %v3853 = vrot.slane %v3709, 1
        %v3854 = vrot.slane %v3741, 1
        %v3855 = vsel %vm677, %v3853, %v3854
        %v3856 = vrot.slane %v3710, 1
        %v3857 = vrot.slane %v3742, 1
        %v3858 = vsel %vm677, %v3856, %v3857
        %v3859 = vrot.slane %v3711, 1
        %v3860 = vrot.slane %v3743, 1
        %v3861 = vsel %vm677, %v3859, %v3860
        %v3862 = vrot.slane %v3712, 1
        %v3863 = vrot.slane %v3744, 1
        %v3864 = vsel %vm677, %v3862, %v3863
        %v3865 = vrot.slane %v3713, 1
        %v3866 = vrot.slane %v3745, 1
        %v3867 = vsel %vm677, %v3865, %v3866
        %v3868 = vrot.slane %v3714, 1
        %v3869 = vrot.slane %v3746, 1
        %v3870 = vsel %vm677, %v3868, %v3869
        %v3871 = vrot.slane %v3715, 1
        %v3872 = vrot.slane %v3747, 1
        %v3873 = vsel %vm677, %v3871, %v3872
        %v3874 = vrot.slane %v3716, 1
        %v3875 = vrot.slane %v3748, 1
        %v3876 = vsel %vm677, %v3874, %v3875
        %v3887 = vunpack.c.l.b16 %v3671
        %v3888 = vunpack.c.l.b16 %v3672
        %v3889 = vpack.c.b16 %v3888, %v3887
        %v3892 = vunpack.c.l.b16 %v3673
        %v3893 = vpack.c.b16 %v3892, %v3892
        %v3895 = vshrl.u32 %v3889, 16
        %v3897 = vshll.u32 %v3889, 16
        %v3899 = vrot.slane %v3897, 1
        %v3900 = vor.u32 %v3895, %v3899
        %v3902 = vshll.u32 %v3893, 16
        %v3904 = vrot.slane %v3902, 1
        %v3905 = vsel %vm526, %v3900, %v3904
        %v3907 = vrot.slane %v3889, 1
        %v3908 = vrot.slane %v3893, 1
        %v3909 = vsel %vm677, %v3907, %v3908
        %v3913 = vunpack.c.l.b16 %v3674
        %v3914 = vunpack.c.l.b16 %v3675
        %v3915 = vpack.c.b16 %v3914, %v3913
        %v3918 = vunpack.c.l.b16 %v3676
        %v3919 = vpack.c.b16 %v3918, %v3918
        %v3921 = vshrl.u32 %v3915, 16
        %v3923 = vshll.u32 %v3915, 16
        %v3925 = vrot.slane %v3923, 1
        %v3926 = vor.u32 %v3921, %v3925
        %v3928 = vshll.u32 %v3919, 16
        %v3930 = vrot.slane %v3928, 1
        %v3931 = vsel %vm526, %v3926, %v3930
        %v3933 = vrot.slane %v3915, 1
        %v3934 = vrot.slane %v3919, 1
        %v3935 = vsel %vm677, %v3933, %v3934
        %v3937 = vld [vmem:[#allocation2] sm:$0xf]
        %v3938 = vld [vmem:[#allocation2 + $0x4] sm:$0xf]
        %v3939 = vld [vmem:[#allocation2 + $0x8] sm:$0xf]
        %v3940 = vld [vmem:[#allocation2 + $0xc] sm:$0xf]
        %v3941 = vld [vmem:[#allocation2 + $0x10] sm:$0xf]
        %v3942 = vld [vmem:[#allocation2 + $0x14] sm:$0xf]
        %v3943 = vld [vmem:[#allocation2 + $0x18] sm:$0xf]
        %v3944 = vld [vmem:[#allocation2 + $0x1c] sm:$0xf]
        %v3945 = vld [vmem:[#allocation2 + $0x20] sm:$0xf]
        %v3946 = vld [vmem:[#allocation2 + $0x24] sm:$0xf]
        %v3947 = vld [vmem:[#allocation2 + $0x28] sm:$0xf]
        %v3948 = vld [vmem:[#allocation2 + $0x2c] sm:$0xf]
        %v3949 = vld [vmem:[#allocation2 + $0x30] sm:$0xf]
        %v3950 = vld [vmem:[#allocation2 + $0x34] sm:$0xf]
        %v3951 = vld [vmem:[#allocation2 + $0x38] sm:$0xf]
        %v3952 = vld [vmem:[#allocation2 + $0x3c] sm:$0xf]
        %v3953 = vld [vmem:[#allocation2 + $0x40] sm:$0xf]
        %v3954 = vld [vmem:[#allocation2 + $0x44] sm:$0xf]
        %v3955 = vld [vmem:[#allocation2 + $0x48] sm:$0xf]
        %v3956 = vld [vmem:[#allocation2 + $0x4c] sm:$0xf]
        %v3957 = vld [vmem:[#allocation2 + $0x50] sm:$0xf]
        %v3958 = vld [vmem:[#allocation2 + $0x54] sm:$0xf]
        %v3959 = vld [vmem:[#allocation2 + $0x58] sm:$0xf]
        %v3960 = vld [vmem:[#allocation2 + $0x5c] sm:$0xf]
        %v3961 = vld [vmem:[#allocation2 + $0x60] sm:$0xf]
        %v3962 = vld [vmem:[#allocation2 + $0x64] sm:$0xf]
        %v3963 = vld [vmem:[#allocation2 + $0x68] sm:$0xf]
        %v3964 = vld [vmem:[#allocation2 + $0x6c] sm:$0xf]
        %v3965 = vld [vmem:[#allocation2 + $0x70] sm:$0xf]
        %v3966 = vld [vmem:[#allocation2 + $0x74] sm:$0xf]
        %v3967 = vld [vmem:[#allocation2 + $0x78] sm:$0xf]
        %v3968 = vld [vmem:[#allocation2 + $0x7c] sm:$0xf]
        %v3969 = vld [vmem:[#allocation2 + $0x80] sm:$0xf]
        %v3970 = vld [vmem:[#allocation2 + $0x84] sm:$0xf]
        %v3971 = vld [vmem:[#allocation2 + $0x88] sm:$0xf]
        %v3972 = vld [vmem:[#allocation2 + $0x8c] sm:$0xf]
        %v3973 = vld [vmem:[#allocation2 + $0x90] sm:$0xf]
        %v3974 = vld [vmem:[#allocation2 + $0x94] sm:$0xf]
        %v3975 = vld [vmem:[#allocation2 + $0x98] sm:$0xf]
        %v3976 = vld [vmem:[#allocation2 + $0x9c] sm:$0xf]
        %v3977 = vld [vmem:[#allocation2 + $0xa0] sm:$0xf]
        %v3978 = vld [vmem:[#allocation2 + $0xa4] sm:$0xf]
        %v3979 = vld [vmem:[#allocation2 + $0xa8] sm:$0xf]
        %v3980 = vld [vmem:[#allocation2 + $0xac] sm:$0xf]
        %v3981 = vld [vmem:[#allocation2 + $0xb0] sm:$0xf]
        %v3982 = vld [vmem:[#allocation2 + $0xb4] sm:$0xf]
        %v3983 = vld [vmem:[#allocation2 + $0xb8] sm:$0xf]
        %v3984 = vld [vmem:[#allocation2 + $0xbc] sm:$0xf]
        %v3985 = vld [vmem:[#allocation2 + $0xc0] sm:$0xf]
        %v3986 = vld [vmem:[#allocation2 + $0xc4] sm:$0xf]
        %v3987 = vld [vmem:[#allocation2 + $0xc8] sm:$0xf]
        %v3988 = vld [vmem:[#allocation2 + $0xcc] sm:$0xf]
        %v3989 = vld [vmem:[#allocation2 + $0xd0] sm:$0xf]
        %v3990 = vld [vmem:[#allocation2 + $0xd4] sm:$0xf]
        %v3991 = vld [vmem:[#allocation2 + $0xd8] sm:$0xf]
        %v3992 = vld [vmem:[#allocation2 + $0xdc] sm:$0xf]
        %v3993 = vld [vmem:[#allocation2 + $0xe0] sm:$0xf]
        %v3994 = vld [vmem:[#allocation2 + $0xe4] sm:$0xf]
        %v3995 = vld [vmem:[#allocation2 + $0xe8] sm:$0xf]
        %v3996 = vld [vmem:[#allocation2 + $0xec] sm:$0xf]
        %v3997 = vld [vmem:[#allocation2 + $0xf0] sm:$0xf]
        %v3998 = vld [vmem:[#allocation2 + $0xf4] sm:$0xf]
        %v3999 = vld [vmem:[#allocation2 + $0xf8] sm:$0xf]
        %v4000 = vld [vmem:[#allocation2 + $0xfc] sm:$0xf]
        %v4001 = vld [vmem:[#allocation2 + $0x100] sm:$0xf]
        %v4002 = vld [vmem:[#allocation2 + $0x104] sm:$0xf]
        %v4003 = vld [vmem:[#allocation2 + $0x108] sm:$0xf]
        %v4004 = vld [vmem:[#allocation2 + $0x10c] sm:$0xf]
        %v4005 = vld [vmem:[#allocation2 + $0x110] sm:$0xf]
        %v4006 = vld [vmem:[#allocation2 + $0x114] sm:$0xf]
        %v4007 = vld [vmem:[#allocation2 + $0x118] sm:$0xf]
        %v4008 = vld [vmem:[#allocation2 + $0x11c] sm:$0xf]
        %v4009 = vld [vmem:[#allocation2 + $0x120] sm:$0xf]
        %v4010 = vld [vmem:[#allocation2 + $0x124] sm:$0xf]
        %v4011 = vld [vmem:[#allocation2 + $0x128] sm:$0xf]
        %v4012 = vld [vmem:[#allocation2 + $0x12c] sm:$0xf]
        %v4013 = vld [vmem:[#allocation2 + $0x130] sm:$0xf]
        %v4014 = vld [vmem:[#allocation2 + $0x134] sm:$0xf]
        %v4015 = vld [vmem:[#allocation2 + $0x138] sm:$0xf]
        %v4016 = vld [vmem:[#allocation2 + $0x13c] sm:$0xf]
        %v4017 = vld [vmem:[#allocation2 + $0x140] sm:$0xf]
        %v4018 = vld [vmem:[#allocation2 + $0x144] sm:$0xf]
        %v4019 = vld [vmem:[#allocation2 + $0x148] sm:$0xf]
        %v4020 = vld [vmem:[#allocation2 + $0x14c] sm:$0xf]
        %v4021 = vld [vmem:[#allocation2 + $0x150] sm:$0xf]
        %v4022 = vld [vmem:[#allocation2 + $0x154] sm:$0xf]
        %v4023 = vld [vmem:[#allocation2 + $0x158] sm:$0xf]
        %v4024 = vld [vmem:[#allocation2 + $0x15c] sm:$0xf]
        %v4025 = vld [vmem:[#allocation2 + $0x160] sm:$0xf]
        %v4026 = vld [vmem:[#allocation2 + $0x164] sm:$0xf]
        %v4027 = vld [vmem:[#allocation2 + $0x168] sm:$0xf]
        %v4028 = vld [vmem:[#allocation2 + $0x16c] sm:$0xf]
        %v4029 = vld [vmem:[#allocation2 + $0x170] sm:$0xf]
        %v4030 = vld [vmem:[#allocation2 + $0x174] sm:$0xf]
        %v4031 = vld [vmem:[#allocation2 + $0x178] sm:$0xf]
        %v4032 = vld [vmem:[#allocation2 + $0x17c] sm:$0xf]
        %v4033 = vld [vmem:[#allocation2 + $0x180] sm:$0xf]
        %v4034 = vld [vmem:[#allocation2 + $0x184] sm:$0xf]
        %v4035 = vld [vmem:[#allocation2 + $0x188] sm:$0xf]
        %v4036 = vld [vmem:[#allocation2 + $0x18c] sm:$0xf]
        %v4037 = vld [vmem:[#allocation2 + $0x190] sm:$0xf]
        %v4038 = vld [vmem:[#allocation2 + $0x194] sm:$0xf]
        %v4039 = vld [vmem:[#allocation2 + $0x198] sm:$0xf]
        %v4040 = vld [vmem:[#allocation2 + $0x19c] sm:$0xf]
        %v4041 = vld [vmem:[#allocation2 + $0x1a0] sm:$0xf]
        %v4042 = vld [vmem:[#allocation2 + $0x1a4] sm:$0xf]
        %v4043 = vld [vmem:[#allocation2 + $0x1a8] sm:$0xf]
        %v4044 = vld [vmem:[#allocation2 + $0x1ac] sm:$0xf]
        %v4045 = vld [vmem:[#allocation2 + $0x1b0] sm:$0xf]
        %v4046 = vld [vmem:[#allocation2 + $0x1b4] sm:$0xf]
        %v4047 = vld [vmem:[#allocation2 + $0x1b8] sm:$0xf]
        %v4048 = vld [vmem:[#allocation2 + $0x1bc] sm:$0xf]
        %v4049 = vld [vmem:[#allocation2 + $0x1c0] sm:$0xf]
        %v4050 = vld [vmem:[#allocation2 + $0x1c4] sm:$0xf]
        %v4051 = vld [vmem:[#allocation2 + $0x1c8] sm:$0xf]
        %v4052 = vld [vmem:[#allocation2 + $0x1cc] sm:$0xf]
        %v4053 = vld [vmem:[#allocation2 + $0x1d0] sm:$0xf]
        %v4054 = vld [vmem:[#allocation2 + $0x1d4] sm:$0xf]
        %v4055 = vld [vmem:[#allocation2 + $0x1d8] sm:$0xf]
        %v4056 = vld [vmem:[#allocation2 + $0x1dc] sm:$0xf]
        %v4057 = vld [vmem:[#allocation2 + $0x1e0] sm:$0xf]
        %v4058 = vld [vmem:[#allocation2 + $0x1e4] sm:$0xf]
        %v4059 = vld [vmem:[#allocation2 + $0x1e8] sm:$0xf]
        %v4060 = vld [vmem:[#allocation2 + $0x1ec] sm:$0xf]
        %v4061 = vld [vmem:[#allocation2 + $0x1f0] sm:$0xf]
        %v4062 = vld [vmem:[#allocation2 + $0x1f4] sm:$0xf]
        %v4063 = vld [vmem:[#allocation2 + $0x1f8] sm:$0xf]
        %v4064 = vld [vmem:[#allocation2 + $0x1fc] sm:$0xf]
        %v4065 = vld [vmem:[#allocation2 + $0x200] sm:$0xf]
        %v4066 = vld [vmem:[#allocation2 + $0x204] sm:$0xf]
        %v4067 = vld [vmem:[#allocation2 + $0x208] sm:$0xf]
        %v4068 = vld [vmem:[#allocation2 + $0x20c] sm:$0xf]
        %v4069 = vld [vmem:[#allocation2 + $0x210] sm:$0xf]
        %v4070 = vld [vmem:[#allocation2 + $0x214] sm:$0xf]
        %v4071 = vld [vmem:[#allocation2 + $0x218] sm:$0xf]
        %v4072 = vld [vmem:[#allocation2 + $0x21c] sm:$0xf]
        %v4073 = vld [vmem:[#allocation2 + $0x220] sm:$0xf]
        %v4074 = vld [vmem:[#allocation2 + $0x224] sm:$0xf]
        %v4075 = vld [vmem:[#allocation2 + $0x228] sm:$0xf]
        %v4076 = vld [vmem:[#allocation2 + $0x22c] sm:$0xf]
        %v4077 = vld [vmem:[#allocation2 + $0x230] sm:$0xf]
        %v4078 = vld [vmem:[#allocation2 + $0x234] sm:$0xf]
        %v4079 = vld [vmem:[#allocation2 + $0x238] sm:$0xf]
        %v4080 = vld [vmem:[#allocation2 + $0x23c] sm:$0xf]
        %v4225 = vunpack.c.l.b16 %v3937
        %v4226 = vunpack.c.l.b16 %v3938
        %v4227 = vunpack.c.l.b16 %v3939
        %v4228 = vunpack.c.l.b16 %v3940
        %v4229 = vunpack.c.l.b16 %v3941
        %v4230 = vunpack.c.l.b16 %v3942
        %v4231 = vunpack.c.l.b16 %v3943
        %v4232 = vunpack.c.l.b16 %v3944
        %v4233 = vunpack.c.l.b16 %v3945
        %v4234 = vunpack.c.l.b16 %v3946
        %v4235 = vunpack.c.l.b16 %v3947
        %v4236 = vunpack.c.l.b16 %v3948
        %v4237 = vunpack.c.l.b16 %v3949
        %v4238 = vunpack.c.l.b16 %v3950
        %v4239 = vunpack.c.l.b16 %v3951
        %v4240 = vunpack.c.l.b16 %v3952
        %v4241 = vunpack.c.l.b16 %v3953
        %v4242 = vunpack.c.l.b16 %v3954
        %v4243 = vunpack.c.l.b16 %v3955
        %v4244 = vunpack.c.l.b16 %v3956
        %v4245 = vunpack.c.l.b16 %v3957
        %v4246 = vunpack.c.l.b16 %v3958
        %v4247 = vunpack.c.l.b16 %v3959
        %v4248 = vunpack.c.l.b16 %v3960
        %v4249 = vunpack.c.l.b16 %v3961
        %v4250 = vunpack.c.l.b16 %v3962
        %v4251 = vunpack.c.l.b16 %v3963
        %v4252 = vunpack.c.l.b16 %v3964
        %v4253 = vunpack.c.l.b16 %v3965
        %v4254 = vunpack.c.l.b16 %v3966
        %v4255 = vunpack.c.l.b16 %v3967
        %v4256 = vunpack.c.l.b16 %v3968
        %v4257 = vunpack.c.l.b16 %v3969
        %v4258 = vunpack.c.l.b16 %v3970
        %v4259 = vunpack.c.l.b16 %v3971
        %v4260 = vunpack.c.l.b16 %v3972
        %v4261 = vunpack.c.l.b16 %v3973
        %v4262 = vunpack.c.l.b16 %v3974
        %v4263 = vunpack.c.l.b16 %v3975
        %v4264 = vunpack.c.l.b16 %v3976
        %v4265 = vunpack.c.l.b16 %v3977
        %v4266 = vunpack.c.l.b16 %v3978
        %v4267 = vunpack.c.l.b16 %v3979
        %v4268 = vunpack.c.l.b16 %v3980
        %v4269 = vunpack.c.l.b16 %v3981
        %v4270 = vunpack.c.l.b16 %v3982
        %v4271 = vunpack.c.l.b16 %v3983
        %v4272 = vunpack.c.l.b16 %v3984
        %v4273 = vunpack.c.l.b16 %v3985
        %v4274 = vunpack.c.l.b16 %v3986
        %v4275 = vunpack.c.l.b16 %v3987
        %v4276 = vunpack.c.l.b16 %v3988
        %v4277 = vunpack.c.l.b16 %v3989
        %v4278 = vunpack.c.l.b16 %v3990
        %v4279 = vunpack.c.l.b16 %v3991
        %v4280 = vunpack.c.l.b16 %v3992
        %v4281 = vunpack.c.l.b16 %v3993
        %v4282 = vunpack.c.l.b16 %v3994
        %v4283 = vunpack.c.l.b16 %v3995
        %v4284 = vunpack.c.l.b16 %v3996
        %v4285 = vunpack.c.l.b16 %v3997
        %v4286 = vunpack.c.l.b16 %v3998
        %v4287 = vunpack.c.l.b16 %v3999
        %v4288 = vunpack.c.l.b16 %v4000
        %v4289 = vunpack.c.l.b16 %v4001
        %v4290 = vunpack.c.l.b16 %v4002
        %v4291 = vunpack.c.l.b16 %v4003
        %v4292 = vunpack.c.l.b16 %v4004
        %v4293 = vunpack.c.l.b16 %v4005
        %v4294 = vunpack.c.l.b16 %v4006
        %v4295 = vunpack.c.l.b16 %v4007
        %v4296 = vunpack.c.l.b16 %v4008
        %v4297 = vunpack.c.l.b16 %v4009
        %v4298 = vunpack.c.l.b16 %v4010
        %v4299 = vunpack.c.l.b16 %v4011
        %v4300 = vunpack.c.l.b16 %v4012
        %v4301 = vunpack.c.l.b16 %v4013
        %v4302 = vunpack.c.l.b16 %v4014
        %v4303 = vunpack.c.l.b16 %v4015
        %v4304 = vunpack.c.l.b16 %v4016
        %v4305 = vunpack.c.l.b16 %v4017
        %v4306 = vunpack.c.l.b16 %v4018
        %v4307 = vunpack.c.l.b16 %v4019
        %v4308 = vunpack.c.l.b16 %v4020
        %v4309 = vunpack.c.l.b16 %v4021
        %v4310 = vunpack.c.l.b16 %v4022
        %v4311 = vunpack.c.l.b16 %v4023
        %v4312 = vunpack.c.l.b16 %v4024
        %v4313 = vunpack.c.l.b16 %v4025
        %v4314 = vunpack.c.l.b16 %v4026
        %v4315 = vunpack.c.l.b16 %v4027
        %v4316 = vunpack.c.l.b16 %v4028
        %v4317 = vunpack.c.l.b16 %v4029
        %v4318 = vunpack.c.l.b16 %v4030
        %v4319 = vunpack.c.l.b16 %v4031
        %v4320 = vunpack.c.l.b16 %v4032
        %v4321 = vunpack.c.l.b16 %v4033
        %v4322 = vunpack.c.l.b16 %v4034
        %v4323 = vunpack.c.l.b16 %v4035
        %v4324 = vunpack.c.l.b16 %v4036
        %v4325 = vunpack.c.l.b16 %v4037
        %v4326 = vunpack.c.l.b16 %v4038
        %v4327 = vunpack.c.l.b16 %v4039
        %v4328 = vunpack.c.l.b16 %v4040
        %v4329 = vunpack.c.l.b16 %v4041
        %v4330 = vunpack.c.l.b16 %v4042
        %v4331 = vunpack.c.l.b16 %v4043
        %v4332 = vunpack.c.l.b16 %v4044
        %v4333 = vunpack.c.l.b16 %v4045
        %v4334 = vunpack.c.l.b16 %v4046
        %v4335 = vunpack.c.l.b16 %v4047
        %v4336 = vunpack.c.l.b16 %v4048
        %v4337 = vunpack.c.l.b16 %v4049
        %v4338 = vunpack.c.l.b16 %v4050
        %v4339 = vunpack.c.l.b16 %v4051
        %v4340 = vunpack.c.l.b16 %v4052
        %v4341 = vunpack.c.l.b16 %v4053
        %v4342 = vunpack.c.l.b16 %v4054
        %v4343 = vunpack.c.l.b16 %v4055
        %v4344 = vunpack.c.l.b16 %v4056
        %v4345 = vunpack.c.l.b16 %v4057
        %v4346 = vunpack.c.l.b16 %v4058
        %v4347 = vunpack.c.l.b16 %v4059
        %v4348 = vunpack.c.l.b16 %v4060
        %v4349 = vunpack.c.l.b16 %v4061
        %v4350 = vunpack.c.l.b16 %v4062
        %v4351 = vunpack.c.l.b16 %v4063
        %v4352 = vunpack.c.l.b16 %v4064
        %v4353 = vunpack.c.l.b16 %v4065
        %v4354 = vunpack.c.l.b16 %v4066
        %v4355 = vunpack.c.l.b16 %v4067
        %v4356 = vunpack.c.l.b16 %v4068
        %v4357 = vunpack.c.l.b16 %v4069
        %v4358 = vunpack.c.l.b16 %v4070
        %v4359 = vunpack.c.l.b16 %v4071
        %v4360 = vunpack.c.l.b16 %v4072
        %v4361 = vunpack.c.l.b16 %v4073
        %v4362 = vunpack.c.l.b16 %v4074
        %v4363 = vunpack.c.l.b16 %v4075
        %v4364 = vunpack.c.l.b16 %v4076
        %v4365 = vunpack.c.l.b16 %v4077
        %v4366 = vunpack.c.l.b16 %v4078
        %v4367 = vunpack.c.l.b16 %v4079
        %v4368 = vunpack.c.l.b16 %v4080
        %v4369 = vpack.c.b16 %v4226, %v4225
        %v4370 = vpack.c.b16 %v4228, %v4227
        %v4371 = vpack.c.b16 %v4230, %v4229
        %v4372 = vpack.c.b16 %v4232, %v4231
        %v4373 = vpack.c.b16 %v4234, %v4233
        %v4374 = vpack.c.b16 %v4236, %v4235
        %v4375 = vpack.c.b16 %v4238, %v4237
        %v4376 = vpack.c.b16 %v4240, %v4239
        %v4377 = vpack.c.b16 %v4242, %v4241
        %v4378 = vpack.c.b16 %v4244, %v4243
        %v4379 = vpack.c.b16 %v4246, %v4245
        %v4380 = vpack.c.b16 %v4248, %v4247
        %v4381 = vpack.c.b16 %v4250, %v4249
        %v4382 = vpack.c.b16 %v4252, %v4251
        %v4383 = vpack.c.b16 %v4254, %v4253
        %v4384 = vpack.c.b16 %v4256, %v4255
        %v4385 = vpack.c.b16 %v4258, %v4257
        %v4386 = vpack.c.b16 %v4260, %v4259
        %v4387 = vpack.c.b16 %v4262, %v4261
        %v4388 = vpack.c.b16 %v4264, %v4263
        %v4389 = vpack.c.b16 %v4266, %v4265
        %v4390 = vpack.c.b16 %v4268, %v4267
        %v4391 = vpack.c.b16 %v4270, %v4269
        %v4392 = vpack.c.b16 %v4272, %v4271
        %v4393 = vpack.c.b16 %v4274, %v4273
        %v4394 = vpack.c.b16 %v4276, %v4275
        %v4395 = vpack.c.b16 %v4278, %v4277
        %v4396 = vpack.c.b16 %v4280, %v4279
        %v4397 = vpack.c.b16 %v4282, %v4281
        %v4398 = vpack.c.b16 %v4284, %v4283
        %v4399 = vpack.c.b16 %v4286, %v4285
        %v4400 = vpack.c.b16 %v4288, %v4287
        %v4401 = vpack.c.b16 %v4290, %v4289
        %v4402 = vpack.c.b16 %v4292, %v4291
        %v4403 = vpack.c.b16 %v4294, %v4293
        %v4404 = vpack.c.b16 %v4296, %v4295
        %v4405 = vpack.c.b16 %v4298, %v4297
        %v4406 = vpack.c.b16 %v4300, %v4299
        %v4407 = vpack.c.b16 %v4302, %v4301
        %v4408 = vpack.c.b16 %v4304, %v4303
        %v4409 = vpack.c.b16 %v4306, %v4305
        %v4410 = vpack.c.b16 %v4308, %v4307
        %v4411 = vpack.c.b16 %v4310, %v4309
        %v4412 = vpack.c.b16 %v4312, %v4311
        %v4413 = vpack.c.b16 %v4314, %v4313
        %v4414 = vpack.c.b16 %v4316, %v4315
        %v4415 = vpack.c.b16 %v4318, %v4317
        %v4416 = vpack.c.b16 %v4320, %v4319
        %v4417 = vpack.c.b16 %v4322, %v4321
        %v4418 = vpack.c.b16 %v4324, %v4323
        %v4419 = vpack.c.b16 %v4326, %v4325
        %v4420 = vpack.c.b16 %v4328, %v4327
        %v4421 = vpack.c.b16 %v4330, %v4329
        %v4422 = vpack.c.b16 %v4332, %v4331
        %v4423 = vpack.c.b16 %v4334, %v4333
        %v4424 = vpack.c.b16 %v4336, %v4335
        %v4425 = vpack.c.b16 %v4338, %v4337
        %v4426 = vpack.c.b16 %v4340, %v4339
        %v4427 = vpack.c.b16 %v4342, %v4341
        %v4428 = vpack.c.b16 %v4344, %v4343
        %v4429 = vpack.c.b16 %v4346, %v4345
        %v4430 = vpack.c.b16 %v4348, %v4347
        %v4431 = vpack.c.b16 %v4350, %v4349
        %v4432 = vpack.c.b16 %v4352, %v4351
        %v4433 = vpack.c.b16 %v4354, %v4353
        %v4434 = vpack.c.b16 %v4356, %v4355
        %v4435 = vpack.c.b16 %v4358, %v4357
        %v4436 = vpack.c.b16 %v4360, %v4359
        %v4437 = vpack.c.b16 %v4362, %v4361
        %v4438 = vpack.c.b16 %v4364, %v4363
        %v4439 = vpack.c.b16 %v4366, %v4365
        %v4440 = vpack.c.b16 %v4368, %v4367
        %4513 = vmatpush.bf16.msra.mxu0 %v4376
        %4514 = vmatpush.bf16.msra.mxu0 %v4375
        %4515 = vmatpush.bf16.msra.mxu0 %v4374
        %4516 = vmatpush.bf16.msra.mxu0 %v4373
        %4517 = vmatpush.bf16.msra.mxu0 %v4372
        %4518 = vmatpush.bf16.msra.mxu0 %v4371
        %4519 = vmatpush.bf16.msra.mxu0 %v4370
        %4520 = vmatpush.bf16.msra.mxu0 %v4369
        %4521 = vmatmul.bf16.gmra.mxu0 %v3709
        %v4522 = vpop.f32.mrf.mxu0
        %v4523 = vadd.f32 0.0, %v4522
        %v4524 = vpop.f32.mrf.mxu0
        %v4525 = vadd.f32 0.0, %v4524
        %4526 = vmatmul.bf16.gmra.mxu0 %v3710
        %v4527 = vpop.f32.mrf.mxu0
        %v4528 = vadd.f32 0.0, %v4527
        %v4529 = vpop.f32.mrf.mxu0
        %v4530 = vadd.f32 0.0, %v4529
        %4531 = vmatmul.bf16.gmra.mxu0 %v3711
        %v4532 = vpop.f32.mrf.mxu0
        %v4533 = vadd.f32 0.0, %v4532
        %v4534 = vpop.f32.mrf.mxu0
        %v4535 = vadd.f32 0.0, %v4534
        %4536 = vmatmul.bf16.gmra.mxu0 %v3712
        %v4537 = vpop.f32.mrf.mxu0
        %v4538 = vadd.f32 0.0, %v4537
        %v4539 = vpop.f32.mrf.mxu0
        %v4540 = vadd.f32 0.0, %v4539
        %4541 = vmatmul.bf16.gmra.mxu0 %v3713
        %v4542 = vpop.f32.mrf.mxu0
        %v4543 = vadd.f32 0.0, %v4542
        %v4544 = vpop.f32.mrf.mxu0
        %v4545 = vadd.f32 0.0, %v4544
        %4546 = vmatmul.bf16.gmra.mxu0 %v3714
        %v4547 = vpop.f32.mrf.mxu0
        %v4548 = vadd.f32 0.0, %v4547
        %v4549 = vpop.f32.mrf.mxu0
        %v4550 = vadd.f32 0.0, %v4549
        %4551 = vmatmul.bf16.gmra.mxu0 %v3715
        %v4552 = vpop.f32.mrf.mxu0
        %v4553 = vadd.f32 0.0, %v4552
        %v4554 = vpop.f32.mrf.mxu0
        %v4555 = vadd.f32 0.0, %v4554
        %4556 = vmatmul.bf16.gmra.mxu0 %v3716
        %v4557 = vpop.f32.mrf.mxu0
        %v4558 = vadd.f32 0.0, %v4557
        %v4559 = vpop.f32.mrf.mxu0
        %v4560 = vadd.f32 0.0, %v4559
        %4561 = vdwg.mxu0
        %4562 = vmatpush.bf16.msra.mxu0 %v4384
        %4563 = vmatpush.bf16.msra.mxu0 %v4383
        %4564 = vmatpush.bf16.msra.mxu0 %v4382
        %4565 = vmatpush.bf16.msra.mxu0 %v4381
        %4566 = vmatpush.bf16.msra.mxu0 %v4380
        %4567 = vmatpush.bf16.msra.mxu0 %v4379
        %4568 = vmatpush.bf16.msra.mxu0 %v4378
        %4569 = vmatpush.bf16.msra.mxu0 %v4377
        %4570 = vmatmul.bf16.gmra.mxu0 %v3760
        %v4571 = vpop.f32.mrf.mxu0
        %v4572 = vadd.f32 %v4523, %v4571
        %v4573 = vpop.f32.mrf.mxu0
        %v4574 = vadd.f32 %v4525, %v4573
        %4575 = vmatmul.bf16.gmra.mxu0 %v3772
        %v4576 = vpop.f32.mrf.mxu0
        %v4577 = vadd.f32 %v4528, %v4576
        %v4578 = vpop.f32.mrf.mxu0
        %v4579 = vadd.f32 %v4530, %v4578
        %4580 = vmatmul.bf16.gmra.mxu0 %v3784
        %v4581 = vpop.f32.mrf.mxu0
        %v4582 = vadd.f32 %v4533, %v4581
        %v4583 = vpop.f32.mrf.mxu0
        %v4584 = vadd.f32 %v4535, %v4583
        %4585 = vmatmul.bf16.gmra.mxu0 %v3796
        %v4586 = vpop.f32.mrf.mxu0
        %v4587 = vadd.f32 %v4538, %v4586
        %v4588 = vpop.f32.mrf.mxu0
        %v4589 = vadd.f32 %v4540, %v4588
        %4590 = vmatmul.bf16.gmra.mxu0 %v3808
        %v4591 = vpop.f32.mrf.mxu0
        %v4592 = vadd.f32 %v4543, %v4591
        %v4593 = vpop.f32.mrf.mxu0
        %v4594 = vadd.f32 %v4545, %v4593
        %4595 = vmatmul.bf16.gmra.mxu0 %v3820
        %v4596 = vpop.f32.mrf.mxu0
        %v4597 = vadd.f32 %v4548, %v4596
        %v4598 = vpop.f32.mrf.mxu0
        %v4599 = vadd.f32 %v4550, %v4598
        %4600 = vmatmul.bf16.gmra.mxu0 %v3832
        %v4601 = vpop.f32.mrf.mxu0
        %v4602 = vadd.f32 %v4553, %v4601
        %v4603 = vpop.f32.mrf.mxu0
        %v4604 = vadd.f32 %v4555, %v4603
        %4605 = vmatmul.bf16.gmra.mxu0 %v3844
        %v4606 = vpop.f32.mrf.mxu0
        %v4607 = vadd.f32 %v4558, %v4606
        %v4608 = vpop.f32.mrf.mxu0
        %v4609 = vadd.f32 %v4560, %v4608
        %4610 = vdwg.mxu0
        %4611 = vmatpush.bf16.msra.mxu0 %v4392
        %4612 = vmatpush.bf16.msra.mxu0 %v4391
        %4613 = vmatpush.bf16.msra.mxu0 %v4390
        %4614 = vmatpush.bf16.msra.mxu0 %v4389
        %4615 = vmatpush.bf16.msra.mxu0 %v4388
        %4616 = vmatpush.bf16.msra.mxu0 %v4387
        %4617 = vmatpush.bf16.msra.mxu0 %v4386
        %4618 = vmatpush.bf16.msra.mxu0 %v4385
        %4619 = vmatmul.bf16.gmra.mxu0 %v3855
        %v4620 = vpop.f32.mrf.mxu0
        %v4621 = vadd.f32 %v4572, %v4620
        %v4622 = vpop.f32.mrf.mxu0
        %v4623 = vadd.f32 %v4574, %v4622
        %4624 = vmatmul.bf16.gmra.mxu0 %v3858
        %v4625 = vpop.f32.mrf.mxu0
        %v4626 = vadd.f32 %v4577, %v4625
        %v4627 = vpop.f32.mrf.mxu0
        %v4628 = vadd.f32 %v4579, %v4627
        %4629 = vmatmul.bf16.gmra.mxu0 %v3861
        %v4630 = vpop.f32.mrf.mxu0
        %v4631 = vadd.f32 %v4582, %v4630
        %v4632 = vpop.f32.mrf.mxu0
        %v4633 = vadd.f32 %v4584, %v4632
        %4634 = vmatmul.bf16.gmra.mxu0 %v3864
        %v4635 = vpop.f32.mrf.mxu0
        %v4636 = vadd.f32 %v4587, %v4635
        %v4637 = vpop.f32.mrf.mxu0
        %v4638 = vadd.f32 %v4589, %v4637
        %4639 = vmatmul.bf16.gmra.mxu0 %v3867
        %v4640 = vpop.f32.mrf.mxu0
        %v4641 = vadd.f32 %v4592, %v4640
        %v4642 = vpop.f32.mrf.mxu0
        %v4643 = vadd.f32 %v4594, %v4642
        %4644 = vmatmul.bf16.gmra.mxu0 %v3870
        %v4645 = vpop.f32.mrf.mxu0
        %v4646 = vadd.f32 %v4597, %v4645
        %v4647 = vpop.f32.mrf.mxu0
        %v4648 = vadd.f32 %v4599, %v4647
        %4649 = vmatmul.bf16.gmra.mxu0 %v3873
        %v4650 = vpop.f32.mrf.mxu0
        %v4651 = vadd.f32 %v4602, %v4650
        %v4652 = vpop.f32.mrf.mxu0
        %v4653 = vadd.f32 %v4604, %v4652
        %4654 = vmatmul.bf16.gmra.mxu0 %v3876
        %v4655 = vpop.f32.mrf.mxu0
        %v4656 = vadd.f32 %v4607, %v4655
        %v4657 = vpop.f32.mrf.mxu0
        %v4658 = vadd.f32 %v4609, %v4657
        %4659 = vdwg.mxu0
        %4660 = vmatpush.bf16.msra.mxu0 %v4400
        %4661 = vmatpush.bf16.msra.mxu0 %v4399
        %4662 = vmatpush.bf16.msra.mxu0 %v4398
        %4663 = vmatpush.bf16.msra.mxu0 %v4397
        %4664 = vmatpush.bf16.msra.mxu0 %v4396
        %4665 = vmatpush.bf16.msra.mxu0 %v4395
        %4666 = vmatpush.bf16.msra.mxu0 %v4394
        %4667 = vmatpush.bf16.msra.mxu0 %v4393
        %4668 = vmatmul.bf16.gmra.mxu0 %v3710
        %v4669 = vpop.f32.mrf.mxu0
        %v4670 = vadd.f32 %v4621, %v4669
        %v4671 = vpop.f32.mrf.mxu0
        %v4672 = vadd.f32 %v4623, %v4671
        %4673 = vmatmul.bf16.gmra.mxu0 %v3711
        %v4674 = vpop.f32.mrf.mxu0
        %v4675 = vadd.f32 %v4626, %v4674
        %v4676 = vpop.f32.mrf.mxu0
        %v4677 = vadd.f32 %v4628, %v4676
        %4678 = vmatmul.bf16.gmra.mxu0 %v3712
        %v4679 = vpop.f32.mrf.mxu0
        %v4680 = vadd.f32 %v4631, %v4679
        %v4681 = vpop.f32.mrf.mxu0
        %v4682 = vadd.f32 %v4633, %v4681
        %4683 = vmatmul.bf16.gmra.mxu0 %v3713
        %v4684 = vpop.f32.mrf.mxu0
        %v4685 = vadd.f32 %v4636, %v4684
        %v4686 = vpop.f32.mrf.mxu0
        %v4687 = vadd.f32 %v4638, %v4686
        %4688 = vmatmul.bf16.gmra.mxu0 %v3714
        %v4689 = vpop.f32.mrf.mxu0
        %v4690 = vadd.f32 %v4641, %v4689
        %v4691 = vpop.f32.mrf.mxu0
        %v4692 = vadd.f32 %v4643, %v4691
        %4693 = vmatmul.bf16.gmra.mxu0 %v3715
        %v4694 = vpop.f32.mrf.mxu0
        %v4695 = vadd.f32 %v4646, %v4694
        %v4696 = vpop.f32.mrf.mxu0
        %v4697 = vadd.f32 %v4648, %v4696
        %4698 = vmatmul.bf16.gmra.mxu0 %v3716
        %v4699 = vpop.f32.mrf.mxu0
        %v4700 = vadd.f32 %v4651, %v4699
        %v4701 = vpop.f32.mrf.mxu0
        %v4702 = vadd.f32 %v4653, %v4701
        %4703 = vmatmul.bf16.gmra.mxu0 %v3889
        %v4704 = vpop.f32.mrf.mxu0
        %v4705 = vadd.f32 %v4656, %v4704
        %v4706 = vpop.f32.mrf.mxu0
        %v4707 = vadd.f32 %v4658, %v4706
        %4708 = vdwg.mxu0
        %4709 = vmatpush.bf16.msra.mxu0 %v4408
        %4710 = vmatpush.bf16.msra.mxu0 %v4407
        %4711 = vmatpush.bf16.msra.mxu0 %v4406
        %4712 = vmatpush.bf16.msra.mxu0 %v4405
        %4713 = vmatpush.bf16.msra.mxu0 %v4404
        %4714 = vmatpush.bf16.msra.mxu0 %v4403
        %4715 = vmatpush.bf16.msra.mxu0 %v4402
        %4716 = vmatpush.bf16.msra.mxu0 %v4401
        %4717 = vmatmul.bf16.gmra.mxu0 %v3772
        %v4718 = vpop.f32.mrf.mxu0
        %v4719 = vadd.f32 %v4670, %v4718
        %v4720 = vpop.f32.mrf.mxu0
        %v4721 = vadd.f32 %v4672, %v4720
        %4722 = vmatmul.bf16.gmra.mxu0 %v3784
        %v4723 = vpop.f32.mrf.mxu0
        %v4724 = vadd.f32 %v4675, %v4723
        %v4725 = vpop.f32.mrf.mxu0
        %v4726 = vadd.f32 %v4677, %v4725
        %4727 = vmatmul.bf16.gmra.mxu0 %v3796
        %v4728 = vpop.f32.mrf.mxu0
        %v4729 = vadd.f32 %v4680, %v4728
        %v4730 = vpop.f32.mrf.mxu0
        %v4731 = vadd.f32 %v4682, %v4730
        %4732 = vmatmul.bf16.gmra.mxu0 %v3808
        %v4733 = vpop.f32.mrf.mxu0
        %v4734 = vadd.f32 %v4685, %v4733
        %v4735 = vpop.f32.mrf.mxu0
        %v4736 = vadd.f32 %v4687, %v4735
        %4737 = vmatmul.bf16.gmra.mxu0 %v3820
        %v4738 = vpop.f32.mrf.mxu0
        %v4739 = vadd.f32 %v4690, %v4738
        %v4740 = vpop.f32.mrf.mxu0
        %v4741 = vadd.f32 %v4692, %v4740
        %4742 = vmatmul.bf16.gmra.mxu0 %v3832
        %v4743 = vpop.f32.mrf.mxu0
        %v4744 = vadd.f32 %v4695, %v4743
        %v4745 = vpop.f32.mrf.mxu0
        %v4746 = vadd.f32 %v4697, %v4745
        %4747 = vmatmul.bf16.gmra.mxu0 %v3844
        %v4748 = vpop.f32.mrf.mxu0
        %v4749 = vadd.f32 %v4700, %v4748
        %v4750 = vpop.f32.mrf.mxu0
        %v4751 = vadd.f32 %v4702, %v4750
        %4752 = vmatmul.bf16.gmra.mxu0 %v3905
        %v4753 = vpop.f32.mrf.mxu0
        %v4754 = vadd.f32 %v4705, %v4753
        %v4755 = vpop.f32.mrf.mxu0
        %v4756 = vadd.f32 %v4707, %v4755
        %4757 = vdwg.mxu0
        %4758 = vmatpush.bf16.msra.mxu0 %v4416
        %4759 = vmatpush.bf16.msra.mxu0 %v4415
        %4760 = vmatpush.bf16.msra.mxu0 %v4414
        %4761 = vmatpush.bf16.msra.mxu0 %v4413
        %4762 = vmatpush.bf16.msra.mxu0 %v4412
        %4763 = vmatpush.bf16.msra.mxu0 %v4411
        %4764 = vmatpush.bf16.msra.mxu0 %v4410
        %4765 = vmatpush.bf16.msra.mxu0 %v4409
        %4766 = vmatmul.bf16.gmra.mxu0 %v3858
        %v4767 = vpop.f32.mrf.mxu0
        %v4768 = vadd.f32 %v4719, %v4767
        %v4769 = vpop.f32.mrf.mxu0
        %v4770 = vadd.f32 %v4721, %v4769
        %4771 = vmatmul.bf16.gmra.mxu0 %v3861
        %v4772 = vpop.f32.mrf.mxu0
        %v4773 = vadd.f32 %v4724, %v4772
        %v4774 = vpop.f32.mrf.mxu0
        %v4775 = vadd.f32 %v4726, %v4774
        %4776 = vmatmul.bf16.gmra.mxu0 %v3864
        %v4777 = vpop.f32.mrf.mxu0
        %v4778 = vadd.f32 %v4729, %v4777
        %v4779 = vpop.f32.mrf.mxu0
        %v4780 = vadd.f32 %v4731, %v4779
        %4781 = vmatmul.bf16.gmra.mxu0 %v3867
        %v4782 = vpop.f32.mrf.mxu0
        %v4783 = vadd.f32 %v4734, %v4782
        %v4784 = vpop.f32.mrf.mxu0
        %v4785 = vadd.f32 %v4736, %v4784
        %4786 = vmatmul.bf16.gmra.mxu0 %v3870
        %v4787 = vpop.f32.mrf.mxu0
        %v4788 = vadd.f32 %v4739, %v4787
        %v4789 = vpop.f32.mrf.mxu0
        %v4790 = vadd.f32 %v4741, %v4789
        %4791 = vmatmul.bf16.gmra.mxu0 %v3873
        %v4792 = vpop.f32.mrf.mxu0
        %v4793 = vadd.f32 %v4744, %v4792
        %v4794 = vpop.f32.mrf.mxu0
        %v4795 = vadd.f32 %v4746, %v4794
        %4796 = vmatmul.bf16.gmra.mxu0 %v3876
        %v4797 = vpop.f32.mrf.mxu0
        %v4798 = vadd.f32 %v4749, %v4797
        %v4799 = vpop.f32.mrf.mxu0
        %v4800 = vadd.f32 %v4751, %v4799
        %4801 = vmatmul.bf16.gmra.mxu0 %v3909
        %v4802 = vpop.f32.mrf.mxu0
        %v4803 = vadd.f32 %v4754, %v4802
        %v4804 = vpop.f32.mrf.mxu0
        %v4805 = vadd.f32 %v4756, %v4804
        %4806 = vdwg.mxu0
        %4807 = vmatpush.bf16.msra.mxu0 %v4424
        %4808 = vmatpush.bf16.msra.mxu0 %v4423
        %4809 = vmatpush.bf16.msra.mxu0 %v4422
        %4810 = vmatpush.bf16.msra.mxu0 %v4421
        %4811 = vmatpush.bf16.msra.mxu0 %v4420
        %4812 = vmatpush.bf16.msra.mxu0 %v4419
        %4813 = vmatpush.bf16.msra.mxu0 %v4418
        %4814 = vmatpush.bf16.msra.mxu0 %v4417
        %4815 = vmatmul.bf16.gmra.mxu0 %v3711
        %v4816 = vpop.f32.mrf.mxu0
        %v4817 = vadd.f32 %v4768, %v4816
        %v4818 = vpop.f32.mrf.mxu0
        %v4819 = vadd.f32 %v4770, %v4818
        %4820 = vmatmul.bf16.gmra.mxu0 %v3712
        %v4821 = vpop.f32.mrf.mxu0
        %v4822 = vadd.f32 %v4773, %v4821
        %v4823 = vpop.f32.mrf.mxu0
        %v4824 = vadd.f32 %v4775, %v4823
        %4825 = vmatmul.bf16.gmra.mxu0 %v3713
        %v4826 = vpop.f32.mrf.mxu0
        %v4827 = vadd.f32 %v4778, %v4826
        %v4828 = vpop.f32.mrf.mxu0
        %v4829 = vadd.f32 %v4780, %v4828
        %4830 = vmatmul.bf16.gmra.mxu0 %v3714
        %v4831 = vpop.f32.mrf.mxu0
        %v4832 = vadd.f32 %v4783, %v4831
        %v4833 = vpop.f32.mrf.mxu0
        %v4834 = vadd.f32 %v4785, %v4833
        %4835 = vmatmul.bf16.gmra.mxu0 %v3715
        %v4836 = vpop.f32.mrf.mxu0
        %v4837 = vadd.f32 %v4788, %v4836
        %v4838 = vpop.f32.mrf.mxu0
        %v4839 = vadd.f32 %v4790, %v4838
        %4840 = vmatmul.bf16.gmra.mxu0 %v3716
        %v4841 = vpop.f32.mrf.mxu0
        %v4842 = vadd.f32 %v4793, %v4841
        %v4843 = vpop.f32.mrf.mxu0
        %v4844 = vadd.f32 %v4795, %v4843
        %4845 = vmatmul.bf16.gmra.mxu0 %v3889
        %v4846 = vpop.f32.mrf.mxu0
        %v4847 = vadd.f32 %v4798, %v4846
        %v4848 = vpop.f32.mrf.mxu0
        %v4849 = vadd.f32 %v4800, %v4848
        %4850 = vmatmul.bf16.gmra.mxu0 %v3915
        %v4851 = vpop.f32.mrf.mxu0
        %v4852 = vadd.f32 %v4803, %v4851
        %v4853 = vpop.f32.mrf.mxu0
        %v4854 = vadd.f32 %v4805, %v4853
        %4855 = vdwg.mxu0
        %4856 = vmatpush.bf16.msra.mxu0 %v4432
        %4857 = vmatpush.bf16.msra.mxu0 %v4431
        %4858 = vmatpush.bf16.msra.mxu0 %v4430
        %4859 = vmatpush.bf16.msra.mxu0 %v4429
        %4860 = vmatpush.bf16.msra.mxu0 %v4428
        %4861 = vmatpush.bf16.msra.mxu0 %v4427
        %4862 = vmatpush.bf16.msra.mxu0 %v4426
        %4863 = vmatpush.bf16.msra.mxu0 %v4425
        %4864 = vmatmul.bf16.gmra.mxu0 %v3784
        %v4865 = vpop.f32.mrf.mxu0
        %v4866 = vadd.f32 %v4817, %v4865
        %v4867 = vpop.f32.mrf.mxu0
        %v4868 = vadd.f32 %v4819, %v4867
        %4869 = vmatmul.bf16.gmra.mxu0 %v3796
        %v4870 = vpop.f32.mrf.mxu0
        %v4871 = vadd.f32 %v4822, %v4870
        %v4872 = vpop.f32.mrf.mxu0
        %v4873 = vadd.f32 %v4824, %v4872
        %4874 = vmatmul.bf16.gmra.mxu0 %v3808
        %v4875 = vpop.f32.mrf.mxu0
        %v4876 = vadd.f32 %v4827, %v4875
        %v4877 = vpop.f32.mrf.mxu0
        %v4878 = vadd.f32 %v4829, %v4877
        %4879 = vmatmul.bf16.gmra.mxu0 %v3820
        %v4880 = vpop.f32.mrf.mxu0
        %v4881 = vadd.f32 %v4832, %v4880
        %v4882 = vpop.f32.mrf.mxu0
        %v4883 = vadd.f32 %v4834, %v4882
        %4884 = vmatmul.bf16.gmra.mxu0 %v3832
        %v4885 = vpop.f32.mrf.mxu0
        %v4886 = vadd.f32 %v4837, %v4885
        %v4887 = vpop.f32.mrf.mxu0
        %v4888 = vadd.f32 %v4839, %v4887
        %4889 = vmatmul.bf16.gmra.mxu0 %v3844
        %v4890 = vpop.f32.mrf.mxu0
        %v4891 = vadd.f32 %v4842, %v4890
        %v4892 = vpop.f32.mrf.mxu0
        %v4893 = vadd.f32 %v4844, %v4892
        %4894 = vmatmul.bf16.gmra.mxu0 %v3905
        %v4895 = vpop.f32.mrf.mxu0
        %v4896 = vadd.f32 %v4847, %v4895
        %v4897 = vpop.f32.mrf.mxu0
        %v4898 = vadd.f32 %v4849, %v4897
        %4899 = vmatmul.bf16.gmra.mxu0 %v3931
        %v4900 = vpop.f32.mrf.mxu0
        %v4901 = vadd.f32 %v4852, %v4900
        %v4902 = vpop.f32.mrf.mxu0
        %v4903 = vadd.f32 %v4854, %v4902
        %4904 = vdwg.mxu0
        %4905 = vmatpush.bf16.msra.mxu0 %v4440
        %4906 = vmatpush.bf16.msra.mxu0 %v4439
        %4907 = vmatpush.bf16.msra.mxu0 %v4438
        %4908 = vmatpush.bf16.msra.mxu0 %v4437
        %4909 = vmatpush.bf16.msra.mxu0 %v4436
        %4910 = vmatpush.bf16.msra.mxu0 %v4435
        %4911 = vmatpush.bf16.msra.mxu0 %v4434
        %4912 = vmatpush.bf16.msra.mxu0 %v4433
        %4913 = vmatmul.bf16.gmra.mxu0 %v3861
        %v4914 = vpop.f32.mrf.mxu0
        %v4915 = vadd.f32 %v4866, %v4914
        %v4916 = vpop.f32.mrf.mxu0
        %v4917 = vadd.f32 %v4868, %v4916
        %4918 = vmatmul.bf16.gmra.mxu0 %v3864
        %v4919 = vpop.f32.mrf.mxu0
        %v4920 = vadd.f32 %v4871, %v4919
        %v4921 = vpop.f32.mrf.mxu0
        %v4922 = vadd.f32 %v4873, %v4921
        %4923 = vmatmul.bf16.gmra.mxu0 %v3867
        %v4924 = vpop.f32.mrf.mxu0
        %v4925 = vadd.f32 %v4876, %v4924
        %v4926 = vpop.f32.mrf.mxu0
        %v4927 = vadd.f32 %v4878, %v4926
        %4928 = vmatmul.bf16.gmra.mxu0 %v3870
        %v4929 = vpop.f32.mrf.mxu0
        %v4930 = vadd.f32 %v4881, %v4929
        %v4931 = vpop.f32.mrf.mxu0
        %v4932 = vadd.f32 %v4883, %v4931
        %4933 = vmatmul.bf16.gmra.mxu0 %v3873
        %v4934 = vpop.f32.mrf.mxu0
        %v4935 = vadd.f32 %v4886, %v4934
        %v4936 = vpop.f32.mrf.mxu0
        %v4937 = vadd.f32 %v4888, %v4936
        %4938 = vmatmul.bf16.gmra.mxu0 %v3876
        %v4939 = vpop.f32.mrf.mxu0
        %v4940 = vadd.f32 %v4891, %v4939
        %v4941 = vpop.f32.mrf.mxu0
        %v4942 = vadd.f32 %v4893, %v4941
        %4943 = vmatmul.bf16.gmra.mxu0 %v3909
        %v4944 = vpop.f32.mrf.mxu0
        %v4945 = vadd.f32 %v4896, %v4944
        %v4946 = vpop.f32.mrf.mxu0
        %v4947 = vadd.f32 %v4898, %v4946
        %4948 = vmatmul.bf16.gmra.mxu0 %v3935
        %v4949 = vpop.f32.mrf.mxu0
        %v4950 = vadd.f32 %v4901, %v4949
        %v4951 = vpop.f32.mrf.mxu0
        %v4952 = vadd.f32 %v4903, %v4951
        %4953 = vdwg.mxu0
        %v4954 = vld [vmem:[%s5] sm:$0x1]
        %v4956 = vperm.slane %v4954, 0
        %v4958 = vmul.f32 %v4915, %v4956
        %v4959 = vmul.f32 %v4917, %v4956
        %v4960 = vmul.f32 %v4920, %v4956
        %v4961 = vmul.f32 %v4922, %v4956
        %v4962 = vmul.f32 %v4925, %v4956
        %v4963 = vmul.f32 %v4927, %v4956
        %v4964 = vmul.f32 %v4930, %v4956
        %v4965 = vmul.f32 %v4932, %v4956
        %v4966 = vmul.f32 %v4935, %v4956
        %v4967 = vmul.f32 %v4937, %v4956
        %v4968 = vmul.f32 %v4940, %v4956
        %v4969 = vmul.f32 %v4942, %v4956
        %v4970 = vmul.f32 %v4945, %v4956
        %v4971 = vmul.f32 %v4947, %v4956
        %v4972 = vmul.f32 %v4950, %v4956
        %v4973 = vmul.f32 %v4952, %v4956
        %v4974 = vld [vmem:[%s6] sm:$0x1]
        %v4976 = vperm.slane %v4974, 0
        %v4978 = vadd.f32 %v4958, %v4976
        %v4979 = vadd.f32 %v4959, %v4976
        %v4980 = vadd.f32 %v4960, %v4976
        %v4981 = vadd.f32 %v4961, %v4976
        %v4982 = vadd.f32 %v4962, %v4976
        %v4983 = vadd.f32 %v4963, %v4976
        %v4984 = vadd.f32 %v4964, %v4976
        %v4985 = vadd.f32 %v4965, %v4976
        %v4986 = vadd.f32 %v4966, %v4976
        %v4987 = vadd.f32 %v4967, %v4976
        %v4988 = vadd.f32 %v4968, %v4976
        %v4989 = vadd.f32 %v4969, %v4976
        %v4990 = vadd.f32 %v4970, %v4976
        %v4991 = vadd.f32 %v4971, %v4976
        %v4992 = vadd.f32 %v4972, %v4976
        %v4993 = vadd.f32 %v4973, %v4976
        %v4994 = vld [vmem:[%s7] sm:$0x1]
        %v4996 = vperm.slane %v4994, 0
        %v4998 = vmul.f32 %v3281, %v4996
        %v4999 = vmul.f32 %v3284, %v4996
        %v5000 = vmul.f32 %v3286, %v4996
        %v5001 = vmul.f32 %v3289, %v4996
        %v5002 = vmul.f32 %v3291, %v4996
        %v5003 = vmul.f32 %v3294, %v4996
        %v5004 = vmul.f32 %v3296, %v4996
        %v5005 = vmul.f32 %v3299, %v4996
        %v5006 = vmul.f32 %v3301, %v4996
        %v5007 = vmul.f32 %v3304, %v4996
        %v5008 = vmul.f32 %v3306, %v4996
        %v5009 = vmul.f32 %v3309, %v4996
        %v5010 = vmul.f32 %v3311, %v4996
        %v5011 = vmul.f32 %v3314, %v4996
        %v5012 = vmul.f32 %v3316, %v4996
        %v5013 = vmul.f32 %v3319, %v4996
        %v5014 = vmul.f32 %v3321, %v4996
        %v5015 = vmul.f32 %v3324, %v4996
        %v5016 = vmul.f32 %v3326, %v4996
        %v5017 = vmul.f32 %v3329, %v4996
        %v5018 = vmul.f32 %v3331, %v4996
        %v5019 = vmul.f32 %v3334, %v4996
        %v5020 = vmul.f32 %v3336, %v4996
        %v5021 = vmul.f32 %v3339, %v4996
        %v5022 = vld [vmem:[%s8] sm:$0x1]
        %v5024 = vperm.slane %v5022, 0
        %v5026 = vadd.f32 %v4998, %v5024
        %v5027 = vadd.f32 %v4999, %v5024
        %v5028 = vadd.f32 %v5000, %v5024
        %v5029 = vadd.f32 %v5001, %v5024
        %v5030 = vadd.f32 %v5002, %v5024
        %v5031 = vadd.f32 %v5003, %v5024
        %v5032 = vadd.f32 %v5004, %v5024
        %v5033 = vadd.f32 %v5005, %v5024
        %v5034 = vadd.f32 %v5006, %v5024
        %v5035 = vadd.f32 %v5007, %v5024
        %v5036 = vadd.f32 %v5008, %v5024
        %v5037 = vadd.f32 %v5009, %v5024
        %v5038 = vadd.f32 %v5010, %v5024
        %v5039 = vadd.f32 %v5011, %v5024
        %v5040 = vadd.f32 %v5012, %v5024
        %v5041 = vadd.f32 %v5013, %v5024
        %v5042 = vadd.f32 %v5014, %v5024
        %v5043 = vadd.f32 %v5015, %v5024
        %v5044 = vadd.f32 %v5016, %v5024
        %v5045 = vadd.f32 %v5017, %v5024
        %v5046 = vadd.f32 %v5018, %v5024
        %v5047 = vadd.f32 %v5019, %v5024
        %v5048 = vadd.f32 %v5020, %v5024
        %v5049 = vadd.f32 %v5021, %v5024
        %vm5074 = vcmask 1046528
        %v5075 = vrot.slane %v5026, 1
        %v5076 = vrot.slane %v5027, 1
        %v5077 = vsel %vm5074, %v5075, %v5076
        %v5078 = vrot.slane %v5028, 1
        %v5079 = vsel %vm5074, %v5076, %v5078
        %v5080 = vrot.slane %v5029, 1
        %v5081 = vrot.slane %v5030, 1
        %v5082 = vsel %vm5074, %v5080, %v5081
        %v5083 = vrot.slane %v5031, 1
        %v5084 = vsel %vm5074, %v5081, %v5083
        %v5085 = vrot.slane %v5032, 1
        %v5086 = vrot.slane %v5033, 1
        %v5087 = vsel %vm5074, %v5085, %v5086
        %v5088 = vrot.slane %v5034, 1
        %v5089 = vsel %vm5074, %v5086, %v5088
        %v5090 = vrot.slane %v5035, 1
        %v5091 = vrot.slane %v5036, 1
        %v5092 = vsel %vm5074, %v5090, %v5091
        %v5093 = vrot.slane %v5037, 1
        %v5094 = vsel %vm5074, %v5091, %v5093
        %v5095 = vrot.slane %v5038, 1
        %v5096 = vrot.slane %v5039, 1
        %v5097 = vsel %vm5074, %v5095, %v5096
        %v5098 = vrot.slane %v5040, 1
        %v5099 = vsel %vm5074, %v5096, %v5098
        %v5100 = vrot.slane %v5041, 1
        %v5101 = vrot.slane %v5042, 1
        %v5102 = vsel %vm5074, %v5100, %v5101
        %v5103 = vrot.slane %v5043, 1
        %v5104 = vsel %vm5074, %v5101, %v5103
        %v5105 = vrot.slane %v5044, 1
        %v5106 = vrot.slane %v5045, 1
        %v5107 = vsel %vm5074, %v5105, %v5106
        %v5108 = vrot.slane %v5046, 1
        %v5109 = vsel %vm5074, %v5106, %v5108
        %v5110 = vrot.slane %v5047, 1
        %v5111 = vrot.slane %v5048, 1
        %v5112 = vsel %vm5074, %v5110, %v5111
        %v5113 = vrot.slane %v5049, 1
        %v5114 = vsel %vm5074, %v5111, %v5113
        %v5131 = vadd.f32 %v4978, %v5077
        %v5132 = vadd.f32 %v4979, %v5079
        %v5133 = vadd.f32 %v4980, %v5082
        %v5134 = vadd.f32 %v4981, %v5084
        %v5135 = vadd.f32 %v4982, %v5087
        %v5136 = vadd.f32 %v4983, %v5089
        %v5137 = vadd.f32 %v4984, %v5092
        %v5138 = vadd.f32 %v4985, %v5094
        %v5139 = vadd.f32 %v4986, %v5097
        %v5140 = vadd.f32 %v4987, %v5099
        %v5141 = vadd.f32 %v4988, %v5102
        %v5142 = vadd.f32 %v4989, %v5104
        %v5143 = vadd.f32 %v4990, %v5107
        %v5144 = vadd.f32 %v4991, %v5109
        %v5145 = vadd.f32 %v4992, %v5112
        %v5146 = vadd.f32 %v4993, %v5114
        %v5147 = vmax.f32 %v5131, 0.0
        %v5148 = vmax.f32 %v5132, 0.0
        %v5149 = vmax.f32 %v5133, 0.0
        %v5150 = vmax.f32 %v5134, 0.0
        %v5151 = vmax.f32 %v5135, 0.0
        %v5152 = vmax.f32 %v5136, 0.0
        %v5153 = vmax.f32 %v5137, 0.0
        %v5154 = vmax.f32 %v5138, 0.0
        %v5155 = vmax.f32 %v5139, 0.0
        %v5156 = vmax.f32 %v5140, 0.0
        %v5157 = vmax.f32 %v5141, 0.0
        %v5158 = vmax.f32 %v5142, 0.0
        %v5159 = vmax.f32 %v5143, 0.0
        %v5160 = vmax.f32 %v5144, 0.0
        %v5161 = vmax.f32 %v5145, 0.0
        %v5162 = vmax.f32 %v5146, 0.0
        %5163 = vst [vmem:[%s366] sm:$0xff] %v5147
        %5164 = vst [vmem:[%s366 + $0x8] sm:$0xff] %v5148
        %5165 = vst [vmem:[%s366 + $0x10] sm:$0xff] %v5149
        %5166 = vst [vmem:[%s366 + $0x18] sm:$0xff] %v5150
        %5167 = vst [vmem:[%s366 + $0x20] sm:$0xff] %v5151
        %5168 = vst [vmem:[%s366 + $0x28] sm:$0xff] %v5152
        %5169 = vst [vmem:[%s366 + $0x30] sm:$0xff] %v5153
        %5170 = vst [vmem:[%s366 + $0x38] sm:$0xff] %v5154
        %5171 = vst [vmem:[%s366 + $0x40] sm:$0xff] %v5155
        %5172 = vst [vmem:[%s366 + $0x48] sm:$0xff] %v5156
        %5173 = vst [vmem:[%s366 + $0x50] sm:$0xff] %v5157
        %5174 = vst [vmem:[%s366 + $0x58] sm:$0xff] %v5158
        %5175 = vst [vmem:[%s366 + $0x60] sm:$0xff] %v5159
        %5176 = vst [vmem:[%s366 + $0x68] sm:$0xff] %v5160
        %5177 = vst [vmem:[%s366 + $0x70] sm:$0xff] %v5161
        %5178 = vst [vmem:[%s366 + $0x78] sm:$0xff] %v5162
        %s5179 = sand.u32 %s242, 1
        %s5180 = scalar_lea.sflag [#allocation4], %s5179
        %s5181 = sand.u32 %s242, 1
        %s5182 = smul.addr %s5181, 128
        %s5183 = scalar_lea.vmem [#allocation5], %s5182
        // Predicated region
        $region61: #{tpu_custom_call.1} parent=55 // pred_check
          %p5184 = pneg %p252
        $region62: #{tpu_custom_call.1} parent=55 // pred_check_branch
          %5186 = sbr.rel (%p5184) target = $region64
        $region63: #{tpu_custom_call.1} parent=55 // pred_region
          %s5187 = smul.u32 8, %s29
          %5189 = vsyncadd %s5180, 0
          %s5190 = smul.addr %s5187, 2
          %s5191 = smul.addr %s28, 32
          %s5192 = sadd.s32 %s5190, %s5191
          %s5193 = smul.addr %s5192, 8
          %s5194 = scalar_lea.hbm %s9, %s5193
          %s5195 = sshll.u32 %s5183, 4
          %s5196 = int_to_ptr.vmem [resolvable:$true] %s5195
          %s5197 = sshll.u32 %s5194, 4
          %s5198 = int_to_ptr.hbm [resolvable:$true] %s5197
          %5203 = dma.vmem_to_hbm [thread:$0]  %s5196, 2048, %s5198, %s5180, 128, 128, 8
        $region64: #{tpu_custom_call.1} parent=55 // pred_fallthru
          _
      $region56: #{tpu_custom_call.1} parent=5 // pred_fallthru
        _
      %p5204 = scmp.le.s32.totalorder 2, %s19
      // Predicated region
      $region65: #{tpu_custom_call.1} parent=5 // pred_check
        %p5205 = pneg %p5204
      $region66: #{tpu_custom_call.1} parent=5 // pred_check_branch
        %5207 = sbr.rel (%p5205) target = $region68
      $region67: #{tpu_custom_call.1} parent=5 // pred_region
        %s5208 = ssub.s32 %s19, 2
        // Predicated region
        $region69: #{tpu_custom_call.1} parent=67 // pred_check
          %p5209 = pneg %p258
        $region70: #{tpu_custom_call.1} parent=67 // pred_check_branch
          %5211 = sbr.rel (%p5209) target = $region72
        $region71: #{tpu_custom_call.1} parent=67 // pred_region
          %s5212 = sand.u32 %s243, 1
          %s5213 = scalar_lea.sflag [#allocation4], %s5212
          %s5214 = sand.u32 %s243, 1
          %s5215 = smul.addr %s5214, 128
          %s5216 = scalar_lea.vmem [#allocation5], %s5215
          %5218 = dma.done %s5213, 2048
        $region72: #{tpu_custom_call.1} parent=67 // pred_fallthru
          _
      $region68: #{tpu_custom_call.1} parent=5 // pred_fallthru
        _
    $region6: #{tpu_custom_call.1} parent=1 // loop_footer
      %s23 = sadd.s32 1, %s19
    $region7: #{tpu_custom_call.1} parent=1 // loop_footer_branch
      %18 = sbr.rel target = $region3
    $region8: #{tpu_custom_call.1} parent=1 // loop_exit
      _
    %5219 = vsyncpa [#allocation3], 1
    %s5220 = scalar_lea.sflag [#allocation3], 1
    %5221 = vsyncpa %s5220, 1
    %5222 = vsyncpa [#allocation4], 1
    %s5223 = scalar_lea.sflag [#allocation4], 1
    %5224 = vsyncpa %s5223, 1

</llo_original>
